<compile_context>
chip_gen: v7x
topology: tpu7x:2x2x1
jax: 0.10.0
libtpu: 0.0.40
codegen_flags: <defaults>
</compile_context>

<pallas_src>
import jax
import jax.numpy as jnp
from jax.experimental import pallas as pl
from jax.experimental.pallas import tpu as pltpu


# ----------------------------------------------------------------------------
# Fused kernel: LSTM layer 0 + LSTM layer 1 + final Linear classifier
# ----------------------------------------------------------------------------
def fused_lstm_classifier_kernel(
    x_ref,        # (B, T, D)
    w_ih0_ref,    # (D, 4H)   g-gate columns pre-scaled by 2
    w_hh0_ref,    # (H, 4H)   g-gate columns pre-scaled by 2
    b0_ref,       # (1, 4H)   b_ih0 + b_hh0, g slice pre-scaled by 2
    w_ih1_ref,    # (H, 4H)   g-gate columns pre-scaled by 2
    w_hh1_ref,    # (H, 4H)   g-gate columns pre-scaled by 2
    b1_ref,       # (1, 4H)   b_ih1 + b_hh1, g slice pre-scaled by 2
    w_fc_ref,     # (H, C)
    b_fc_ref,     # (1, C)
    out_ref,      # (B, C)
):
    B, T, D = x_ref.shape
    H = w_hh0_ref.shape[0]

    # ---- layer-0 input projection hoisted out of the recurrence ------------
    # One (B*T, D) x (D, 4H) MXU matmul, then a single up-front transpose to
    # time-major so every unrolled step reads a contiguous (B, 4H) tile.
    x2d = x_ref[...].reshape(B * T, D)            # D lane-aligned -> free view
    gx = jnp.dot(x2d, w_ih0_ref[...], preferred_element_type=jnp.float32)
    gx = gx.reshape(B, T, 4 * H) + b0_ref[...]
    gx = jnp.transpose(gx, (1, 0, 2))             # (T, B, 4H) time-major

    w_hh0 = w_hh0_ref[...]
    w_ih1 = w_ih1_ref[...]
    w_hh1 = w_hh1_ref[...]
    b1 = b1_ref[...]

    def cell(gates, c_prev):
        # Single EUP sigmoid pass over the whole (B, 4H) tile.
        # g-gate pre-activations carry a 2x scale (folded into the weights at
        # init), so tanh(g_pre) == 2*sigmoid(2*g_pre) - 1 == 2*sg_g - 1.
        # PyTorch gate order: i, f, g, o.
        sg = jax.nn.sigmoid(gates)
        i_g = sg[:, 0 * H:1 * H]
        f_g = sg[:, 1 * H:2 * H]
        g_g = 2.0 * sg[:, 2 * H:3 * H] - 1.0
        o_g = sg[:, 3 * H:4 * H]
        c_new = f_g * c_prev + i_g * g_g
        h_new = o_g * jnp.tanh(c_new)             # only remaining per-cell tanh
        return h_new, c_new

    h1 = jnp.zeros((B, H), jnp.float32)
    c1 = jnp.zeros((B, H), jnp.float32)
    h2 = jnp.zeros((B, H), jnp.float32)
    c2 = jnp.zeros((B, H), jnp.float32)

    # Statically unrolled time recurrence (T is small & compile-time constant).
    for t in range(T):
        # ---- layer 0: only the recurrent matmul is on the serial path ------
        g1 = gx[t] + jnp.dot(h1, w_hh0, preferred_element_type=jnp.float32)
        h1, c1 = cell(g1, c1)

        # ---- layer 1: two tiny MXU dots, no lane concat on the serial path -
        g2 = (jnp.dot(h1, w_ih1, preferred_element_type=jnp.float32)
              + jnp.dot(h2, w_hh1, preferred_element_type=jnp.float32)
              + b1)
        h2, c2 = cell(g2, c2)

    # ---- FC epilogue on the last hidden state of the top layer -------------
    logits = (
        jnp.dot(h2, w_fc_ref[...], preferred_element_type=jnp.float32)
        + b_fc_ref[...]
    )
    out_ref[...] = logits.astype(out_ref.dtype)


# ----------------------------------------------------------------------------
# Wrapper
# ----------------------------------------------------------------------------
@jax.jit
def lstm_classifier_forward(x, kparams):
    """Equivalent of LSTMClassifier.forward. x: (B, T, input_size).

    `kparams` is the kernel-packed parameter set (g-gate columns pre-scaled
    by 2, biases fused) produced by `pack_params` at init time.
    """
    B, T, D = x.shape
    H = kparams["w_hh0_t"].shape[0]
    C = kparams["w_fc_t"].shape[1]

    flops = (
        2 * B * T * D * 4 * H                       # hoisted input projection
        + T * (2 * B * H * 4 * H                    # layer-0 recurrent matmul
               + 2 * 2 * B * H * 4 * H)             # layer-1 two dots
        + 2 * B * H * C                             # fc epilogue
    )
    transcendentals = 2 * T * (B * 4 * H + B * H)   # sigmoid pass + tanh(c), 2 cells/step
    bytes_accessed = 4 * (
        x.size
        + kparams["w_ih0_t"].size + kparams["w_hh0_t"].size + kparams["b0"].size
        + kparams["w_ih1_t"].size + kparams["w_hh1_t"].size + kparams["b1"].size
        + kparams["w_fc_t"].size + kparams["b_fc"].size
        + B * C
    )

    # Single fused call; no grid -> whole arrays become VMEM-resident
    # full-array blocks (total footprint << VMEM at these shapes).
    return pl.pallas_call(
        fused_lstm_classifier_kernel,
        out_shape=jax.ShapeDtypeStruct((B, C), jnp.float32),
        compiler_params=pltpu.CompilerParams(
            vmem_limit_bytes=32 * 1024 * 1024),
        cost_estimate=pl.CostEstimate(
            flops=flops,
            transcendentals=transcendentals,
            bytes_accessed=bytes_accessed),
    )(
        x,
        kparams["w_ih0_t"],
        kparams["w_hh0_t"],
        kparams["b0"],
        kparams["w_ih1_t"],
        kparams["w_hh1_t"],
        kparams["b1"],
        kparams["w_fc_t"],
        kparams["b_fc"],
    )


# ----------------------------------------------------------------------------
# Deterministic parameter init (mirrors nn.LSTM / nn.Linear, num_layers=2)
# ----------------------------------------------------------------------------
def init_params(key, input_size, hidden_size, num_classes):
    """Standard (PyTorch-semantics) parameters, transposed for right-matmul."""
    H = hidden_size
    k = 1.0 / jnp.sqrt(H)

    def u(kk, shape):
        return jax.random.uniform(kk, shape, jnp.float32, -k, k)

    keys = jax.random.split(key, 10)
    w_ih0 = u(keys[0], (4 * H, input_size))
    w_hh0 = u(keys[1], (4 * H, H))
    b_ih0 = u(keys[2], (4 * H,))
    b_hh0 = u(keys[3], (4 * H,))
    w_ih1 = u(keys[4], (4 * H, H))
    w_hh1 = u(keys[5], (4 * H, H))
    b_ih1 = u(keys[6], (4 * H,))
    b_hh1 = u(keys[7], (4 * H,))
    w_fc = u(keys[8], (num_classes, H))
    b_fc = u(keys[9], (num_classes,))

    return {
        "w_ih0_t": w_ih0.T,                        # (D, 4H)
        "w_hh0_t": w_hh0.T,                        # (H, 4H)
        "b0": (b_ih0 + b_hh0)[None, :],            # (1, 4H)
        "w_ih1_t": w_ih1.T,                        # (H, 4H)
        "w_hh1_t": w_hh1.T,                        # (H, 4H)
        "b1": (b_ih1 + b_hh1)[None, :],            # (1, 4H)
        "w_fc_t": w_fc.T,                          # (H, C)
        "b_fc": b_fc[None, :],                     # (1, C)
    }


def pack_params(std, hidden_size):
    """Kernel-packed parameters: g-gate columns/bias slice pre-scaled by 2 so
    the kernel can use tanh(x) = 2*sigmoid(2x) - 1 from one sigmoid pass.
    Done once at init time (NOT per call)."""
    H = hidden_size

    def scale_g(a):  # a: (..., 4H); scale the g-gate slice [2H:3H] by 2
        return a.at[..., 2 * H:3 * H].multiply(2.0)

    return {
        "w_ih0_t": scale_g(std["w_ih0_t"]),
        "w_hh0_t": scale_g(std["w_hh0_t"]),
        "b0": scale_g(std["b0"]),
        "w_ih1_t": scale_g(std["w_ih1_t"]),
        "w_hh1_t": scale_g(std["w_hh1_t"]),
        "b1": scale_g(std["b1"]),
        "w_fc_t": std["w_fc_t"],
        "b_fc": std["b_fc"],
    }


# ----------------------------------------------------------------------------
# Pure-JAX reference (standard LSTM semantics, unscaled weights)
# ----------------------------------------------------------------------------
def reference_forward(x, std):
    B, T, D = x.shape
    H = std["w_hh0_t"].shape[0]

    def run_layer(seq_tbd, w_ih_t, w_hh_t, bias):
        h0 = jnp.zeros((B, H), jnp.float32)
        c0 = jnp.zeros((B, H), jnp.float32)

        def step(carry, x_t):
            h, c = carry
            gates = x_t @ w_ih_t + h @ w_hh_t + bias
            i = jax.nn.sigmoid(gates[:, 0 * H:1 * H])
            f = jax.nn.sigmoid(gates[:, 1 * H:2 * H])
            g = jnp.tanh(gates[:, 2 * H:3 * H])
            o = jax.nn.sigmoid(gates[:, 3 * H:4 * H])
            c = f * c + i * g
            h = o * jnp.tanh(c)
            return (h, c), h

        (_, _), out = jax.lax.scan(step, (h0, c0), seq_tbd)
        return out

    x_tbd = jnp.transpose(x, (1, 0, 2))                      # (T, B, D)
    h1_seq = run_layer(x_tbd, std["w_ih0_t"], std["w_hh0_t"], std["b0"])
    h2_seq = run_layer(h1_seq, std["w_ih1_t"], std["w_hh1_t"], std["b1"])
    return h2_seq[-1] @ std["w_fc_t"] + std["b_fc"]


# ----------------------------------------------------------------------------
if __name__ == "__main__":
    # Small shapes consistent with LSTMClassifier (scaled-down input/hidden);
    # 4*HIDDEN = 128 keeps the gate tile exactly one MXU lane width wide.
    B, T = 8, 8
    INPUT_SIZE, HIDDEN_SIZE, NUM_CLASSES = 128, 32, 8

    key = jax.random.PRNGKey(0)
    key, xk = jax.random.split(key)
    x = jax.random.normal(xk, (B, T, INPUT_SIZE), jnp.float32)

    std_params = init_params(key, INPUT_SIZE, HIDDEN_SIZE, NUM_CLASSES)
    kernel_params = pack_params(std_params, HIDDEN_SIZE)

    logits = lstm_classifier_forward(x, kernel_params)
    logits = jax.block_until_ready(logits)

    ref = reference_forward(x, std_params)
    assert logits.shape == (B, NUM_CLASSES)
    assert jnp.allclose(logits, ref, atol=1e-4, rtol=1e-4), "mismatch vs reference"

    print("KERNEL_OK")
</pallas_src>

<mosaic_0001>
module attributes {stable_mosaic.version = 11 : i64} {
  func.func @fused_lstm_classifier_kernel(%arg0: memref<8x8x128xf32, #tpu.memory_space<vmem>>, %arg1: memref<128x128xf32, #tpu.memory_space<vmem>>, %arg2: memref<32x128xf32, #tpu.memory_space<vmem>>, %arg3: memref<1x128xf32, #tpu.memory_space<vmem>>, %arg4: memref<32x128xf32, #tpu.memory_space<vmem>>, %arg5: memref<32x128xf32, #tpu.memory_space<vmem>>, %arg6: memref<1x128xf32, #tpu.memory_space<vmem>>, %arg7: memref<32x8xf32, #tpu.memory_space<vmem>>, %arg8: memref<1x8xf32, #tpu.memory_space<vmem>>, %arg9: memref<8x8xf32, #tpu.memory_space<vmem>>) attributes {dimension_semantics = [], scalar_prefetch = 0 : i64, scratch_operands = 0 : i64, tpu.core_type = #tpu.core_type<tc>} {
    %c0 = arith.constant 0 : index
    %c0_0 = arith.constant 0 : index
    %c0_1 = arith.constant 0 : index
    %0 = vector.load %arg0[%c0, %c0_0, %c0_1] : memref<8x8x128xf32, #tpu.memory_space<vmem>>, vector<8x8x128xf32>
    %1 = vector.shape_cast %0 : vector<8x8x128xf32> to vector<64x128xf32>
    %c0_2 = arith.constant 0 : index
    %c0_3 = arith.constant 0 : index
    %2 = vector.load %arg1[%c0_2, %c0_3] : memref<128x128xf32, #tpu.memory_space<vmem>>, vector<128x128xf32>
    %cst = arith.constant dense<0.000000e+00> : vector<64x128xf32>
    %3 = tpu.matmul %1, %2, %cst {dimension_numbers = #tpu.dot_dimension_numbers<[1], [0], [0], [1], [0, 0, 1, 1], [], []>} : vector<64x128xf32>, vector<128x128xf32>, vector<64x128xf32> -> vector<64x128xf32>
    %4 = vector.shape_cast %3 : vector<64x128xf32> to vector<8x8x128xf32>
    %c0_4 = arith.constant 0 : index
    %c0_5 = arith.constant 0 : index
    %5 = vector.load %arg3[%c0_4, %c0_5] : memref<1x128xf32, #tpu.memory_space<vmem>>, vector<1x128xf32>
    %6 = vector.shape_cast %5 : vector<1x128xf32> to vector<1x1x128xf32>
    %7 = vector.broadcast %6 : vector<1x1x128xf32> to vector<8x8x128xf32>
    %8 = arith.addf %4, %7 : vector<8x8x128xf32>
    %9 = tpu.transpose %8, [1, 0, 2] : vector<8x8x128xf32> -> vector<8x8x128xf32>
    %c0_6 = arith.constant 0 : index
    %c0_7 = arith.constant 0 : index
    %10 = vector.load %arg2[%c0_6, %c0_7] : memref<32x128xf32, #tpu.memory_space<vmem>>, vector<32x128xf32>
    %c0_8 = arith.constant 0 : index
    %c0_9 = arith.constant 0 : index
    %11 = vector.load %arg4[%c0_8, %c0_9] : memref<32x128xf32, #tpu.memory_space<vmem>>, vector<32x128xf32>
    %c0_10 = arith.constant 0 : index
    %c0_11 = arith.constant 0 : index
    %12 = vector.load %arg5[%c0_10, %c0_11] : memref<32x128xf32, #tpu.memory_space<vmem>>, vector<32x128xf32>
    %c0_12 = arith.constant 0 : index
    %c0_13 = arith.constant 0 : index
    %13 = vector.load %arg6[%c0_12, %c0_13] : memref<1x128xf32, #tpu.memory_space<vmem>>, vector<1x128xf32>
    %cst_14 = arith.constant 0.000000e+00 : f32
    %14 = vector.broadcast %cst_14 : f32 to vector<8x32xf32>
    %cst_15 = arith.constant 0.000000e+00 : f32
    %15 = vector.broadcast %cst_15 : f32 to vector<8x32xf32>
    %cst_16 = arith.constant 0.000000e+00 : f32
    %16 = vector.broadcast %cst_16 : f32 to vector<8x32xf32>
    %cst_17 = arith.constant 0.000000e+00 : f32
    %17 = vector.broadcast %cst_17 : f32 to vector<8x32xf32>
    %18 = vector.extract_strided_slice %9 {offsets = [0, 0, 0], sizes = [1, 8, 128], strides = [1, 1, 1]} : vector<8x8x128xf32> to vector<1x8x128xf32>
    %19 = vector.shape_cast %18 : vector<1x8x128xf32> to vector<8x128xf32>
    %cst_18 = arith.constant dense<0.000000e+00> : vector<8x128xf32>
    %20 = tpu.matmul %14, %10, %cst_18 {dimension_numbers = #tpu.dot_dimension_numbers<[1], [0], [0], [1], [0, 0, 1, 1], [], []>} : vector<8x32xf32>, vector<32x128xf32>, vector<8x128xf32> -> vector<8x128xf32>
    %21 = arith.addf %19, %20 : vector<8x128xf32>
    %22 = arith.negf %21 : vector<8x128xf32>
    %23 = math.exp %22 : vector<8x128xf32>
    %cst_19 = arith.constant 1.000000e+00 : f32
    %24 = vector.broadcast %cst_19 : f32 to vector<8x128xf32>
    %25 = arith.addf %24, %23 : vector<8x128xf32>
    %26 = arith.divf %24, %25 : vector<8x128xf32>
    %27 = vector.extract_strided_slice %26 {offsets = [0, 0], sizes = [8, 32], strides = [1, 1]} : vector<8x128xf32> to vector<8x32xf32>
    %28 = vector.extract_strided_slice %26 {offsets = [0, 32], sizes = [8, 32], strides = [1, 1]} : vector<8x128xf32> to vector<8x32xf32>
    %29 = vector.extract_strided_slice %26 {offsets = [0, 64], sizes = [8, 32], strides = [1, 1]} : vector<8x128xf32> to vector<8x32xf32>
    %cst_20 = arith.constant 2.000000e+00 : f32
    %30 = vector.broadcast %cst_20 : f32 to vector<8x32xf32>
    %31 = arith.mulf %30, %29 : vector<8x32xf32>
    %cst_21 = arith.constant 1.000000e+00 : f32
    %32 = vector.broadcast %cst_21 : f32 to vector<8x32xf32>
    %33 = arith.subf %31, %32 : vector<8x32xf32>
    %34 = vector.extract_strided_slice %26 {offsets = [0, 96], sizes = [8, 32], strides = [1, 1]} : vector<8x128xf32> to vector<8x32xf32>
    %35 = arith.mulf %28, %15 : vector<8x32xf32>
    %36 = arith.mulf %27, %33 : vector<8x32xf32>
    %37 = arith.addf %35, %36 : vector<8x32xf32>
    %38 = math.tanh %37 : vector<8x32xf32>
    %39 = arith.mulf %34, %38 : vector<8x32xf32>
    %cst_22 = arith.constant dense<0.000000e+00> : vector<8x128xf32>
    %40 = tpu.matmul %39, %11, %cst_22 {dimension_numbers = #tpu.dot_dimension_numbers<[1], [0], [0], [1], [0, 0, 1, 1], [], []>} : vector<8x32xf32>, vector<32x128xf32>, vector<8x128xf32> -> vector<8x128xf32>
    %cst_23 = arith.constant dense<0.000000e+00> : vector<8x128xf32>
    %41 = tpu.matmul %16, %12, %cst_23 {dimension_numbers = #tpu.dot_dimension_numbers<[1], [0], [0], [1], [0, 0, 1, 1], [], []>} : vector<8x32xf32>, vector<32x128xf32>, vector<8x128xf32> -> vector<8x128xf32>
    %42 = arith.addf %40, %41 : vector<8x128xf32>
    %43 = vector.broadcast %13 : vector<1x128xf32> to vector<8x128xf32>
    %44 = arith.addf %42, %43 : vector<8x128xf32>
    %45 = arith.negf %44 : vector<8x128xf32>
    %46 = math.exp %45 : vector<8x128xf32>
    %cst_24 = arith.constant 1.000000e+00 : f32
    %47 = vector.broadcast %cst_24 : f32 to vector<8x128xf32>
    %48 = arith.addf %47, %46 : vector<8x128xf32>
    %49 = arith.divf %47, %48 : vector<8x128xf32>
    %50 = vector.extract_strided_slice %49 {offsets = [0, 0], sizes = [8, 32], strides = [1, 1]} : vector<8x128xf32> to vector<8x32xf32>
    %51 = vector.extract_strided_slice %49 {offsets = [0, 32], sizes = [8, 32], strides = [1, 1]} : vector<8x128xf32> to vector<8x32xf32>
    %52 = vector.extract_strided_slice %49 {offsets = [0, 64], sizes = [8, 32], strides = [1, 1]} : vector<8x128xf32> to vector<8x32xf32>
    %cst_25 = arith.constant 2.000000e+00 : f32
    %53 = vector.broadcast %cst_25 : f32 to vector<8x32xf32>
    %54 = arith.mulf %53, %52 : vector<8x32xf32>
    %cst_26 = arith.constant 1.000000e+00 : f32
    %55 = vector.broadcast %cst_26 : f32 to vector<8x32xf32>
    %56 = arith.subf %54, %55 : vector<8x32xf32>
    %57 = vector.extract_strided_slice %49 {offsets = [0, 96], sizes = [8, 32], strides = [1, 1]} : vector<8x128xf32> to vector<8x32xf32>
    %58 = arith.mulf %51, %17 : vector<8x32xf32>
    %59 = arith.mulf %50, %56 : vector<8x32xf32>
    %60 = arith.addf %58, %59 : vector<8x32xf32>
    %61 = math.tanh %60 : vector<8x32xf32>
    %62 = arith.mulf %57, %61 : vector<8x32xf32>
    %63 = vector.extract_strided_slice %9 {offsets = [1, 0, 0], sizes = [1, 8, 128], strides = [1, 1, 1]} : vector<8x8x128xf32> to vector<1x8x128xf32>
    %64 = vector.shape_cast %63 : vector<1x8x128xf32> to vector<8x128xf32>
    %cst_27 = arith.constant dense<0.000000e+00> : vector<8x128xf32>
    %65 = tpu.matmul %39, %10, %cst_27 {dimension_numbers = #tpu.dot_dimension_numbers<[1], [0], [0], [1], [0, 0, 1, 1], [], []>} : vector<8x32xf32>, vector<32x128xf32>, vector<8x128xf32> -> vector<8x128xf32>
    %66 = arith.addf %64, %65 : vector<8x128xf32>
    %67 = arith.negf %66 : vector<8x128xf32>
    %68 = math.exp %67 : vector<8x128xf32>
    %cst_28 = arith.constant 1.000000e+00 : f32
    %69 = vector.broadcast %cst_28 : f32 to vector<8x128xf32>
    %70 = arith.addf %69, %68 : vector<8x128xf32>
    %71 = arith.divf %69, %70 : vector<8x128xf32>
    %72 = vector.extract_strided_slice %71 {offsets = [0, 0], sizes = [8, 32], strides = [1, 1]} : vector<8x128xf32> to vector<8x32xf32>
    %73 = vector.extract_strided_slice %71 {offsets = [0, 32], sizes = [8, 32], strides = [1, 1]} : vector<8x128xf32> to vector<8x32xf32>
    %74 = vector.extract_strided_slice %71 {offsets = [0, 64], sizes = [8, 32], strides = [1, 1]} : vector<8x128xf32> to vector<8x32xf32>
    %cst_29 = arith.constant 2.000000e+00 : f32
    %75 = vector.broadcast %cst_29 : f32 to vector<8x32xf32>
    %76 = arith.mulf %75, %74 : vector<8x32xf32>
    %cst_30 = arith.constant 1.000000e+00 : f32
    %77 = vector.broadcast %cst_30 : f32 to vector<8x32xf32>
    %78 = arith.subf %76, %77 : vector<8x32xf32>
    %79 = vector.extract_strided_slice %71 {offsets = [0, 96], sizes = [8, 32], strides = [1, 1]} : vector<8x128xf32> to vector<8x32xf32>
    %80 = arith.mulf %73, %37 : vector<8x32xf32>
    %81 = arith.mulf %72, %78 : vector<8x32xf32>
    %82 = arith.addf %80, %81 : vector<8x32xf32>
    %83 = math.tanh %82 : vector<8x32xf32>
    %84 = arith.mulf %79, %83 : vector<8x32xf32>
    %cst_31 = arith.constant dense<0.000000e+00> : vector<8x128xf32>
    %85 = tpu.matmul %84, %11, %cst_31 {dimension_numbers = #tpu.dot_dimension_numbers<[1], [0], [0], [1], [0, 0, 1, 1], [], []>} : vector<8x32xf32>, vector<32x128xf32>, vector<8x128xf32> -> vector<8x128xf32>
    %cst_32 = arith.constant dense<0.000000e+00> : vector<8x128xf32>
    %86 = tpu.matmul %62, %12, %cst_32 {dimension_numbers = #tpu.dot_dimension_numbers<[1], [0], [0], [1], [0, 0, 1, 1], [], []>} : vector<8x32xf32>, vector<32x128xf32>, vector<8x128xf32> -> vector<8x128xf32>
    %87 = arith.addf %85, %86 : vector<8x128xf32>
    %88 = vector.broadcast %13 : vector<1x128xf32> to vector<8x128xf32>
    %89 = arith.addf %87, %88 : vector<8x128xf32>
    %90 = arith.negf %89 : vector<8x128xf32>
    %91 = math.exp %90 : vector<8x128xf32>
    %cst_33 = arith.constant 1.000000e+00 : f32
    %92 = vector.broadcast %cst_33 : f32 to vector<8x128xf32>
    %93 = arith.addf %92, %91 : vector<8x128xf32>
    %94 = arith.divf %92, %93 : vector<8x128xf32>
    %95 = vector.extract_strided_slice %94 {offsets = [0, 0], sizes = [8, 32], strides = [1, 1]} : vector<8x128xf32> to vector<8x32xf32>
    %96 = vector.extract_strided_slice %94 {offsets = [0, 32], sizes = [8, 32], strides = [1, 1]} : vector<8x128xf32> to vector<8x32xf32>
    %97 = vector.extract_strided_slice %94 {offsets = [0, 64], sizes = [8, 32], strides = [1, 1]} : vector<8x128xf32> to vector<8x32xf32>
    %cst_34 = arith.constant 2.000000e+00 : f32
    %98 = vector.broadcast %cst_34 : f32 to vector<8x32xf32>
    %99 = arith.mulf %98, %97 : vector<8x32xf32>
    %cst_35 = arith.constant 1.000000e+00 : f32
    %100 = vector.broadcast %cst_35 : f32 to vector<8x32xf32>
    %101 = arith.subf %99, %100 : vector<8x32xf32>
    %102 = vector.extract_strided_slice %94 {offsets = [0, 96], sizes = [8, 32], strides = [1, 1]} : vector<8x128xf32> to vector<8x32xf32>
    %103 = arith.mulf %96, %60 : vector<8x32xf32>
    %104 = arith.mulf %95, %101 : vector<8x32xf32>
    %105 = arith.addf %103, %104 : vector<8x32xf32>
    %106 = math.tanh %105 : vector<8x32xf32>
    %107 = arith.mulf %102, %106 : vector<8x32xf32>
    %108 = vector.extract_strided_slice %9 {offsets = [2, 0, 0], sizes = [1, 8, 128], strides = [1, 1, 1]} : vector<8x8x128xf32> to vector<1x8x128xf32>
    %109 = vector.shape_cast %108 : vector<1x8x128xf32> to vector<8x128xf32>
    %cst_36 = arith.constant dense<0.000000e+00> : vector<8x128xf32>
    %110 = tpu.matmul %84, %10, %cst_36 {dimension_numbers = #tpu.dot_dimension_numbers<[1], [0], [0], [1], [0, 0, 1, 1], [], []>} : vector<8x32xf32>, vector<32x128xf32>, vector<8x128xf32> -> vector<8x128xf32>
    %111 = arith.addf %109, %110 : vector<8x128xf32>
    %112 = arith.negf %111 : vector<8x128xf32>
    %113 = math.exp %112 : vector<8x128xf32>
    %cst_37 = arith.constant 1.000000e+00 : f32
    %114 = vector.broadcast %cst_37 : f32 to vector<8x128xf32>
    %115 = arith.addf %114, %113 : vector<8x128xf32>
    %116 = arith.divf %114, %115 : vector<8x128xf32>
    %117 = vector.extract_strided_slice %116 {offsets = [0, 0], sizes = [8, 32], strides = [1, 1]} : vector<8x128xf32> to vector<8x32xf32>
    %118 = vector.extract_strided_slice %116 {offsets = [0, 32], sizes = [8, 32], strides = [1, 1]} : vector<8x128xf32> to vector<8x32xf32>
    %119 = vector.extract_strided_slice %116 {offsets = [0, 64], sizes = [8, 32], strides = [1, 1]} : vector<8x128xf32> to vector<8x32xf32>
    %cst_38 = arith.constant 2.000000e+00 : f32
    %120 = vector.broadcast %cst_38 : f32 to vector<8x32xf32>
    %121 = arith.mulf %120, %119 : vector<8x32xf32>
    %cst_39 = arith.constant 1.000000e+00 : f32
    %122 = vector.broadcast %cst_39 : f32 to vector<8x32xf32>
    %123 = arith.subf %121, %122 : vector<8x32xf32>
    %124 = vector.extract_strided_slice %116 {offsets = [0, 96], sizes = [8, 32], strides = [1, 1]} : vector<8x128xf32> to vector<8x32xf32>
    %125 = arith.mulf %118, %82 : vector<8x32xf32>
    %126 = arith.mulf %117, %123 : vector<8x32xf32>
    %127 = arith.addf %125, %126 : vector<8x32xf32>
    %128 = math.tanh %127 : vector<8x32xf32>
    %129 = arith.mulf %124, %128 : vector<8x32xf32>
    %cst_40 = arith.constant dense<0.000000e+00> : vector<8x128xf32>
    %130 = tpu.matmul %129, %11, %cst_40 {dimension_numbers = #tpu.dot_dimension_numbers<[1], [0], [0], [1], [0, 0, 1, 1], [], []>} : vector<8x32xf32>, vector<32x128xf32>, vector<8x128xf32> -> vector<8x128xf32>
    %cst_41 = arith.constant dense<0.000000e+00> : vector<8x128xf32>
    %131 = tpu.matmul %107, %12, %cst_41 {dimension_numbers = #tpu.dot_dimension_numbers<[1], [0], [0], [1], [0, 0, 1, 1], [], []>} : vector<8x32xf32>, vector<32x128xf32>, vector<8x128xf32> -> vector<8x128xf32>
    %132 = arith.addf %130, %131 : vector<8x128xf32>
    %133 = vector.broadcast %13 : vector<1x128xf32> to vector<8x128xf32>
    %134 = arith.addf %132, %133 : vector<8x128xf32>
    %135 = arith.negf %134 : vector<8x128xf32>
    %136 = math.exp %135 : vector<8x128xf32>
    %cst_42 = arith.constant 1.000000e+00 : f32
    %137 = vector.broadcast %cst_42 : f32 to vector<8x128xf32>
    %138 = arith.addf %137, %136 : vector<8x128xf32>
    %139 = arith.divf %137, %138 : vector<8x128xf32>
    %140 = vector.extract_strided_slice %139 {offsets = [0, 0], sizes = [8, 32], strides = [1, 1]} : vector<8x128xf32> to vector<8x32xf32>
    %141 = vector.extract_strided_slice %139 {offsets = [0, 32], sizes = [8, 32], strides = [1, 1]} : vector<8x128xf32> to vector<8x32xf32>
    %142 = vector.extract_strided_slice %139 {offsets = [0, 64], sizes = [8, 32], strides = [1, 1]} : vector<8x128xf32> to vector<8x32xf32>
    %cst_43 = arith.constant 2.000000e+00 : f32
    %143 = vector.broadcast %cst_43 : f32 to vector<8x32xf32>
    %144 = arith.mulf %143, %142 : vector<8x32xf32>
    %cst_44 = arith.constant 1.000000e+00 : f32
    %145 = vector.broadcast %cst_44 : f32 to vector<8x32xf32>
    %146 = arith.subf %144, %145 : vector<8x32xf32>
    %147 = vector.extract_strided_slice %139 {offsets = [0, 96], sizes = [8, 32], strides = [1, 1]} : vector<8x128xf32> to vector<8x32xf32>
    %148 = arith.mulf %141, %105 : vector<8x32xf32>
    %149 = arith.mulf %140, %146 : vector<8x32xf32>
    %150 = arith.addf %148, %149 : vector<8x32xf32>
    %151 = math.tanh %150 : vector<8x32xf32>
    %152 = arith.mulf %147, %151 : vector<8x32xf32>
    %153 = vector.extract_strided_slice %9 {offsets = [3, 0, 0], sizes = [1, 8, 128], strides = [1, 1, 1]} : vector<8x8x128xf32> to vector<1x8x128xf32>
    %154 = vector.shape_cast %153 : vector<1x8x128xf32> to vector<8x128xf32>
    %cst_45 = arith.constant dense<0.000000e+00> : vector<8x128xf32>
    %155 = tpu.matmul %129, %10, %cst_45 {dimension_numbers = #tpu.dot_dimension_numbers<[1], [0], [0], [1], [0, 0, 1, 1], [], []>} : vector<8x32xf32>, vector<32x128xf32>, vector<8x128xf32> -> vector<8x128xf32>
    %156 = arith.addf %154, %155 : vector<8x128xf32>
    %157 = arith.negf %156 : vector<8x128xf32>
    %158 = math.exp %157 : vector<8x128xf32>
    %cst_46 = arith.constant 1.000000e+00 : f32
    %159 = vector.broadcast %cst_46 : f32 to vector<8x128xf32>
    %160 = arith.addf %159, %158 : vector<8x128xf32>
    %161 = arith.divf %159, %160 : vector<8x128xf32>
    %162 = vector.extract_strided_slice %161 {offsets = [0, 0], sizes = [8, 32], strides = [1, 1]} : vector<8x128xf32> to vector<8x32xf32>
    %163 = vector.extract_strided_slice %161 {offsets = [0, 32], sizes = [8, 32], strides = [1, 1]} : vector<8x128xf32> to vector<8x32xf32>
    %164 = vector.extract_strided_slice %161 {offsets = [0, 64], sizes = [8, 32], strides = [1, 1]} : vector<8x128xf32> to vector<8x32xf32>
    %cst_47 = arith.constant 2.000000e+00 : f32
    %165 = vector.broadcast %cst_47 : f32 to vector<8x32xf32>
    %166 = arith.mulf %165, %164 : vector<8x32xf32>
    %cst_48 = arith.constant 1.000000e+00 : f32
    %167 = vector.broadcast %cst_48 : f32 to vector<8x32xf32>
    %168 = arith.subf %166, %167 : vector<8x32xf32>
    %169 = vector.extract_strided_slice %161 {offsets = [0, 96], sizes = [8, 32], strides = [1, 1]} : vector<8x128xf32> to vector<8x32xf32>
    %170 = arith.mulf %163, %127 : vector<8x32xf32>
    %171 = arith.mulf %162, %168 : vector<8x32xf32>
    %172 = arith.addf %170, %171 : vector<8x32xf32>
    %173 = math.tanh %172 : vector<8x32xf32>
    %174 = arith.mulf %169, %173 : vector<8x32xf32>
    %cst_49 = arith.constant dense<0.000000e+00> : vector<8x128xf32>
    %175 = tpu.matmul %174, %11, %cst_49 {dimension_numbers = #tpu.dot_dimension_numbers<[1], [0], [0], [1], [0, 0, 1, 1], [], []>} : vector<8x32xf32>, vector<32x128xf32>, vector<8x128xf32> -> vector<8x128xf32>
    %cst_50 = arith.constant dense<0.000000e+00> : vector<8x128xf32>
    %176 = tpu.matmul %152, %12, %cst_50 {dimension_numbers = #tpu.dot_dimension_numbers<[1], [0], [0], [1], [0, 0, 1, 1], [], []>} : vector<8x32xf32>, vector<32x128xf32>, vector<8x128xf32> -> vector<8x128xf32>
    %177 = arith.addf %175, %176 : vector<8x128xf32>
    %178 = vector.broadcast %13 : vector<1x128xf32> to vector<8x128xf32>
    %179 = arith.addf %177, %178 : vector<8x128xf32>
    %180 = arith.negf %179 : vector<8x128xf32>
    %181 = math.exp %180 : vector<8x128xf32>
    %cst_51 = arith.constant 1.000000e+00 : f32
    %182 = vector.broadcast %cst_51 : f32 to vector<8x128xf32>
    %183 = arith.addf %182, %181 : vector<8x128xf32>
    %184 = arith.divf %182, %183 : vector<8x128xf32>
    %185 = vector.extract_strided_slice %184 {offsets = [0, 0], sizes = [8, 32], strides = [1, 1]} : vector<8x128xf32> to vector<8x32xf32>
    %186 = vector.extract_strided_slice %184 {offsets = [0, 32], sizes = [8, 32], strides = [1, 1]} : vector<8x128xf32> to vector<8x32xf32>
    %187 = vector.extract_strided_slice %184 {offsets = [0, 64], sizes = [8, 32], strides = [1, 1]} : vector<8x128xf32> to vector<8x32xf32>
    %cst_52 = arith.constant 2.000000e+00 : f32
    %188 = vector.broadcast %cst_52 : f32 to vector<8x32xf32>
    %189 = arith.mulf %188, %187 : vector<8x32xf32>
    %cst_53 = arith.constant 1.000000e+00 : f32
    %190 = vector.broadcast %cst_53 : f32 to vector<8x32xf32>
    %191 = arith.subf %189, %190 : vector<8x32xf32>
    %192 = vector.extract_strided_slice %184 {offsets = [0, 96], sizes = [8, 32], strides = [1, 1]} : vector<8x128xf32> to vector<8x32xf32>
    %193 = arith.mulf %186, %150 : vector<8x32xf32>
    %194 = arith.mulf %185, %191 : vector<8x32xf32>
    %195 = arith.addf %193, %194 : vector<8x32xf32>
    %196 = math.tanh %195 : vector<8x32xf32>
    %197 = arith.mulf %192, %196 : vector<8x32xf32>
    %198 = vector.extract_strided_slice %9 {offsets = [4, 0, 0], sizes = [1, 8, 128], strides = [1, 1, 1]} : vector<8x8x128xf32> to vector<1x8x128xf32>
    %199 = vector.shape_cast %198 : vector<1x8x128xf32> to vector<8x128xf32>
    %cst_54 = arith.constant dense<0.000000e+00> : vector<8x128xf32>
    %200 = tpu.matmul %174, %10, %cst_54 {dimension_numbers = #tpu.dot_dimension_numbers<[1], [0], [0], [1], [0, 0, 1, 1], [], []>} : vector<8x32xf32>, vector<32x128xf32>, vector<8x128xf32> -> vector<8x128xf32>
    %201 = arith.addf %199, %200 : vector<8x128xf32>
    %202 = arith.negf %201 : vector<8x128xf32>
    %203 = math.exp %202 : vector<8x128xf32>
    %cst_55 = arith.constant 1.000000e+00 : f32
    %204 = vector.broadcast %cst_55 : f32 to vector<8x128xf32>
    %205 = arith.addf %204, %203 : vector<8x128xf32>
    %206 = arith.divf %204, %205 : vector<8x128xf32>
    %207 = vector.extract_strided_slice %206 {offsets = [0, 0], sizes = [8, 32], strides = [1, 1]} : vector<8x128xf32> to vector<8x32xf32>
    %208 = vector.extract_strided_slice %206 {offsets = [0, 32], sizes = [8, 32], strides = [1, 1]} : vector<8x128xf32> to vector<8x32xf32>
    %209 = vector.extract_strided_slice %206 {offsets = [0, 64], sizes = [8, 32], strides = [1, 1]} : vector<8x128xf32> to vector<8x32xf32>
    %cst_56 = arith.constant 2.000000e+00 : f32
    %210 = vector.broadcast %cst_56 : f32 to vector<8x32xf32>
    %211 = arith.mulf %210, %209 : vector<8x32xf32>
    %cst_57 = arith.constant 1.000000e+00 : f32
    %212 = vector.broadcast %cst_57 : f32 to vector<8x32xf32>
    %213 = arith.subf %211, %212 : vector<8x32xf32>
    %214 = vector.extract_strided_slice %206 {offsets = [0, 96], sizes = [8, 32], strides = [1, 1]} : vector<8x128xf32> to vector<8x32xf32>
    %215 = arith.mulf %208, %172 : vector<8x32xf32>
    %216 = arith.mulf %207, %213 : vector<8x32xf32>
    %217 = arith.addf %215, %216 : vector<8x32xf32>
    %218 = math.tanh %217 : vector<8x32xf32>
    %219 = arith.mulf %214, %218 : vector<8x32xf32>
    %cst_58 = arith.constant dense<0.000000e+00> : vector<8x128xf32>
    %220 = tpu.matmul %219, %11, %cst_58 {dimension_numbers = #tpu.dot_dimension_numbers<[1], [0], [0], [1], [0, 0, 1, 1], [], []>} : vector<8x32xf32>, vector<32x128xf32>, vector<8x128xf32> -> vector<8x128xf32>
    %cst_59 = arith.constant dense<0.000000e+00> : vector<8x128xf32>
    %221 = tpu.matmul %197, %12, %cst_59 {dimension_numbers = #tpu.dot_dimension_numbers<[1], [0], [0], [1], [0, 0, 1, 1], [], []>} : vector<8x32xf32>, vector<32x128xf32>, vector<8x128xf32> -> vector<8x128xf32>
    %222 = arith.addf %220, %221 : vector<8x128xf32>
    %223 = vector.broadcast %13 : vector<1x128xf32> to vector<8x128xf32>
    %224 = arith.addf %222, %223 : vector<8x128xf32>
    %225 = arith.negf %224 : vector<8x128xf32>
    %226 = math.exp %225 : vector<8x128xf32>
    %cst_60 = arith.constant 1.000000e+00 : f32
    %227 = vector.broadcast %cst_60 : f32 to vector<8x128xf32>
    %228 = arith.addf %227, %226 : vector<8x128xf32>
    %229 = arith.divf %227, %228 : vector<8x128xf32>
    %230 = vector.extract_strided_slice %229 {offsets = [0, 0], sizes = [8, 32], strides = [1, 1]} : vector<8x128xf32> to vector<8x32xf32>
    %231 = vector.extract_strided_slice %229 {offsets = [0, 32], sizes = [8, 32], strides = [1, 1]} : vector<8x128xf32> to vector<8x32xf32>
    %232 = vector.extract_strided_slice %229 {offsets = [0, 64], sizes = [8, 32], strides = [1, 1]} : vector<8x128xf32> to vector<8x32xf32>
    %cst_61 = arith.constant 2.000000e+00 : f32
    %233 = vector.broadcast %cst_61 : f32 to vector<8x32xf32>
    %234 = arith.mulf %233, %232 : vector<8x32xf32>
    %cst_62 = arith.constant 1.000000e+00 : f32
    %235 = vector.broadcast %cst_62 : f32 to vector<8x32xf32>
    %236 = arith.subf %234, %235 : vector<8x32xf32>
    %237 = vector.extract_strided_slice %229 {offsets = [0, 96], sizes = [8, 32], strides = [1, 1]} : vector<8x128xf32> to vector<8x32xf32>
    %238 = arith.mulf %231, %195 : vector<8x32xf32>
    %239 = arith.mulf %230, %236 : vector<8x32xf32>
    %240 = arith.addf %238, %239 : vector<8x32xf32>
    %241 = math.tanh %240 : vector<8x32xf32>
    %242 = arith.mulf %237, %241 : vector<8x32xf32>
    %243 = vector.extract_strided_slice %9 {offsets = [5, 0, 0], sizes = [1, 8, 128], strides = [1, 1, 1]} : vector<8x8x128xf32> to vector<1x8x128xf32>
    %244 = vector.shape_cast %243 : vector<1x8x128xf32> to vector<8x128xf32>
    %cst_63 = arith.constant dense<0.000000e+00> : vector<8x128xf32>
    %245 = tpu.matmul %219, %10, %cst_63 {dimension_numbers = #tpu.dot_dimension_numbers<[1], [0], [0], [1], [0, 0, 1, 1], [], []>} : vector<8x32xf32>, vector<32x128xf32>, vector<8x128xf32> -> vector<8x128xf32>
    %246 = arith.addf %244, %245 : vector<8x128xf32>
    %247 = arith.negf %246 : vector<8x128xf32>
    %248 = math.exp %247 : vector<8x128xf32>
    %cst_64 = arith.constant 1.000000e+00 : f32
    %249 = vector.broadcast %cst_64 : f32 to vector<8x128xf32>
    %250 = arith.addf %249, %248 : vector<8x128xf32>
    %251 = arith.divf %249, %250 : vector<8x128xf32>
    %252 = vector.extract_strided_slice %251 {offsets = [0, 0], sizes = [8, 32], strides = [1, 1]} : vector<8x128xf32> to vector<8x32xf32>
    %253 = vector.extract_strided_slice %251 {offsets = [0, 32], sizes = [8, 32], strides = [1, 1]} : vector<8x128xf32> to vector<8x32xf32>
    %254 = vector.extract_strided_slice %251 {offsets = [0, 64], sizes = [8, 32], strides = [1, 1]} : vector<8x128xf32> to vector<8x32xf32>
    %cst_65 = arith.constant 2.000000e+00 : f32
    %255 = vector.broadcast %cst_65 : f32 to vector<8x32xf32>
    %256 = arith.mulf %255, %254 : vector<8x32xf32>
    %cst_66 = arith.constant 1.000000e+00 : f32
    %257 = vector.broadcast %cst_66 : f32 to vector<8x32xf32>
    %258 = arith.subf %256, %257 : vector<8x32xf32>
    %259 = vector.extract_strided_slice %251 {offsets = [0, 96], sizes = [8, 32], strides = [1, 1]} : vector<8x128xf32> to vector<8x32xf32>
    %260 = arith.mulf %253, %217 : vector<8x32xf32>
    %261 = arith.mulf %252, %258 : vector<8x32xf32>
    %262 = arith.addf %260, %261 : vector<8x32xf32>
    %263 = math.tanh %262 : vector<8x32xf32>
    %264 = arith.mulf %259, %263 : vector<8x32xf32>
    %cst_67 = arith.constant dense<0.000000e+00> : vector<8x128xf32>
    %265 = tpu.matmul %264, %11, %cst_67 {dimension_numbers = #tpu.dot_dimension_numbers<[1], [0], [0], [1], [0, 0, 1, 1], [], []>} : vector<8x32xf32>, vector<32x128xf32>, vector<8x128xf32> -> vector<8x128xf32>
    %cst_68 = arith.constant dense<0.000000e+00> : vector<8x128xf32>
    %266 = tpu.matmul %242, %12, %cst_68 {dimension_numbers = #tpu.dot_dimension_numbers<[1], [0], [0], [1], [0, 0, 1, 1], [], []>} : vector<8x32xf32>, vector<32x128xf32>, vector<8x128xf32> -> vector<8x128xf32>
    %267 = arith.addf %265, %266 : vector<8x128xf32>
    %268 = vector.broadcast %13 : vector<1x128xf32> to vector<8x128xf32>
    %269 = arith.addf %267, %268 : vector<8x128xf32>
    %270 = arith.negf %269 : vector<8x128xf32>
    %271 = math.exp %270 : vector<8x128xf32>
    %cst_69 = arith.constant 1.000000e+00 : f32
    %272 = vector.broadcast %cst_69 : f32 to vector<8x128xf32>
    %273 = arith.addf %272, %271 : vector<8x128xf32>
    %274 = arith.divf %272, %273 : vector<8x128xf32>
    %275 = vector.extract_strided_slice %274 {offsets = [0, 0], sizes = [8, 32], strides = [1, 1]} : vector<8x128xf32> to vector<8x32xf32>
    %276 = vector.extract_strided_slice %274 {offsets = [0, 32], sizes = [8, 32], strides = [1, 1]} : vector<8x128xf32> to vector<8x32xf32>
    %277 = vector.extract_strided_slice %274 {offsets = [0, 64], sizes = [8, 32], strides = [1, 1]} : vector<8x128xf32> to vector<8x32xf32>
    %cst_70 = arith.constant 2.000000e+00 : f32
    %278 = vector.broadcast %cst_70 : f32 to vector<8x32xf32>
    %279 = arith.mulf %278, %277 : vector<8x32xf32>
    %cst_71 = arith.constant 1.000000e+00 : f32
    %280 = vector.broadcast %cst_71 : f32 to vector<8x32xf32>
    %281 = arith.subf %279, %280 : vector<8x32xf32>
    %282 = vector.extract_strided_slice %274 {offsets = [0, 96], sizes = [8, 32], strides = [1, 1]} : vector<8x128xf32> to vector<8x32xf32>
    %283 = arith.mulf %276, %240 : vector<8x32xf32>
    %284 = arith.mulf %275, %281 : vector<8x32xf32>
    %285 = arith.addf %283, %284 : vector<8x32xf32>
    %286 = math.tanh %285 : vector<8x32xf32>
    %287 = arith.mulf %282, %286 : vector<8x32xf32>
    %288 = vector.extract_strided_slice %9 {offsets = [6, 0, 0], sizes = [1, 8, 128], strides = [1, 1, 1]} : vector<8x8x128xf32> to vector<1x8x128xf32>
    %289 = vector.shape_cast %288 : vector<1x8x128xf32> to vector<8x128xf32>
    %cst_72 = arith.constant dense<0.000000e+00> : vector<8x128xf32>
    %290 = tpu.matmul %264, %10, %cst_72 {dimension_numbers = #tpu.dot_dimension_numbers<[1], [0], [0], [1], [0, 0, 1, 1], [], []>} : vector<8x32xf32>, vector<32x128xf32>, vector<8x128xf32> -> vector<8x128xf32>
    %291 = arith.addf %289, %290 : vector<8x128xf32>
    %292 = arith.negf %291 : vector<8x128xf32>
    %293 = math.exp %292 : vector<8x128xf32>
    %cst_73 = arith.constant 1.000000e+00 : f32
    %294 = vector.broadcast %cst_73 : f32 to vector<8x128xf32>
    %295 = arith.addf %294, %293 : vector<8x128xf32>
    %296 = arith.divf %294, %295 : vector<8x128xf32>
    %297 = vector.extract_strided_slice %296 {offsets = [0, 0], sizes = [8, 32], strides = [1, 1]} : vector<8x128xf32> to vector<8x32xf32>
    %298 = vector.extract_strided_slice %296 {offsets = [0, 32], sizes = [8, 32], strides = [1, 1]} : vector<8x128xf32> to vector<8x32xf32>
    %299 = vector.extract_strided_slice %296 {offsets = [0, 64], sizes = [8, 32], strides = [1, 1]} : vector<8x128xf32> to vector<8x32xf32>
    %cst_74 = arith.constant 2.000000e+00 : f32
    %300 = vector.broadcast %cst_74 : f32 to vector<8x32xf32>
    %301 = arith.mulf %300, %299 : vector<8x32xf32>
    %cst_75 = arith.constant 1.000000e+00 : f32
    %302 = vector.broadcast %cst_75 : f32 to vector<8x32xf32>
    %303 = arith.subf %301, %302 : vector<8x32xf32>
    %304 = vector.extract_strided_slice %296 {offsets = [0, 96], sizes = [8, 32], strides = [1, 1]} : vector<8x128xf32> to vector<8x32xf32>
    %305 = arith.mulf %298, %262 : vector<8x32xf32>
    %306 = arith.mulf %297, %303 : vector<8x32xf32>
    %307 = arith.addf %305, %306 : vector<8x32xf32>
    %308 = math.tanh %307 : vector<8x32xf32>
    %309 = arith.mulf %304, %308 : vector<8x32xf32>
    %cst_76 = arith.constant dense<0.000000e+00> : vector<8x128xf32>
    %310 = tpu.matmul %309, %11, %cst_76 {dimension_numbers = #tpu.dot_dimension_numbers<[1], [0], [0], [1], [0, 0, 1, 1], [], []>} : vector<8x32xf32>, vector<32x128xf32>, vector<8x128xf32> -> vector<8x128xf32>
    %cst_77 = arith.constant dense<0.000000e+00> : vector<8x128xf32>
    %311 = tpu.matmul %287, %12, %cst_77 {dimension_numbers = #tpu.dot_dimension_numbers<[1], [0], [0], [1], [0, 0, 1, 1], [], []>} : vector<8x32xf32>, vector<32x128xf32>, vector<8x128xf32> -> vector<8x128xf32>
    %312 = arith.addf %310, %311 : vector<8x128xf32>
    %313 = vector.broadcast %13 : vector<1x128xf32> to vector<8x128xf32>
    %314 = arith.addf %312, %313 : vector<8x128xf32>
    %315 = arith.negf %314 : vector<8x128xf32>
    %316 = math.exp %315 : vector<8x128xf32>
    %cst_78 = arith.constant 1.000000e+00 : f32
    %317 = vector.broadcast %cst_78 : f32 to vector<8x128xf32>
    %318 = arith.addf %317, %316 : vector<8x128xf32>
    %319 = arith.divf %317, %318 : vector<8x128xf32>
    %320 = vector.extract_strided_slice %319 {offsets = [0, 0], sizes = [8, 32], strides = [1, 1]} : vector<8x128xf32> to vector<8x32xf32>
    %321 = vector.extract_strided_slice %319 {offsets = [0, 32], sizes = [8, 32], strides = [1, 1]} : vector<8x128xf32> to vector<8x32xf32>
    %322 = vector.extract_strided_slice %319 {offsets = [0, 64], sizes = [8, 32], strides = [1, 1]} : vector<8x128xf32> to vector<8x32xf32>
    %cst_79 = arith.constant 2.000000e+00 : f32
    %323 = vector.broadcast %cst_79 : f32 to vector<8x32xf32>
    %324 = arith.mulf %323, %322 : vector<8x32xf32>
    %cst_80 = arith.constant 1.000000e+00 : f32
    %325 = vector.broadcast %cst_80 : f32 to vector<8x32xf32>
    %326 = arith.subf %324, %325 : vector<8x32xf32>
    %327 = vector.extract_strided_slice %319 {offsets = [0, 96], sizes = [8, 32], strides = [1, 1]} : vector<8x128xf32> to vector<8x32xf32>
    %328 = arith.mulf %321, %285 : vector<8x32xf32>
    %329 = arith.mulf %320, %326 : vector<8x32xf32>
    %330 = arith.addf %328, %329 : vector<8x32xf32>
    %331 = math.tanh %330 : vector<8x32xf32>
    %332 = arith.mulf %327, %331 : vector<8x32xf32>
    %333 = vector.extract_strided_slice %9 {offsets = [7, 0, 0], sizes = [1, 8, 128], strides = [1, 1, 1]} : vector<8x8x128xf32> to vector<1x8x128xf32>
    %334 = vector.shape_cast %333 : vector<1x8x128xf32> to vector<8x128xf32>
    %cst_81 = arith.constant dense<0.000000e+00> : vector<8x128xf32>
    %335 = tpu.matmul %309, %10, %cst_81 {dimension_numbers = #tpu.dot_dimension_numbers<[1], [0], [0], [1], [0, 0, 1, 1], [], []>} : vector<8x32xf32>, vector<32x128xf32>, vector<8x128xf32> -> vector<8x128xf32>
    %336 = arith.addf %334, %335 : vector<8x128xf32>
    %337 = arith.negf %336 : vector<8x128xf32>
    %338 = math.exp %337 : vector<8x128xf32>
    %cst_82 = arith.constant 1.000000e+00 : f32
    %339 = vector.broadcast %cst_82 : f32 to vector<8x128xf32>
    %340 = arith.addf %339, %338 : vector<8x128xf32>
    %341 = arith.divf %339, %340 : vector<8x128xf32>
    %342 = vector.extract_strided_slice %341 {offsets = [0, 0], sizes = [8, 32], strides = [1, 1]} : vector<8x128xf32> to vector<8x32xf32>
    %343 = vector.extract_strided_slice %341 {offsets = [0, 32], sizes = [8, 32], strides = [1, 1]} : vector<8x128xf32> to vector<8x32xf32>
    %344 = vector.extract_strided_slice %341 {offsets = [0, 64], sizes = [8, 32], strides = [1, 1]} : vector<8x128xf32> to vector<8x32xf32>
    %cst_83 = arith.constant 2.000000e+00 : f32
    %345 = vector.broadcast %cst_83 : f32 to vector<8x32xf32>
    %346 = arith.mulf %345, %344 : vector<8x32xf32>
    %cst_84 = arith.constant 1.000000e+00 : f32
    %347 = vector.broadcast %cst_84 : f32 to vector<8x32xf32>
    %348 = arith.subf %346, %347 : vector<8x32xf32>
    %349 = vector.extract_strided_slice %341 {offsets = [0, 96], sizes = [8, 32], strides = [1, 1]} : vector<8x128xf32> to vector<8x32xf32>
    %350 = arith.mulf %343, %307 : vector<8x32xf32>
    %351 = arith.mulf %342, %348 : vector<8x32xf32>
    %352 = arith.addf %350, %351 : vector<8x32xf32>
    %353 = math.tanh %352 : vector<8x32xf32>
    %354 = arith.mulf %349, %353 : vector<8x32xf32>
    %cst_85 = arith.constant dense<0.000000e+00> : vector<8x128xf32>
    %355 = tpu.matmul %354, %11, %cst_85 {dimension_numbers = #tpu.dot_dimension_numbers<[1], [0], [0], [1], [0, 0, 1, 1], [], []>} : vector<8x32xf32>, vector<32x128xf32>, vector<8x128xf32> -> vector<8x128xf32>
    %cst_86 = arith.constant dense<0.000000e+00> : vector<8x128xf32>
    %356 = tpu.matmul %332, %12, %cst_86 {dimension_numbers = #tpu.dot_dimension_numbers<[1], [0], [0], [1], [0, 0, 1, 1], [], []>} : vector<8x32xf32>, vector<32x128xf32>, vector<8x128xf32> -> vector<8x128xf32>
    %357 = arith.addf %355, %356 : vector<8x128xf32>
    %358 = vector.broadcast %13 : vector<1x128xf32> to vector<8x128xf32>
    %359 = arith.addf %357, %358 : vector<8x128xf32>
    %360 = arith.negf %359 : vector<8x128xf32>
    %361 = math.exp %360 : vector<8x128xf32>
    %cst_87 = arith.constant 1.000000e+00 : f32
    %362 = vector.broadcast %cst_87 : f32 to vector<8x128xf32>
    %363 = arith.addf %362, %361 : vector<8x128xf32>
    %364 = arith.divf %362, %363 : vector<8x128xf32>
    %365 = vector.extract_strided_slice %364 {offsets = [0, 0], sizes = [8, 32], strides = [1, 1]} : vector<8x128xf32> to vector<8x32xf32>
    %366 = vector.extract_strided_slice %364 {offsets = [0, 32], sizes = [8, 32], strides = [1, 1]} : vector<8x128xf32> to vector<8x32xf32>
    %367 = vector.extract_strided_slice %364 {offsets = [0, 64], sizes = [8, 32], strides = [1, 1]} : vector<8x128xf32> to vector<8x32xf32>
    %cst_88 = arith.constant 2.000000e+00 : f32
    %368 = vector.broadcast %cst_88 : f32 to vector<8x32xf32>
    %369 = arith.mulf %368, %367 : vector<8x32xf32>
    %cst_89 = arith.constant 1.000000e+00 : f32
    %370 = vector.broadcast %cst_89 : f32 to vector<8x32xf32>
    %371 = arith.subf %369, %370 : vector<8x32xf32>
    %372 = vector.extract_strided_slice %364 {offsets = [0, 96], sizes = [8, 32], strides = [1, 1]} : vector<8x128xf32> to vector<8x32xf32>
    %373 = arith.mulf %366, %330 : vector<8x32xf32>
    %374 = arith.mulf %365, %371 : vector<8x32xf32>
    %375 = arith.addf %373, %374 : vector<8x32xf32>
    %376 = math.tanh %375 : vector<8x32xf32>
    %377 = arith.mulf %372, %376 : vector<8x32xf32>
    %c0_90 = arith.constant 0 : index
    %c0_91 = arith.constant 0 : index
    %378 = vector.load %arg7[%c0_90, %c0_91] : memref<32x8xf32, #tpu.memory_space<vmem>>, vector<32x8xf32>
    %cst_92 = arith.constant dense<0.000000e+00> : vector<8x8xf32>
    %379 = tpu.matmul %377, %378, %cst_92 {dimension_numbers = #tpu.dot_dimension_numbers<[1], [0], [0], [1], [0, 0, 1, 1], [], []>} : vector<8x32xf32>, vector<32x8xf32>, vector<8x8xf32> -> vector<8x8xf32>
    %c0_93 = arith.constant 0 : index
    %c0_94 = arith.constant 0 : index
    %380 = vector.load %arg8[%c0_93, %c0_94] : memref<1x8xf32, #tpu.memory_space<vmem>>, vector<1x8xf32>
    %381 = vector.broadcast %380 : vector<1x8xf32> to vector<8x8xf32>
    %382 = arith.addf %379, %381 : vector<8x8xf32>
    %c0_95 = arith.constant 0 : index
    %c0_96 = arith.constant 0 : index
    %383 = vector.load %arg9[%c0_95, %c0_96] : memref<8x8xf32, #tpu.memory_space<vmem>>, vector<8x8xf32>
    tpu.vector_store %arg9[%c0_95, %c0_96], %382 {strides = array<i32>} : memref<8x8xf32, #tpu.memory_space<vmem>>, vector<8x8xf32>,
    return
  }
}

</mosaic_0001>

<llo_original>
// kernel: lstm_classifier_forward.1
$region0: #{lstm_classifier_forward.1}
  #allocation0 [shape = 'u32[]', space=smem, size = 0x4, offset = 0x4, fixed_abs, tag = 'smem constant byte address 0x4 - core index']
  #allocation1 [shape = 'u32[144,128]{1,0:T(1,128)}', space=vmem, size = 0x12000, scoped, tag = 'internal scratch']
  %s0 = inlined_call_operand.hbm [shape: f32[8,8,128], index: 0, kind: input, shape index: {}]
  %s1 = inlined_call_operand.hbm [shape: f32[128,128], index: 1, kind: input, shape index: {}]
  %s2 = inlined_call_operand.vmem [shape: f32[32,128], index: 2, kind: input, shape index: {}]
  %s3 = inlined_call_operand.vmem [shape: f32[1,128], index: 3, kind: input, shape index: {}]
  %s4 = inlined_call_operand.vmem [shape: f32[32,128], index: 4, kind: input, shape index: {}]
  %s5 = inlined_call_operand.hbm [shape: f32[32,128], index: 5, kind: input, shape index: {}]
  %s6 = inlined_call_operand.vmem [shape: f32[1,128], index: 6, kind: input, shape index: {}]
  %s7 = inlined_call_operand.vmem [shape: f32[32,8], index: 7, kind: input, shape index: {}]
  %s8 = inlined_call_operand.hbm [shape: f32[1,8], index: 8, kind: input, shape index: {}]
  %s9 = inlined_call_operand.hbm [shape: f32[8,8], index: 9, kind: output, shape index: {}]
  %s10 = sld [smem:[#allocation0]]
  $region62: #{lstm_classifier_forward.1} parent=0
    _
  %s12 = ssub.s32 1, %s10
  %s13 = scalar_select 0, %s12, %s10
  $region1: #{lstm_classifier_forward.1} parent=0
    #allocation2 [shape = 'u8[32768]{0}', space=vmem, size = 0x8000, scoped, tag = 'input window, operand 0, single buffered']
    #allocation3 [shape = 's32[1]{0}', space=sflag, size = 0x4, scoped, tag = 'scoped memory for lstm_classifier_forward.1']
    #allocation4 [shape = 's32[1]{0}', space=sflag, size = 0x4, scoped, tag = 'scoped memory for lstm_classifier_forward.1']
    #allocation5 [shape = 'u8[65536]{0}', space=vmem, size = 0x10000, scoped, tag = 'input window, operand 1, single buffered']
    #allocation6 [shape = 's32[1]{0}', space=sflag, size = 0x4, scoped, tag = 'scoped memory for lstm_classifier_forward.1']
    #allocation7 [shape = 'u8[16384]{0}', space=vmem, size = 0x4000, scoped, tag = 'input window, operand 5, single buffered']
    #allocation8 [shape = 'u8[512]{0}', space=vmem, size = 0x400, scoped, tag = 'input window, operand 8, single buffered']
    #allocation9 [shape = 's32[1]{0}', space=sflag, size = 0x4, scoped, tag = 'scoped memory for lstm_classifier_forward.1']
    #allocation10 [shape = 'u8[4096]{0}', space=vmem, size = 0x1000, scoped, tag = 'output window, operand 0, single buffered']
    %14 = vsyncpa [#allocation3], 0
    %15 = vsyncpa [#allocation6], 0
    %16 = vsyncpa [#allocation9], 0
    %17 = vsyncpa [#allocation4], 0
    // Predicated region
    $region2: #{lstm_classifier_forward.1} parent=1 // pred_check
      _
    $region3: #{lstm_classifier_forward.1} parent=1 // pred_check_branch
      %19 = sbr.rel (0) target = $region5
    $region4: #{lstm_classifier_forward.1} parent=1 // pred_region
      %s21 = ssub.s32 1024, 1024
      %22 = vsyncadd [#allocation3], %s21
      %s23 = sshll.u32 [#allocation2], 4
      %s24 = int_to_ptr.vmem [resolvable:$true] %s23
      %29 = dma.hbm_to_vmem [thread:$0]  %s0, 1024, %s24, [#allocation3], 128, 128, 8
    $region5: #{lstm_classifier_forward.1} parent=1 // pred_fallthru
      _
    // Predicated region
    $region6: #{lstm_classifier_forward.1} parent=1 // pred_check
      _
    $region7: #{lstm_classifier_forward.1} parent=1 // pred_check_branch
      %31 = sbr.rel (0) target = $region9
    $region8: #{lstm_classifier_forward.1} parent=1 // pred_region
      %s33 = ssub.s32 2048, 2048
      %34 = vsyncadd [#allocation6], %s33
      %s35 = sshll.u32 [#allocation5], 4
      %s36 = int_to_ptr.vmem [resolvable:$true] %s35
      %41 = dma.hbm_to_vmem [thread:$0]  %s1, 2048, %s36, [#allocation6], 128, 128, 8
    $region9: #{lstm_classifier_forward.1} parent=1 // pred_fallthru
      _
    // Predicated region
    $region10: #{lstm_classifier_forward.1} parent=1 // pred_check
      _
    $region11: #{lstm_classifier_forward.1} parent=1 // pred_check_branch
      %43 = sbr.rel (0) target = $region13
    $region12: #{lstm_classifier_forward.1} parent=1 // pred_region
      _
    $region13: #{lstm_classifier_forward.1} parent=1 // pred_fallthru
      _
    // Predicated region
    $region14: #{lstm_classifier_forward.1} parent=1 // pred_check
      _
    $region15: #{lstm_classifier_forward.1} parent=1 // pred_check_branch
      %45 = sbr.rel (0) target = $region17
    $region16: #{lstm_classifier_forward.1} parent=1 // pred_region
      _
    $region17: #{lstm_classifier_forward.1} parent=1 // pred_fallthru
      _
    // Predicated region
    $region18: #{lstm_classifier_forward.1} parent=1 // pred_check
      _
    $region19: #{lstm_classifier_forward.1} parent=1 // pred_check_branch
      %47 = sbr.rel (0) target = $region21
    $region20: #{lstm_classifier_forward.1} parent=1 // pred_region
      _
    $region21: #{lstm_classifier_forward.1} parent=1 // pred_fallthru
      _
    // Predicated region
    $region22: #{lstm_classifier_forward.1} parent=1 // pred_check
      _
    $region23: #{lstm_classifier_forward.1} parent=1 // pred_check_branch
      %49 = sbr.rel (0) target = $region25
    $region24: #{lstm_classifier_forward.1} parent=1 // pred_region
      %s51 = ssub.s32 512, 512
      %52 = vsyncadd [#allocation6], %s51
      %s53 = sshll.u32 [#allocation7], 4
      %s54 = int_to_ptr.vmem [resolvable:$true] %s53
      %59 = dma.hbm_to_vmem [thread:$0]  %s5, 512, %s54, [#allocation6], 128, 128, 8
    $region25: #{lstm_classifier_forward.1} parent=1 // pred_fallthru
      _
    // Predicated region
    $region26: #{lstm_classifier_forward.1} parent=1 // pred_check
      _
    $region27: #{lstm_classifier_forward.1} parent=1 // pred_check_branch
      %61 = sbr.rel (0) target = $region29
    $region28: #{lstm_classifier_forward.1} parent=1 // pred_region
      _
    $region29: #{lstm_classifier_forward.1} parent=1 // pred_fallthru
      _
    // Predicated region
    $region30: #{lstm_classifier_forward.1} parent=1 // pred_check
      _
    $region31: #{lstm_classifier_forward.1} parent=1 // pred_check_branch
      %63 = sbr.rel (0) target = $region33
    $region32: #{lstm_classifier_forward.1} parent=1 // pred_region
      _
    $region33: #{lstm_classifier_forward.1} parent=1 // pred_fallthru
      _
    // Predicated region
    $region34: #{lstm_classifier_forward.1} parent=1 // pred_check
      _
    $region35: #{lstm_classifier_forward.1} parent=1 // pred_check_branch
      %65 = sbr.rel (0) target = $region37
    $region36: #{lstm_classifier_forward.1} parent=1 // pred_region
      %s67 = ssub.s32 16, 16
      %68 = vsyncadd [#allocation9], %s67
      %s70 = sshll.u32 [#allocation8], 4
      %s71 = int_to_ptr.vmem [resolvable:$true] %s70
      %73 = dma.hbm_to_vmem [thread:$0]  %s8, 16, %s71, [#allocation9]
    $region37: #{lstm_classifier_forward.1} parent=1 // pred_fallthru
      _
    // Predicated region
    $region38: #{lstm_classifier_forward.1} parent=1 // pred_check
      _
    $region39: #{lstm_classifier_forward.1} parent=1 // pred_check_branch
      %75 = sbr.rel (0) target = $region41
    $region40: #{lstm_classifier_forward.1} parent=1 // pred_region
      %76 = dma.done [#allocation3], 1024
    $region41: #{lstm_classifier_forward.1} parent=1 // pred_fallthru
      _
    // Predicated region
    $region42: #{lstm_classifier_forward.1} parent=1 // pred_check
      _
    $region43: #{lstm_classifier_forward.1} parent=1 // pred_check_branch
      %78 = sbr.rel (0) target = $region45
    $region44: #{lstm_classifier_forward.1} parent=1 // pred_region
      %79 = dma.done [#allocation6], 2048
    $region45: #{lstm_classifier_forward.1} parent=1 // pred_fallthru
      _
    // Predicated region
    $region46: #{lstm_classifier_forward.1} parent=1 // pred_check
      _
    $region47: #{lstm_classifier_forward.1} parent=1 // pred_check_branch
      %81 = sbr.rel (0) target = $region49
    $region48: #{lstm_classifier_forward.1} parent=1 // pred_region
      %82 = dma.done [#allocation6], 512
    $region49: #{lstm_classifier_forward.1} parent=1 // pred_fallthru
      _
    // Predicated region
    $region50: #{lstm_classifier_forward.1} parent=1 // pred_check
      _
    $region51: #{lstm_classifier_forward.1} parent=1 // pred_check_branch
      %84 = sbr.rel (0) target = $region53
    $region52: #{lstm_classifier_forward.1} parent=1 // pred_region
      %85 = dma.done [#allocation9], 16
    $region53: #{lstm_classifier_forward.1} parent=1 // pred_fallthru
      _
    %v86 = vld [vmem:[#allocation2] sm:$0xff]
    %v87 = vld [vmem:[#allocation2 + $0x8] sm:$0xff]
    %v88 = vld [vmem:[#allocation2 + $0x10] sm:$0xff]
    %v89 = vld [vmem:[#allocation2 + $0x18] sm:$0xff]
    %v90 = vld [vmem:[#allocation2 + $0x20] sm:$0xff]
    %v91 = vld [vmem:[#allocation2 + $0x28] sm:$0xff]
    %v92 = vld [vmem:[#allocation2 + $0x30] sm:$0xff]
    %v93 = vld [vmem:[#allocation2 + $0x38] sm:$0xff]
    %v94 = vld [vmem:[#allocation5] sm:$0xff]
    %v95 = vld [vmem:[#allocation5 + $0x8] sm:$0xff]
    %v96 = vld [vmem:[#allocation5 + $0x10] sm:$0xff]
    %v97 = vld [vmem:[#allocation5 + $0x18] sm:$0xff]
    %v98 = vld [vmem:[#allocation5 + $0x20] sm:$0xff]
    %v99 = vld [vmem:[#allocation5 + $0x28] sm:$0xff]
    %v100 = vld [vmem:[#allocation5 + $0x30] sm:$0xff]
    %v101 = vld [vmem:[#allocation5 + $0x38] sm:$0xff]
    %v102 = vld [vmem:[#allocation5 + $0x40] sm:$0xff]
    %v103 = vld [vmem:[#allocation5 + $0x48] sm:$0xff]
    %v104 = vld [vmem:[#allocation5 + $0x50] sm:$0xff]
    %v105 = vld [vmem:[#allocation5 + $0x58] sm:$0xff]
    %v106 = vld [vmem:[#allocation5 + $0x60] sm:$0xff]
    %v107 = vld [vmem:[#allocation5 + $0x68] sm:$0xff]
    %v108 = vld [vmem:[#allocation5 + $0x70] sm:$0xff]
    %v109 = vld [vmem:[#allocation5 + $0x78] sm:$0xff]
    %110 = vmatprep.subr.mxu0 0.0
    %111 = vmatpush1.msra.mxu0 %v94
    %112 = vmatprep.subr.mxu0 0.0
    %113 = vmatpush1.msra.mxu0 %v95
    %114 = vmatprep.subr.mxu0 0.0
    %115 = vmatpush1.msra.mxu0 %v96
    %116 = vmatprep.subr.mxu0 0.0
    %117 = vmatpush1.msra.mxu0 %v97
    %118 = vmatprep.subr.mxu0 0.0
    %119 = vmatpush1.msra.mxu0 %v98
    %120 = vmatprep.subr.mxu0 0.0
    %121 = vmatpush1.msra.mxu0 %v99
    %122 = vmatprep.subr.mxu0 0.0
    %123 = vmatpush1.msra.mxu0 %v100
    %124 = vmatprep.subr.mxu0 0.0
    %125 = vmatpush1.msra.mxu0 %v101
    %126 = vmatprep.subr.mxu0 0.0
    %127 = vmatpush1.msra.mxu0 %v102
    %128 = vmatprep.subr.mxu0 0.0
    %129 = vmatpush1.msra.mxu0 %v103
    %130 = vmatprep.subr.mxu0 0.0
    %131 = vmatpush1.msra.mxu0 %v104
    %132 = vmatprep.subr.mxu0 0.0
    %133 = vmatpush1.msra.mxu0 %v105
    %134 = vmatprep.subr.mxu0 0.0
    %135 = vmatpush1.msra.mxu0 %v106
    %136 = vmatprep.subr.mxu0 0.0
    %137 = vmatpush1.msra.mxu0 %v107
    %138 = vmatprep.subr.mxu0 0.0
    %139 = vmatpush1.msra.mxu0 %v108
    %140 = vmatprep.subr.mxu0 0.0
    %141 = vmatpush1.msra.mxu0 %v109
    %142 = vmatprep.subr.mxu0 0.0
    %143 = vmatpush1.msra.mxu0 0.0
    %144 = vmatprep.subr.mxu0 0.0
    %145 = vmatpush1.msra.mxu0 0.0
    %146 = vmatprep.subr.mxu0 0.0
    %147 = vmatpush1.msra.mxu0 0.0
    %148 = vmatprep.subr.mxu0 0.0
    %149 = vmatpush1.msra.mxu0 0.0
    %150 = vmatprep.subr.mxu0 0.0
    %151 = vmatpush1.msra.mxu0 0.0
    %152 = vmatprep.subr.mxu0 0.0
    %153 = vmatpush1.msra.mxu0 0.0
    %154 = vmatprep.subr.mxu0 0.0
    %155 = vmatpush1.msra.mxu0 0.0
    %156 = vmatprep.subr.mxu0 0.0
    %157 = vmatpush1.msra.mxu0 0.0
    %158 = vmatprep.subr.mxu0 0.0
    %159 = vmatpush1.msra.mxu0 0.0
    %160 = vmatprep.subr.mxu0 0.0
    %161 = vmatpush1.msra.mxu0 0.0
    %162 = vmatprep.subr.mxu0 0.0
    %163 = vmatpush1.msra.mxu0 0.0
    %164 = vmatprep.subr.mxu0 0.0
    %165 = vmatpush1.msra.mxu0 0.0
    %166 = vmatprep.subr.mxu0 0.0
    %167 = vmatpush1.msra.mxu0 0.0
    %168 = vmatprep.subr.mxu0 0.0
    %169 = vmatpush1.msra.mxu0 0.0
    %170 = vmatprep.subr.mxu0 0.0
    %171 = vmatpush1.msra.mxu0 0.0
    %172 = vmatprep.subr.mxu0 0.0
    %173 = vmatpush1.msra.mxu0 0.0
    %174 = vmatprep.mubr.f32.mxu0 0.0
    %175 = vmatmul.mubr.f32.gmra.mrb[0].mxu0 %v86
    %v176 = vpop.f32.mrb[0].mxu0
    %v177 = vadd.f32 0.0, %v176
    %v178 = vpop.f32.mrb[0].mxu0
    %179 = vmatprep.mubr.f32.mxu0 0.0
    %180 = vmatmul.mubr.f32.gmra.mrb[0].mxu0 %v87
    %v181 = vpop.f32.mrb[0].mxu0
    %v182 = vadd.f32 0.0, %v181
    %v183 = vpop.f32.mrb[0].mxu0
    %184 = vmatprep.mubr.f32.mxu0 0.0
    %185 = vmatmul.mubr.f32.gmra.mrb[0].mxu0 %v88
    %v186 = vpop.f32.mrb[0].mxu0
    %v187 = vadd.f32 0.0, %v186
    %v188 = vpop.f32.mrb[0].mxu0
    %189 = vmatprep.mubr.f32.mxu0 0.0
    %190 = vmatmul.mubr.f32.gmra.mrb[0].mxu0 %v89
    %v191 = vpop.f32.mrb[0].mxu0
    %v192 = vadd.f32 0.0, %v191
    %v193 = vpop.f32.mrb[0].mxu0
    %194 = vmatprep.mubr.f32.mxu0 0.0
    %195 = vmatmul.mubr.f32.gmra.mrb[0].mxu0 %v90
    %v196 = vpop.f32.mrb[0].mxu0
    %v197 = vadd.f32 0.0, %v196
    %v198 = vpop.f32.mrb[0].mxu0
    %199 = vmatprep.mubr.f32.mxu0 0.0
    %200 = vmatmul.mubr.f32.gmra.mrb[0].mxu0 %v91
    %v201 = vpop.f32.mrb[0].mxu0
    %v202 = vadd.f32 0.0, %v201
    %v203 = vpop.f32.mrb[0].mxu0
    %204 = vmatprep.mubr.f32.mxu0 0.0
    %205 = vmatmul.mubr.f32.gmra.mrb[0].mxu0 %v92
    %v206 = vpop.f32.mrb[0].mxu0
    %v207 = vadd.f32 0.0, %v206
    %v208 = vpop.f32.mrb[0].mxu0
    %209 = vmatprep.mubr.f32.mxu0 0.0
    %210 = vmatmul.mubr.f32.gmra.mrb[0].mxu0 %v93
    %v211 = vpop.f32.mrb[0].mxu0
    %v212 = vadd.f32 0.0, %v211
    %v213 = vpop.f32.mrb[0].mxu0
    %214 = vdwg.mxu0
    %v215 = vld [vmem:[%s3] sm:$0x1]
    %v217 = vlaneseq
    %v218 = vshrl.u32 %v217, 7
    %v219 = vsub.s32 0, %v218
    %v220 = vrot.slane %v215, %v219
    %v222 = vadd.f32 %v177, %v220
    %v223 = vadd.f32 %v182, %v220
    %v224 = vadd.f32 %v187, %v220
    %v225 = vadd.f32 %v192, %v220
    %v226 = vadd.f32 %v197, %v220
    %v227 = vadd.f32 %v202, %v220
    %v228 = vadd.f32 %v207, %v220
    %v229 = vadd.f32 %v212, %v220
    %v230 = vcombine.low %v222, %v224
    %v231 = vcombine.high %v222, %v224
    %v233 = vunpack.c.l.s4 1983009808
    %v234 = vunpack.c.0.s8 %v233
    %v235 = vlaneseq
    %v236 = vshrl.u32 %v235, 7
    %v237 = vsub.s32 %v234, %v236
    %v238 = vrot.slane %v230, %v237
    %v240 = vunpack.c.l.s4 1983009808
    %v241 = vunpack.c.0.s8 %v240
    %v242 = vlaneseq
    %v243 = vshrl.u32 %v242, 7
    %v244 = vsub.s32 %v241, %v243
    %v245 = vrot.slane %v231, %v244
    %v246 = vcombine.low %v223, %v225
    %v247 = vcombine.high %v223, %v225
    %v249 = vunpack.c.l.s4 1983009808
    %v250 = vunpack.c.0.s8 %v249
    %v251 = vlaneseq
    %v252 = vshrl.u32 %v251, 7
    %v253 = vsub.s32 %v250, %v252
    %v254 = vrot.slane %v246, %v253
    %v256 = vunpack.c.l.s4 1983009808
    %v257 = vunpack.c.0.s8 %v256
    %v258 = vlaneseq
    %v259 = vshrl.u32 %v258, 7
    %v260 = vsub.s32 %v257, %v259
    %v261 = vrot.slane %v247, %v260
    %v262 = vcombine.low %v226, %v228
    %v263 = vcombine.high %v226, %v228
    %v265 = vunpack.c.l.s4 1983009808
    %v266 = vunpack.c.0.s8 %v265
    %v267 = vlaneseq
    %v268 = vshrl.u32 %v267, 7
    %v269 = vsub.s32 %v266, %v268
    %v270 = vrot.slane %v262, %v269
    %v272 = vunpack.c.l.s4 1983009808
    %v273 = vunpack.c.0.s8 %v272
    %v274 = vlaneseq
    %v275 = vshrl.u32 %v274, 7
    %v276 = vsub.s32 %v273, %v275
    %v277 = vrot.slane %v263, %v276
    %v278 = vcombine.low %v227, %v229
    %v279 = vcombine.high %v227, %v229
    %v281 = vunpack.c.l.s4 1983009808
    %v282 = vunpack.c.0.s8 %v281
    %v283 = vlaneseq
    %v284 = vshrl.u32 %v283, 7
    %v285 = vsub.s32 %v282, %v284
    %v286 = vrot.slane %v278, %v285
    %v288 = vunpack.c.l.s4 1983009808
    %v289 = vunpack.c.0.s8 %v288
    %v290 = vlaneseq
    %v291 = vshrl.u32 %v290, 7
    %v292 = vsub.s32 %v289, %v291
    %v293 = vrot.slane %v279, %v292
    %v294 = vcombine.low %v238, %v254
    %v295 = vcombine.high %v238, %v254
    %v297 = vunpack.c.l.s4 1934713408
    %v298 = vunpack.c.0.s8 %v297
    %v299 = vlaneseq
    %v300 = vshrl.u32 %v299, 7
    %v301 = vsub.s32 %v298, %v300
    %v302 = vrot.slane %v294, %v301
    %v304 = vunpack.c.l.s4 1934713408
    %v305 = vunpack.c.0.s8 %v304
    %v306 = vlaneseq
    %v307 = vshrl.u32 %v306, 7
    %v308 = vsub.s32 %v305, %v307
    %v309 = vrot.slane %v295, %v308
    %v310 = vcombine.low %v245, %v261
    %v311 = vcombine.high %v245, %v261
    %v313 = vunpack.c.l.s4 1934713408
    %v314 = vunpack.c.0.s8 %v313
    %v315 = vlaneseq
    %v316 = vshrl.u32 %v315, 7
    %v317 = vsub.s32 %v314, %v316
    %v318 = vrot.slane %v310, %v317
    %v320 = vunpack.c.l.s4 1934713408
    %v321 = vunpack.c.0.s8 %v320
    %v322 = vlaneseq
    %v323 = vshrl.u32 %v322, 7
    %v324 = vsub.s32 %v321, %v323
    %v325 = vrot.slane %v311, %v324
    %v326 = vcombine.low %v270, %v286
    %v327 = vcombine.high %v270, %v286
    %v329 = vunpack.c.l.s4 1934713408
    %v330 = vunpack.c.0.s8 %v329
    %v331 = vlaneseq
    %v332 = vshrl.u32 %v331, 7
    %v333 = vsub.s32 %v330, %v332
    %v334 = vrot.slane %v326, %v333
    %v336 = vunpack.c.l.s4 1934713408
    %v337 = vunpack.c.0.s8 %v336
    %v338 = vlaneseq
    %v339 = vshrl.u32 %v338, 7
    %v340 = vsub.s32 %v337, %v339
    %v341 = vrot.slane %v327, %v340
    %v342 = vcombine.low %v277, %v293
    %v343 = vcombine.high %v277, %v293
    %v345 = vunpack.c.l.s4 1934713408
    %v346 = vunpack.c.0.s8 %v345
    %v347 = vlaneseq
    %v348 = vshrl.u32 %v347, 7
    %v349 = vsub.s32 %v346, %v348
    %v350 = vrot.slane %v342, %v349
    %v352 = vunpack.c.l.s4 1934713408
    %v353 = vunpack.c.0.s8 %v352
    %v354 = vlaneseq
    %v355 = vshrl.u32 %v354, 7
    %v356 = vsub.s32 %v353, %v355
    %v357 = vrot.slane %v343, %v356
    %v358 = vcombine.low %v302, %v334
    %v359 = vcombine.high %v302, %v334
    %v360 = vcombine.low %v309, %v341
    %v361 = vcombine.high %v309, %v341
    %v362 = vcombine.low %v318, %v350
    %v363 = vcombine.high %v318, %v350
    %v364 = vcombine.low %v325, %v357
    %v365 = vcombine.high %v325, %v357
    %v366 = vld [vmem:[%s2] sm:$0xff]
    %v367 = vld [vmem:[%s2 + $0x8] sm:$0xff]
    %v368 = vld [vmem:[%s2 + $0x10] sm:$0xff]
    %v369 = vld [vmem:[%s2 + $0x18] sm:$0xff]
    %v370 = vld [vmem:[%s4] sm:$0xff]
    %v371 = vld [vmem:[%s4 + $0x8] sm:$0xff]
    %v372 = vld [vmem:[%s4 + $0x10] sm:$0xff]
    %v373 = vld [vmem:[%s4 + $0x18] sm:$0xff]
    %v374 = vld [vmem:[#allocation7] sm:$0xff]
    %v375 = vld [vmem:[#allocation7 + $0x8] sm:$0xff]
    %v376 = vld [vmem:[#allocation7 + $0x10] sm:$0xff]
    %v377 = vld [vmem:[#allocation7 + $0x18] sm:$0xff]
    %v378 = vld [vmem:[%s6] sm:$0x1]
    %vm379 = vcmask 261120
    %v381 = vsel %vm379, 0.0, 0
    %383 = vmatprep.subr.mxu0 0.0
    %384 = vmatpush1.msra.mxu0 %v366
    %385 = vmatprep.subr.mxu0 0.0
    %386 = vmatpush1.msra.mxu0 %v367
    %387 = vmatprep.subr.mxu0 0.0
    %388 = vmatpush1.msra.mxu0 %v368
    %389 = vmatprep.subr.mxu0 0.0
    %390 = vmatpush1.msra.mxu0 %v369
    %391 = vmatprep.subr.mxu0 0.0
    %392 = vmatpush1.msra.mxu0 0.0
    %393 = vmatprep.subr.mxu0 0.0
    %394 = vmatpush1.msra.mxu0 0.0
    %395 = vmatprep.subr.mxu0 0.0
    %396 = vmatpush1.msra.mxu0 0.0
    %397 = vmatprep.subr.mxu0 0.0
    %398 = vmatpush1.msra.mxu0 0.0
    %399 = vmatprep.subr.mxu0 0.0
    %400 = vmatpush1.msra.mxu0 0.0
    %401 = vmatprep.subr.mxu0 0.0
    %402 = vmatpush1.msra.mxu0 0.0
    %403 = vmatprep.subr.mxu0 0.0
    %404 = vmatpush1.msra.mxu0 0.0
    %405 = vmatprep.subr.mxu0 0.0
    %406 = vmatpush1.msra.mxu0 0.0
    %407 = vmatprep.subr.mxu0 0.0
    %408 = vmatpush1.msra.mxu0 0.0
    %409 = vmatprep.subr.mxu0 0.0
    %410 = vmatpush1.msra.mxu0 0.0
    %411 = vmatprep.subr.mxu0 0.0
    %412 = vmatpush1.msra.mxu0 0.0
    %413 = vmatprep.subr.mxu0 0.0
    %414 = vmatpush1.msra.mxu0 0.0
    %415 = vmatprep.subr.mxu0 0.0
    %416 = vmatpush1.msra.mxu0 0.0
    %417 = vmatprep.subr.mxu0 0.0
    %418 = vmatpush1.msra.mxu0 0.0
    %419 = vmatprep.subr.mxu0 0.0
    %420 = vmatpush1.msra.mxu0 0.0
    %421 = vmatprep.subr.mxu0 0.0
    %422 = vmatpush1.msra.mxu0 0.0
    %423 = vmatprep.subr.mxu0 0.0
    %424 = vmatpush1.msra.mxu0 0.0
    %425 = vmatprep.subr.mxu0 0.0
    %426 = vmatpush1.msra.mxu0 0.0
    %427 = vmatprep.subr.mxu0 0.0
    %428 = vmatpush1.msra.mxu0 0.0
    %429 = vmatprep.subr.mxu0 0.0
    %430 = vmatpush1.msra.mxu0 0.0
    %431 = vmatprep.subr.mxu0 0.0
    %432 = vmatpush1.msra.mxu0 0.0
    %433 = vmatprep.subr.mxu0 0.0
    %434 = vmatpush1.msra.mxu0 0.0
    %435 = vmatprep.subr.mxu0 0.0
    %436 = vmatpush1.msra.mxu0 0.0
    %437 = vmatprep.subr.mxu0 0.0
    %438 = vmatpush1.msra.mxu0 0.0
    %439 = vmatprep.subr.mxu0 0.0
    %440 = vmatpush1.msra.mxu0 0.0
    %441 = vmatprep.subr.mxu0 0.0
    %442 = vmatpush1.msra.mxu0 0.0
    %443 = vmatprep.subr.mxu0 0.0
    %444 = vmatpush1.msra.mxu0 0.0
    %445 = vmatprep.subr.mxu0 0.0
    %446 = vmatpush1.msra.mxu0 0.0
    %447 = vmatprep.mubr.f32.mxu0 0.0
    %448 = vmatmul.mubr.f32.gmra.mrb[0].mxu0 %v381
    %v449 = vpop.f32.mrb[0].mxu0
    %v450 = vadd.f32 0.0, %v449
    %v451 = vpop.f32.mrb[0].mxu0
    %452 = vdwg.mxu0
    %v453 = vadd.f32 %v358, %v450
    %v454 = vxor.u32 %v453, 2147483648
    %v455 = vmul.f32 %v454, 1.442695
    %v456 = vpow.pop %v455
    %v457 = vadd.f32 %v456, 1.0
    %v458 = vrcp.pop %v457
    %v459 = vmul.f32 1.0, %v458
    %v460 = vmul.f32 %v459, 2.0
    %v461 = vsub.f32 %v460, 1.0
    %v462 = vmul.f32 %v459, 0.0
    %464 = vrot.lane.b32.xlu0 %v461, 64
    %v465 = vpop.permute.xlu0 %464
    %v467 = vmul.f32 %v459, %v465
    %469 = vrot.lane.b32.xlu0 %v467, 32
    %v470 = vpop.permute.xlu0 %469
    %v472 = vadd.f32 %v462, %v470
    %v473 = vtanh.pop %v472
    %475 = vrot.lane.b32.xlu0 %v473, 64
    %v476 = vpop.permute.xlu0 %475
    %v478 = vmul.f32 %v459, %v476
    %479 = vmatprep.subr.mxu0 0.0
    %480 = vmatpush1.msra.mxu0 %v374
    %481 = vmatprep.subr.mxu0 0.0
    %482 = vmatpush1.msra.mxu0 %v375
    %483 = vmatprep.subr.mxu0 0.0
    %484 = vmatpush1.msra.mxu0 %v376
    %485 = vmatprep.subr.mxu0 0.0
    %486 = vmatpush1.msra.mxu0 %v377
    %487 = vmatprep.subr.mxu0 0.0
    %488 = vmatpush1.msra.mxu0 0.0
    %489 = vmatprep.subr.mxu0 0.0
    %490 = vmatpush1.msra.mxu0 0.0
    %491 = vmatprep.subr.mxu0 0.0
    %492 = vmatpush1.msra.mxu0 0.0
    %493 = vmatprep.subr.mxu0 0.0
    %494 = vmatpush1.msra.mxu0 0.0
    %495 = vmatprep.subr.mxu0 0.0
    %496 = vmatpush1.msra.mxu0 0.0
    %497 = vmatprep.subr.mxu0 0.0
    %498 = vmatpush1.msra.mxu0 0.0
    %499 = vmatprep.subr.mxu0 0.0
    %500 = vmatpush1.msra.mxu0 0.0
    %501 = vmatprep.subr.mxu0 0.0
    %502 = vmatpush1.msra.mxu0 0.0
    %503 = vmatprep.subr.mxu0 0.0
    %504 = vmatpush1.msra.mxu0 0.0
    %505 = vmatprep.subr.mxu0 0.0
    %506 = vmatpush1.msra.mxu0 0.0
    %507 = vmatprep.subr.mxu0 0.0
    %508 = vmatpush1.msra.mxu0 0.0
    %509 = vmatprep.subr.mxu0 0.0
    %510 = vmatpush1.msra.mxu0 0.0
    %511 = vmatprep.subr.mxu0 0.0
    %512 = vmatpush1.msra.mxu0 0.0
    %513 = vmatprep.subr.mxu0 0.0
    %514 = vmatpush1.msra.mxu0 0.0
    %515 = vmatprep.subr.mxu0 0.0
    %516 = vmatpush1.msra.mxu0 0.0
    %517 = vmatprep.subr.mxu0 0.0
    %518 = vmatpush1.msra.mxu0 0.0
    %519 = vmatprep.subr.mxu0 0.0
    %520 = vmatpush1.msra.mxu0 0.0
    %521 = vmatprep.subr.mxu0 0.0
    %522 = vmatpush1.msra.mxu0 0.0
    %523 = vmatprep.subr.mxu0 0.0
    %524 = vmatpush1.msra.mxu0 0.0
    %525 = vmatprep.subr.mxu0 0.0
    %526 = vmatpush1.msra.mxu0 0.0
    %527 = vmatprep.subr.mxu0 0.0
    %528 = vmatpush1.msra.mxu0 0.0
    %529 = vmatprep.subr.mxu0 0.0
    %530 = vmatpush1.msra.mxu0 0.0
    %531 = vmatprep.subr.mxu0 0.0
    %532 = vmatpush1.msra.mxu0 0.0
    %533 = vmatprep.subr.mxu0 0.0
    %534 = vmatpush1.msra.mxu0 0.0
    %535 = vmatprep.subr.mxu0 0.0
    %536 = vmatpush1.msra.mxu0 0.0
    %537 = vmatprep.subr.mxu0 0.0
    %538 = vmatpush1.msra.mxu0 0.0
    %539 = vmatprep.subr.mxu0 0.0
    %540 = vmatpush1.msra.mxu0 0.0
    %541 = vmatprep.subr.mxu0 0.0
    %542 = vmatpush1.msra.mxu0 0.0
    %543 = vmatprep.mubr.f32.mxu0 0.0
    %544 = vmatmul.mubr.f32.gmra.mrb[0].mxu0 %v381
    %v545 = vpop.f32.mrb[0].mxu0
    %v546 = vadd.f32 0.0, %v545
    %v547 = vpop.f32.mrb[0].mxu0
    %548 = vdwg.mxu0
    %550 = vrot.lane.b32.xlu0 %v478, 32
    %v551 = vpop.permute.xlu0 %550
    %v552 = vsel %vm379, %v551, 0
    %554 = vmatprep.subr.mxu0 0.0
    %555 = vmatpush1.msra.mxu0 %v370
    %556 = vmatprep.subr.mxu0 0.0
    %557 = vmatpush1.msra.mxu0 %v371
    %558 = vmatprep.subr.mxu0 0.0
    %559 = vmatpush1.msra.mxu0 %v372
    %560 = vmatprep.subr.mxu0 0.0
    %561 = vmatpush1.msra.mxu0 %v373
    %562 = vmatprep.subr.mxu0 0.0
    %563 = vmatpush1.msra.mxu0 0.0
    %564 = vmatprep.subr.mxu0 0.0
    %565 = vmatpush1.msra.mxu0 0.0
    %566 = vmatprep.subr.mxu0 0.0
    %567 = vmatpush1.msra.mxu0 0.0
    %568 = vmatprep.subr.mxu0 0.0
    %569 = vmatpush1.msra.mxu0 0.0
    %570 = vmatprep.subr.mxu0 0.0
    %571 = vmatpush1.msra.mxu0 0.0
    %572 = vmatprep.subr.mxu0 0.0
    %573 = vmatpush1.msra.mxu0 0.0
    %574 = vmatprep.subr.mxu0 0.0
    %575 = vmatpush1.msra.mxu0 0.0
    %576 = vmatprep.subr.mxu0 0.0
    %577 = vmatpush1.msra.mxu0 0.0
    %578 = vmatprep.subr.mxu0 0.0
    %579 = vmatpush1.msra.mxu0 0.0
    %580 = vmatprep.subr.mxu0 0.0
    %581 = vmatpush1.msra.mxu0 0.0
    %582 = vmatprep.subr.mxu0 0.0
    %583 = vmatpush1.msra.mxu0 0.0
    %584 = vmatprep.subr.mxu0 0.0
    %585 = vmatpush1.msra.mxu0 0.0
    %586 = vmatprep.subr.mxu0 0.0
    %587 = vmatpush1.msra.mxu0 0.0
    %588 = vmatprep.subr.mxu0 0.0
    %589 = vmatpush1.msra.mxu0 0.0
    %590 = vmatprep.subr.mxu0 0.0
    %591 = vmatpush1.msra.mxu0 0.0
    %592 = vmatprep.subr.mxu0 0.0
    %593 = vmatpush1.msra.mxu0 0.0
    %594 = vmatprep.subr.mxu0 0.0
    %595 = vmatpush1.msra.mxu0 0.0
    %596 = vmatprep.subr.mxu0 0.0
    %597 = vmatpush1.msra.mxu0 0.0
    %598 = vmatprep.subr.mxu0 0.0
    %599 = vmatpush1.msra.mxu0 0.0
    %600 = vmatprep.subr.mxu0 0.0
    %601 = vmatpush1.msra.mxu0 0.0
    %602 = vmatprep.subr.mxu0 0.0
    %603 = vmatpush1.msra.mxu0 0.0
    %604 = vmatprep.subr.mxu0 0.0
    %605 = vmatpush1.msra.mxu0 0.0
    %606 = vmatprep.subr.mxu0 0.0
    %607 = vmatpush1.msra.mxu0 0.0
    %608 = vmatprep.subr.mxu0 0.0
    %609 = vmatpush1.msra.mxu0 0.0
    %610 = vmatprep.subr.mxu0 0.0
    %611 = vmatpush1.msra.mxu0 0.0
    %612 = vmatprep.subr.mxu0 0.0
    %613 = vmatpush1.msra.mxu0 0.0
    %614 = vmatprep.subr.mxu0 0.0
    %615 = vmatpush1.msra.mxu0 0.0
    %616 = vmatprep.subr.mxu0 0.0
    %617 = vmatpush1.msra.mxu0 0.0
    %618 = vmatprep.mubr.f32.mxu0 0.0
    %619 = vmatmul.mubr.f32.gmra.mrb[0].mxu0 %v552
    %v620 = vpop.f32.mrb[0].mxu0
    %v621 = vadd.f32 %v546, %v620
    %v622 = vpop.f32.mrb[0].mxu0
    %623 = vdwg.mxu0
    %v625 = vlaneseq
    %v626 = vshrl.u32 %v625, 7
    %v627 = vsub.s32 0, %v626
    %v628 = vrot.slane %v378, %v627
    %v630 = vadd.f32 %v621, %v628
    %v631 = vxor.u32 %v630, 2147483648
    %v632 = vmul.f32 %v631, 1.442695
    %v633 = vpow.pop %v632
    %v634 = vadd.f32 %v633, 1.0
    %v635 = vrcp.pop %v634
    %v636 = vmul.f32 1.0, %v635
    %v637 = vmul.f32 %v636, 2.0
    %v638 = vsub.f32 %v637, 1.0
    %v639 = vmul.f32 %v636, 0.0
    %641 = vrot.lane.b32.xlu0 %v638, 64
    %v642 = vpop.permute.xlu0 %641
    %v644 = vmul.f32 %v636, %v642
    %646 = vrot.lane.b32.xlu0 %v644, 32
    %v647 = vpop.permute.xlu0 %646
    %v649 = vadd.f32 %v639, %v647
    %v650 = vtanh.pop %v649
    %652 = vrot.lane.b32.xlu0 %v650, 64
    %v653 = vpop.permute.xlu0 %652
    %v655 = vmul.f32 %v636, %v653
    %656 = vmatprep.subr.mxu0 0.0
    %657 = vmatpush1.msra.mxu0 %v366
    %658 = vmatprep.subr.mxu0 0.0
    %659 = vmatpush1.msra.mxu0 %v367
    %660 = vmatprep.subr.mxu0 0.0
    %661 = vmatpush1.msra.mxu0 %v368
    %662 = vmatprep.subr.mxu0 0.0
    %663 = vmatpush1.msra.mxu0 %v369
    %664 = vmatprep.subr.mxu0 0.0
    %665 = vmatpush1.msra.mxu0 0.0
    %666 = vmatprep.subr.mxu0 0.0
    %667 = vmatpush1.msra.mxu0 0.0
    %668 = vmatprep.subr.mxu0 0.0
    %669 = vmatpush1.msra.mxu0 0.0
    %670 = vmatprep.subr.mxu0 0.0
    %671 = vmatpush1.msra.mxu0 0.0
    %672 = vmatprep.subr.mxu0 0.0
    %673 = vmatpush1.msra.mxu0 0.0
    %674 = vmatprep.subr.mxu0 0.0
    %675 = vmatpush1.msra.mxu0 0.0
    %676 = vmatprep.subr.mxu0 0.0
    %677 = vmatpush1.msra.mxu0 0.0
    %678 = vmatprep.subr.mxu0 0.0
    %679 = vmatpush1.msra.mxu0 0.0
    %680 = vmatprep.subr.mxu0 0.0
    %681 = vmatpush1.msra.mxu0 0.0
    %682 = vmatprep.subr.mxu0 0.0
    %683 = vmatpush1.msra.mxu0 0.0
    %684 = vmatprep.subr.mxu0 0.0
    %685 = vmatpush1.msra.mxu0 0.0
    %686 = vmatprep.subr.mxu0 0.0
    %687 = vmatpush1.msra.mxu0 0.0
    %688 = vmatprep.subr.mxu0 0.0
    %689 = vmatpush1.msra.mxu0 0.0
    %690 = vmatprep.subr.mxu0 0.0
    %691 = vmatpush1.msra.mxu0 0.0
    %692 = vmatprep.subr.mxu0 0.0
    %693 = vmatpush1.msra.mxu0 0.0
    %694 = vmatprep.subr.mxu0 0.0
    %695 = vmatpush1.msra.mxu0 0.0
    %696 = vmatprep.subr.mxu0 0.0
    %697 = vmatpush1.msra.mxu0 0.0
    %698 = vmatprep.subr.mxu0 0.0
    %699 = vmatpush1.msra.mxu0 0.0
    %700 = vmatprep.subr.mxu0 0.0
    %701 = vmatpush1.msra.mxu0 0.0
    %702 = vmatprep.subr.mxu0 0.0
    %703 = vmatpush1.msra.mxu0 0.0
    %704 = vmatprep.subr.mxu0 0.0
    %705 = vmatpush1.msra.mxu0 0.0
    %706 = vmatprep.subr.mxu0 0.0
    %707 = vmatpush1.msra.mxu0 0.0
    %708 = vmatprep.subr.mxu0 0.0
    %709 = vmatpush1.msra.mxu0 0.0
    %710 = vmatprep.subr.mxu0 0.0
    %711 = vmatpush1.msra.mxu0 0.0
    %712 = vmatprep.subr.mxu0 0.0
    %713 = vmatpush1.msra.mxu0 0.0
    %714 = vmatprep.subr.mxu0 0.0
    %715 = vmatpush1.msra.mxu0 0.0
    %716 = vmatprep.subr.mxu0 0.0
    %717 = vmatpush1.msra.mxu0 0.0
    %718 = vmatprep.subr.mxu0 0.0
    %719 = vmatpush1.msra.mxu0 0.0
    %720 = vmatprep.mubr.f32.mxu0 0.0
    %721 = vmatmul.mubr.f32.gmra.mrb[0].mxu0 %v552
    %v722 = vpop.f32.mrb[0].mxu0
    %v723 = vadd.f32 0.0, %v722
    %v724 = vpop.f32.mrb[0].mxu0
    %725 = vdwg.mxu0
    %v726 = vadd.f32 %v359, %v723
    %v727 = vxor.u32 %v726, 2147483648
    %v728 = vmul.f32 %v727, 1.442695
    %v729 = vpow.pop %v728
    %v730 = vadd.f32 %v729, 1.0
    %v731 = vrcp.pop %v730
    %v732 = vmul.f32 1.0, %v731
    %v733 = vmul.f32 %v732, 2.0
    %v734 = vsub.f32 %v733, 1.0
    %v735 = vmul.f32 %v732, %v472
    %737 = vrot.lane.b32.xlu0 %v734, 64
    %v738 = vpop.permute.xlu0 %737
    %v740 = vmul.f32 %v732, %v738
    %742 = vrot.lane.b32.xlu0 %v740, 32
    %v743 = vpop.permute.xlu0 %742
    %v745 = vadd.f32 %v735, %v743
    %v746 = vtanh.pop %v745
    %748 = vrot.lane.b32.xlu0 %v746, 64
    %v749 = vpop.permute.xlu0 %748
    %v751 = vmul.f32 %v732, %v749
    %753 = vrot.lane.b32.xlu0 %v655, 32
    %v754 = vpop.permute.xlu0 %753
    %v755 = vsel %vm379, %v754, 0
    %757 = vmatprep.subr.mxu0 0.0
    %758 = vmatpush1.msra.mxu0 %v374
    %759 = vmatprep.subr.mxu0 0.0
    %760 = vmatpush1.msra.mxu0 %v375
    %761 = vmatprep.subr.mxu0 0.0
    %762 = vmatpush1.msra.mxu0 %v376
    %763 = vmatprep.subr.mxu0 0.0
    %764 = vmatpush1.msra.mxu0 %v377
    %765 = vmatprep.subr.mxu0 0.0
    %766 = vmatpush1.msra.mxu0 0.0
    %767 = vmatprep.subr.mxu0 0.0
    %768 = vmatpush1.msra.mxu0 0.0
    %769 = vmatprep.subr.mxu0 0.0
    %770 = vmatpush1.msra.mxu0 0.0
    %771 = vmatprep.subr.mxu0 0.0
    %772 = vmatpush1.msra.mxu0 0.0
    %773 = vmatprep.subr.mxu0 0.0
    %774 = vmatpush1.msra.mxu0 0.0
    %775 = vmatprep.subr.mxu0 0.0
    %776 = vmatpush1.msra.mxu0 0.0
    %777 = vmatprep.subr.mxu0 0.0
    %778 = vmatpush1.msra.mxu0 0.0
    %779 = vmatprep.subr.mxu0 0.0
    %780 = vmatpush1.msra.mxu0 0.0
    %781 = vmatprep.subr.mxu0 0.0
    %782 = vmatpush1.msra.mxu0 0.0
    %783 = vmatprep.subr.mxu0 0.0
    %784 = vmatpush1.msra.mxu0 0.0
    %785 = vmatprep.subr.mxu0 0.0
    %786 = vmatpush1.msra.mxu0 0.0
    %787 = vmatprep.subr.mxu0 0.0
    %788 = vmatpush1.msra.mxu0 0.0
    %789 = vmatprep.subr.mxu0 0.0
    %790 = vmatpush1.msra.mxu0 0.0
    %791 = vmatprep.subr.mxu0 0.0
    %792 = vmatpush1.msra.mxu0 0.0
    %793 = vmatprep.subr.mxu0 0.0
    %794 = vmatpush1.msra.mxu0 0.0
    %795 = vmatprep.subr.mxu0 0.0
    %796 = vmatpush1.msra.mxu0 0.0
    %797 = vmatprep.subr.mxu0 0.0
    %798 = vmatpush1.msra.mxu0 0.0
    %799 = vmatprep.subr.mxu0 0.0
    %800 = vmatpush1.msra.mxu0 0.0
    %801 = vmatprep.subr.mxu0 0.0
    %802 = vmatpush1.msra.mxu0 0.0
    %803 = vmatprep.subr.mxu0 0.0
    %804 = vmatpush1.msra.mxu0 0.0
    %805 = vmatprep.subr.mxu0 0.0
    %806 = vmatpush1.msra.mxu0 0.0
    %807 = vmatprep.subr.mxu0 0.0
    %808 = vmatpush1.msra.mxu0 0.0
    %809 = vmatprep.subr.mxu0 0.0
    %810 = vmatpush1.msra.mxu0 0.0
    %811 = vmatprep.subr.mxu0 0.0
    %812 = vmatpush1.msra.mxu0 0.0
    %813 = vmatprep.subr.mxu0 0.0
    %814 = vmatpush1.msra.mxu0 0.0
    %815 = vmatprep.subr.mxu0 0.0
    %816 = vmatpush1.msra.mxu0 0.0
    %817 = vmatprep.subr.mxu0 0.0
    %818 = vmatpush1.msra.mxu0 0.0
    %819 = vmatprep.subr.mxu0 0.0
    %820 = vmatpush1.msra.mxu0 0.0
    %821 = vmatprep.mubr.f32.mxu0 0.0
    %822 = vmatmul.mubr.f32.gmra.mrb[0].mxu0 %v755
    %v823 = vpop.f32.mrb[0].mxu0
    %v824 = vadd.f32 0.0, %v823
    %v825 = vpop.f32.mrb[0].mxu0
    %826 = vdwg.mxu0
    %828 = vrot.lane.b32.xlu0 %v751, 32
    %v829 = vpop.permute.xlu0 %828
    %v830 = vsel %vm379, %v829, 0
    %832 = vmatprep.subr.mxu0 0.0
    %833 = vmatpush1.msra.mxu0 %v370
    %834 = vmatprep.subr.mxu0 0.0
    %835 = vmatpush1.msra.mxu0 %v371
    %836 = vmatprep.subr.mxu0 0.0
    %837 = vmatpush1.msra.mxu0 %v372
    %838 = vmatprep.subr.mxu0 0.0
    %839 = vmatpush1.msra.mxu0 %v373
    %840 = vmatprep.subr.mxu0 0.0
    %841 = vmatpush1.msra.mxu0 0.0
    %842 = vmatprep.subr.mxu0 0.0
    %843 = vmatpush1.msra.mxu0 0.0
    %844 = vmatprep.subr.mxu0 0.0
    %845 = vmatpush1.msra.mxu0 0.0
    %846 = vmatprep.subr.mxu0 0.0
    %847 = vmatpush1.msra.mxu0 0.0
    %848 = vmatprep.subr.mxu0 0.0
    %849 = vmatpush1.msra.mxu0 0.0
    %850 = vmatprep.subr.mxu0 0.0
    %851 = vmatpush1.msra.mxu0 0.0
    %852 = vmatprep.subr.mxu0 0.0
    %853 = vmatpush1.msra.mxu0 0.0
    %854 = vmatprep.subr.mxu0 0.0
    %855 = vmatpush1.msra.mxu0 0.0
    %856 = vmatprep.subr.mxu0 0.0
    %857 = vmatpush1.msra.mxu0 0.0
    %858 = vmatprep.subr.mxu0 0.0
    %859 = vmatpush1.msra.mxu0 0.0
    %860 = vmatprep.subr.mxu0 0.0
    %861 = vmatpush1.msra.mxu0 0.0
    %862 = vmatprep.subr.mxu0 0.0
    %863 = vmatpush1.msra.mxu0 0.0
    %864 = vmatprep.subr.mxu0 0.0
    %865 = vmatpush1.msra.mxu0 0.0
    %866 = vmatprep.subr.mxu0 0.0
    %867 = vmatpush1.msra.mxu0 0.0
    %868 = vmatprep.subr.mxu0 0.0
    %869 = vmatpush1.msra.mxu0 0.0
    %870 = vmatprep.subr.mxu0 0.0
    %871 = vmatpush1.msra.mxu0 0.0
    %872 = vmatprep.subr.mxu0 0.0
    %873 = vmatpush1.msra.mxu0 0.0
    %874 = vmatprep.subr.mxu0 0.0
    %875 = vmatpush1.msra.mxu0 0.0
    %876 = vmatprep.subr.mxu0 0.0
    %877 = vmatpush1.msra.mxu0 0.0
    %878 = vmatprep.subr.mxu0 0.0
    %879 = vmatpush1.msra.mxu0 0.0
    %880 = vmatprep.subr.mxu0 0.0
    %881 = vmatpush1.msra.mxu0 0.0
    %882 = vmatprep.subr.mxu0 0.0
    %883 = vmatpush1.msra.mxu0 0.0
    %884 = vmatprep.subr.mxu0 0.0
    %885 = vmatpush1.msra.mxu0 0.0
    %886 = vmatprep.subr.mxu0 0.0
    %887 = vmatpush1.msra.mxu0 0.0
    %888 = vmatprep.subr.mxu0 0.0
    %889 = vmatpush1.msra.mxu0 0.0
    %890 = vmatprep.subr.mxu0 0.0
    %891 = vmatpush1.msra.mxu0 0.0
    %892 = vmatprep.subr.mxu0 0.0
    %893 = vmatpush1.msra.mxu0 0.0
    %894 = vmatprep.subr.mxu0 0.0
    %895 = vmatpush1.msra.mxu0 0.0
    %896 = vmatprep.mubr.f32.mxu0 0.0
    %897 = vmatmul.mubr.f32.gmra.mrb[0].mxu0 %v830
    %v898 = vpop.f32.mrb[0].mxu0
    %v899 = vadd.f32 %v824, %v898
    %v900 = vpop.f32.mrb[0].mxu0
    %901 = vdwg.mxu0
    %v902 = vadd.f32 %v899, %v628
    %v903 = vxor.u32 %v902, 2147483648
    %v904 = vmul.f32 %v903, 1.442695
    %v905 = vpow.pop %v904
    %v906 = vadd.f32 %v905, 1.0
    %v907 = vrcp.pop %v906
    %v908 = vmul.f32 1.0, %v907
    %v909 = vmul.f32 %v908, 2.0
    %v910 = vsub.f32 %v909, 1.0
    %v911 = vmul.f32 %v908, %v649
    %913 = vrot.lane.b32.xlu0 %v910, 64
    %v914 = vpop.permute.xlu0 %913
    %v916 = vmul.f32 %v908, %v914
    %918 = vrot.lane.b32.xlu0 %v916, 32
    %v919 = vpop.permute.xlu0 %918
    %v921 = vadd.f32 %v911, %v919
    %v922 = vtanh.pop %v921
    %924 = vrot.lane.b32.xlu0 %v922, 64
    %v925 = vpop.permute.xlu0 %924
    %v927 = vmul.f32 %v908, %v925
    %928 = vmatprep.subr.mxu0 0.0
    %929 = vmatpush1.msra.mxu0 %v366
    %930 = vmatprep.subr.mxu0 0.0
    %931 = vmatpush1.msra.mxu0 %v367
    %932 = vmatprep.subr.mxu0 0.0
    %933 = vmatpush1.msra.mxu0 %v368
    %934 = vmatprep.subr.mxu0 0.0
    %935 = vmatpush1.msra.mxu0 %v369
    %936 = vmatprep.subr.mxu0 0.0
    %937 = vmatpush1.msra.mxu0 0.0
    %938 = vmatprep.subr.mxu0 0.0
    %939 = vmatpush1.msra.mxu0 0.0
    %940 = vmatprep.subr.mxu0 0.0
    %941 = vmatpush1.msra.mxu0 0.0
    %942 = vmatprep.subr.mxu0 0.0
    %943 = vmatpush1.msra.mxu0 0.0
    %944 = vmatprep.subr.mxu0 0.0
    %945 = vmatpush1.msra.mxu0 0.0
    %946 = vmatprep.subr.mxu0 0.0
    %947 = vmatpush1.msra.mxu0 0.0
    %948 = vmatprep.subr.mxu0 0.0
    %949 = vmatpush1.msra.mxu0 0.0
    %950 = vmatprep.subr.mxu0 0.0
    %951 = vmatpush1.msra.mxu0 0.0
    %952 = vmatprep.subr.mxu0 0.0
    %953 = vmatpush1.msra.mxu0 0.0
    %954 = vmatprep.subr.mxu0 0.0
    %955 = vmatpush1.msra.mxu0 0.0
    %956 = vmatprep.subr.mxu0 0.0
    %957 = vmatpush1.msra.mxu0 0.0
    %958 = vmatprep.subr.mxu0 0.0
    %959 = vmatpush1.msra.mxu0 0.0
    %960 = vmatprep.subr.mxu0 0.0
    %961 = vmatpush1.msra.mxu0 0.0
    %962 = vmatprep.subr.mxu0 0.0
    %963 = vmatpush1.msra.mxu0 0.0
    %964 = vmatprep.subr.mxu0 0.0
    %965 = vmatpush1.msra.mxu0 0.0
    %966 = vmatprep.subr.mxu0 0.0
    %967 = vmatpush1.msra.mxu0 0.0
    %968 = vmatprep.subr.mxu0 0.0
    %969 = vmatpush1.msra.mxu0 0.0
    %970 = vmatprep.subr.mxu0 0.0
    %971 = vmatpush1.msra.mxu0 0.0
    %972 = vmatprep.subr.mxu0 0.0
    %973 = vmatpush1.msra.mxu0 0.0
    %974 = vmatprep.subr.mxu0 0.0
    %975 = vmatpush1.msra.mxu0 0.0
    %976 = vmatprep.subr.mxu0 0.0
    %977 = vmatpush1.msra.mxu0 0.0
    %978 = vmatprep.subr.mxu0 0.0
    %979 = vmatpush1.msra.mxu0 0.0
    %980 = vmatprep.subr.mxu0 0.0
    %981 = vmatpush1.msra.mxu0 0.0
    %982 = vmatprep.subr.mxu0 0.0
    %983 = vmatpush1.msra.mxu0 0.0
    %984 = vmatprep.subr.mxu0 0.0
    %985 = vmatpush1.msra.mxu0 0.0
    %986 = vmatprep.subr.mxu0 0.0
    %987 = vmatpush1.msra.mxu0 0.0
    %988 = vmatprep.subr.mxu0 0.0
    %989 = vmatpush1.msra.mxu0 0.0
    %990 = vmatprep.subr.mxu0 0.0
    %991 = vmatpush1.msra.mxu0 0.0
    %992 = vmatprep.mubr.f32.mxu0 0.0
    %993 = vmatmul.mubr.f32.gmra.mrb[0].mxu0 %v830
    %v994 = vpop.f32.mrb[0].mxu0
    %v995 = vadd.f32 0.0, %v994
    %v996 = vpop.f32.mrb[0].mxu0
    %997 = vdwg.mxu0
    %v998 = vadd.f32 %v360, %v995
    %v999 = vxor.u32 %v998, 2147483648
    %v1000 = vmul.f32 %v999, 1.442695
    %v1001 = vpow.pop %v1000
    %v1002 = vadd.f32 %v1001, 1.0
    %v1003 = vrcp.pop %v1002
    %v1004 = vmul.f32 1.0, %v1003
    %v1005 = vmul.f32 %v1004, 2.0
    %v1006 = vsub.f32 %v1005, 1.0
    %v1007 = vmul.f32 %v1004, %v745
    %1009 = vrot.lane.b32.xlu0 %v1006, 64
    %v1010 = vpop.permute.xlu0 %1009
    %v1012 = vmul.f32 %v1004, %v1010
    %1014 = vrot.lane.b32.xlu0 %v1012, 32
    %v1015 = vpop.permute.xlu0 %1014
    %v1017 = vadd.f32 %v1007, %v1015
    %v1018 = vtanh.pop %v1017
    %1020 = vrot.lane.b32.xlu0 %v1018, 64
    %v1021 = vpop.permute.xlu0 %1020
    %v1023 = vmul.f32 %v1004, %v1021
    %1025 = vrot.lane.b32.xlu0 %v927, 32
    %v1026 = vpop.permute.xlu0 %1025
    %v1027 = vsel %vm379, %v1026, 0
    %1029 = vmatprep.subr.mxu0 0.0
    %1030 = vmatpush1.msra.mxu0 %v374
    %1031 = vmatprep.subr.mxu0 0.0
    %1032 = vmatpush1.msra.mxu0 %v375
    %1033 = vmatprep.subr.mxu0 0.0
    %1034 = vmatpush1.msra.mxu0 %v376
    %1035 = vmatprep.subr.mxu0 0.0
    %1036 = vmatpush1.msra.mxu0 %v377
    %1037 = vmatprep.subr.mxu0 0.0
    %1038 = vmatpush1.msra.mxu0 0.0
    %1039 = vmatprep.subr.mxu0 0.0
    %1040 = vmatpush1.msra.mxu0 0.0
    %1041 = vmatprep.subr.mxu0 0.0
    %1042 = vmatpush1.msra.mxu0 0.0
    %1043 = vmatprep.subr.mxu0 0.0
    %1044 = vmatpush1.msra.mxu0 0.0
    %1045 = vmatprep.subr.mxu0 0.0
    %1046 = vmatpush1.msra.mxu0 0.0
    %1047 = vmatprep.subr.mxu0 0.0
    %1048 = vmatpush1.msra.mxu0 0.0
    %1049 = vmatprep.subr.mxu0 0.0
    %1050 = vmatpush1.msra.mxu0 0.0
    %1051 = vmatprep.subr.mxu0 0.0
    %1052 = vmatpush1.msra.mxu0 0.0
    %1053 = vmatprep.subr.mxu0 0.0
    %1054 = vmatpush1.msra.mxu0 0.0
    %1055 = vmatprep.subr.mxu0 0.0
    %1056 = vmatpush1.msra.mxu0 0.0
    %1057 = vmatprep.subr.mxu0 0.0
    %1058 = vmatpush1.msra.mxu0 0.0
    %1059 = vmatprep.subr.mxu0 0.0
    %1060 = vmatpush1.msra.mxu0 0.0
    %1061 = vmatprep.subr.mxu0 0.0
    %1062 = vmatpush1.msra.mxu0 0.0
    %1063 = vmatprep.subr.mxu0 0.0
    %1064 = vmatpush1.msra.mxu0 0.0
    %1065 = vmatprep.subr.mxu0 0.0
    %1066 = vmatpush1.msra.mxu0 0.0
    %1067 = vmatprep.subr.mxu0 0.0
    %1068 = vmatpush1.msra.mxu0 0.0
    %1069 = vmatprep.subr.mxu0 0.0
    %1070 = vmatpush1.msra.mxu0 0.0
    %1071 = vmatprep.subr.mxu0 0.0
    %1072 = vmatpush1.msra.mxu0 0.0
    %1073 = vmatprep.subr.mxu0 0.0
    %1074 = vmatpush1.msra.mxu0 0.0
    %1075 = vmatprep.subr.mxu0 0.0
    %1076 = vmatpush1.msra.mxu0 0.0
    %1077 = vmatprep.subr.mxu0 0.0
    %1078 = vmatpush1.msra.mxu0 0.0
    %1079 = vmatprep.subr.mxu0 0.0
    %1080 = vmatpush1.msra.mxu0 0.0
    %1081 = vmatprep.subr.mxu0 0.0
    %1082 = vmatpush1.msra.mxu0 0.0
    %1083 = vmatprep.subr.mxu0 0.0
    %1084 = vmatpush1.msra.mxu0 0.0
    %1085 = vmatprep.subr.mxu0 0.0
    %1086 = vmatpush1.msra.mxu0 0.0
    %1087 = vmatprep.subr.mxu0 0.0
    %1088 = vmatpush1.msra.mxu0 0.0
    %1089 = vmatprep.subr.mxu0 0.0
    %1090 = vmatpush1.msra.mxu0 0.0
    %1091 = vmatprep.subr.mxu0 0.0
    %1092 = vmatpush1.msra.mxu0 0.0
    %1093 = vmatprep.mubr.f32.mxu0 0.0
    %1094 = vmatmul.mubr.f32.gmra.mrb[0].mxu0 %v1027
    %v1095 = vpop.f32.mrb[0].mxu0
    %v1096 = vadd.f32 0.0, %v1095
    %v1097 = vpop.f32.mrb[0].mxu0
    %1098 = vdwg.mxu0
    %1100 = vrot.lane.b32.xlu0 %v1023, 32
    %v1101 = vpop.permute.xlu0 %1100
    %v1102 = vsel %vm379, %v1101, 0
    %1104 = vmatprep.subr.mxu0 0.0
    %1105 = vmatpush1.msra.mxu0 %v370
    %1106 = vmatprep.subr.mxu0 0.0
    %1107 = vmatpush1.msra.mxu0 %v371
    %1108 = vmatprep.subr.mxu0 0.0
    %1109 = vmatpush1.msra.mxu0 %v372
    %1110 = vmatprep.subr.mxu0 0.0
    %1111 = vmatpush1.msra.mxu0 %v373
    %1112 = vmatprep.subr.mxu0 0.0
    %1113 = vmatpush1.msra.mxu0 0.0
    %1114 = vmatprep.subr.mxu0 0.0
    %1115 = vmatpush1.msra.mxu0 0.0
    %1116 = vmatprep.subr.mxu0 0.0
    %1117 = vmatpush1.msra.mxu0 0.0
    %1118 = vmatprep.subr.mxu0 0.0
    %1119 = vmatpush1.msra.mxu0 0.0
    %1120 = vmatprep.subr.mxu0 0.0
    %1121 = vmatpush1.msra.mxu0 0.0
    %1122 = vmatprep.subr.mxu0 0.0
    %1123 = vmatpush1.msra.mxu0 0.0
    %1124 = vmatprep.subr.mxu0 0.0
    %1125 = vmatpush1.msra.mxu0 0.0
    %1126 = vmatprep.subr.mxu0 0.0
    %1127 = vmatpush1.msra.mxu0 0.0
    %1128 = vmatprep.subr.mxu0 0.0
    %1129 = vmatpush1.msra.mxu0 0.0
    %1130 = vmatprep.subr.mxu0 0.0
    %1131 = vmatpush1.msra.mxu0 0.0
    %1132 = vmatprep.subr.mxu0 0.0
    %1133 = vmatpush1.msra.mxu0 0.0
    %1134 = vmatprep.subr.mxu0 0.0
    %1135 = vmatpush1.msra.mxu0 0.0
    %1136 = vmatprep.subr.mxu0 0.0
    %1137 = vmatpush1.msra.mxu0 0.0
    %1138 = vmatprep.subr.mxu0 0.0
    %1139 = vmatpush1.msra.mxu0 0.0
    %1140 = vmatprep.subr.mxu0 0.0
    %1141 = vmatpush1.msra.mxu0 0.0
    %1142 = vmatprep.subr.mxu0 0.0
    %1143 = vmatpush1.msra.mxu0 0.0
    %1144 = vmatprep.subr.mxu0 0.0
    %1145 = vmatpush1.msra.mxu0 0.0
    %1146 = vmatprep.subr.mxu0 0.0
    %1147 = vmatpush1.msra.mxu0 0.0
    %1148 = vmatprep.subr.mxu0 0.0
    %1149 = vmatpush1.msra.mxu0 0.0
    %1150 = vmatprep.subr.mxu0 0.0
    %1151 = vmatpush1.msra.mxu0 0.0
    %1152 = vmatprep.subr.mxu0 0.0
    %1153 = vmatpush1.msra.mxu0 0.0
    %1154 = vmatprep.subr.mxu0 0.0
    %1155 = vmatpush1.msra.mxu0 0.0
    %1156 = vmatprep.subr.mxu0 0.0
    %1157 = vmatpush1.msra.mxu0 0.0
    %1158 = vmatprep.subr.mxu0 0.0
    %1159 = vmatpush1.msra.mxu0 0.0
    %1160 = vmatprep.subr.mxu0 0.0
    %1161 = vmatpush1.msra.mxu0 0.0
    %1162 = vmatprep.subr.mxu0 0.0
    %1163 = vmatpush1.msra.mxu0 0.0
    %1164 = vmatprep.subr.mxu0 0.0
    %1165 = vmatpush1.msra.mxu0 0.0
    %1166 = vmatprep.subr.mxu0 0.0
    %1167 = vmatpush1.msra.mxu0 0.0
    %1168 = vmatprep.mubr.f32.mxu0 0.0
    %1169 = vmatmul.mubr.f32.gmra.mrb[0].mxu0 %v1102
    %v1170 = vpop.f32.mrb[0].mxu0
    %v1171 = vadd.f32 %v1096, %v1170
    %v1172 = vpop.f32.mrb[0].mxu0
    %1173 = vdwg.mxu0
    %v1174 = vadd.f32 %v1171, %v628
    %v1175 = vxor.u32 %v1174, 2147483648
    %v1176 = vmul.f32 %v1175, 1.442695
    %v1177 = vpow.pop %v1176
    %v1178 = vadd.f32 %v1177, 1.0
    %v1179 = vrcp.pop %v1178
    %v1180 = vmul.f32 1.0, %v1179
    %v1181 = vmul.f32 %v1180, 2.0
    %v1182 = vsub.f32 %v1181, 1.0
    %v1183 = vmul.f32 %v1180, %v921
    %1185 = vrot.lane.b32.xlu0 %v1182, 64
    %v1186 = vpop.permute.xlu0 %1185
    %v1188 = vmul.f32 %v1180, %v1186
    %1190 = vrot.lane.b32.xlu0 %v1188, 32
    %v1191 = vpop.permute.xlu0 %1190
    %v1193 = vadd.f32 %v1183, %v1191
    %v1194 = vtanh.pop %v1193
    %1196 = vrot.lane.b32.xlu0 %v1194, 64
    %v1197 = vpop.permute.xlu0 %1196
    %v1199 = vmul.f32 %v1180, %v1197
    %1200 = vmatprep.subr.mxu0 0.0
    %1201 = vmatpush1.msra.mxu0 %v366
    %1202 = vmatprep.subr.mxu0 0.0
    %1203 = vmatpush1.msra.mxu0 %v367
    %1204 = vmatprep.subr.mxu0 0.0
    %1205 = vmatpush1.msra.mxu0 %v368
    %1206 = vmatprep.subr.mxu0 0.0
    %1207 = vmatpush1.msra.mxu0 %v369
    %1208 = vmatprep.subr.mxu0 0.0
    %1209 = vmatpush1.msra.mxu0 0.0
    %1210 = vmatprep.subr.mxu0 0.0
    %1211 = vmatpush1.msra.mxu0 0.0
    %1212 = vmatprep.subr.mxu0 0.0
    %1213 = vmatpush1.msra.mxu0 0.0
    %1214 = vmatprep.subr.mxu0 0.0
    %1215 = vmatpush1.msra.mxu0 0.0
    %1216 = vmatprep.subr.mxu0 0.0
    %1217 = vmatpush1.msra.mxu0 0.0
    %1218 = vmatprep.subr.mxu0 0.0
    %1219 = vmatpush1.msra.mxu0 0.0
    %1220 = vmatprep.subr.mxu0 0.0
    %1221 = vmatpush1.msra.mxu0 0.0
    %1222 = vmatprep.subr.mxu0 0.0
    %1223 = vmatpush1.msra.mxu0 0.0
    %1224 = vmatprep.subr.mxu0 0.0
    %1225 = vmatpush1.msra.mxu0 0.0
    %1226 = vmatprep.subr.mxu0 0.0
    %1227 = vmatpush1.msra.mxu0 0.0
    %1228 = vmatprep.subr.mxu0 0.0
    %1229 = vmatpush1.msra.mxu0 0.0
    %1230 = vmatprep.subr.mxu0 0.0
    %1231 = vmatpush1.msra.mxu0 0.0
    %1232 = vmatprep.subr.mxu0 0.0
    %1233 = vmatpush1.msra.mxu0 0.0
    %1234 = vmatprep.subr.mxu0 0.0
    %1235 = vmatpush1.msra.mxu0 0.0
    %1236 = vmatprep.subr.mxu0 0.0
    %1237 = vmatpush1.msra.mxu0 0.0
    %1238 = vmatprep.subr.mxu0 0.0
    %1239 = vmatpush1.msra.mxu0 0.0
    %1240 = vmatprep.subr.mxu0 0.0
    %1241 = vmatpush1.msra.mxu0 0.0
    %1242 = vmatprep.subr.mxu0 0.0
    %1243 = vmatpush1.msra.mxu0 0.0
    %1244 = vmatprep.subr.mxu0 0.0
    %1245 = vmatpush1.msra.mxu0 0.0
    %1246 = vmatprep.subr.mxu0 0.0
    %1247 = vmatpush1.msra.mxu0 0.0
    %1248 = vmatprep.subr.mxu0 0.0
    %1249 = vmatpush1.msra.mxu0 0.0
    %1250 = vmatprep.subr.mxu0 0.0
    %1251 = vmatpush1.msra.mxu0 0.0
    %1252 = vmatprep.subr.mxu0 0.0
    %1253 = vmatpush1.msra.mxu0 0.0
    %1254 = vmatprep.subr.mxu0 0.0
    %1255 = vmatpush1.msra.mxu0 0.0
    %1256 = vmatprep.subr.mxu0 0.0
    %1257 = vmatpush1.msra.mxu0 0.0
    %1258 = vmatprep.subr.mxu0 0.0
    %1259 = vmatpush1.msra.mxu0 0.0
    %1260 = vmatprep.subr.mxu0 0.0
    %1261 = vmatpush1.msra.mxu0 0.0
    %1262 = vmatprep.subr.mxu0 0.0
    %1263 = vmatpush1.msra.mxu0 0.0
    %1264 = vmatprep.mubr.f32.mxu0 0.0
    %1265 = vmatmul.mubr.f32.gmra.mrb[0].mxu0 %v1102
    %v1266 = vpop.f32.mrb[0].mxu0
    %v1267 = vadd.f32 0.0, %v1266
    %v1268 = vpop.f32.mrb[0].mxu0
    %1269 = vdwg.mxu0
    %v1270 = vadd.f32 %v361, %v1267
    %v1271 = vxor.u32 %v1270, 2147483648
    %v1272 = vmul.f32 %v1271, 1.442695
    %v1273 = vpow.pop %v1272
    %v1274 = vadd.f32 %v1273, 1.0
    %v1275 = vrcp.pop %v1274
    %v1276 = vmul.f32 1.0, %v1275
    %v1277 = vmul.f32 %v1276, 2.0
    %v1278 = vsub.f32 %v1277, 1.0
    %v1279 = vmul.f32 %v1276, %v1017
    %1281 = vrot.lane.b32.xlu0 %v1278, 64
    %v1282 = vpop.permute.xlu0 %1281
    %v1284 = vmul.f32 %v1276, %v1282
    %1286 = vrot.lane.b32.xlu0 %v1284, 32
    %v1287 = vpop.permute.xlu0 %1286
    %v1289 = vadd.f32 %v1279, %v1287
    %v1290 = vtanh.pop %v1289
    %1292 = vrot.lane.b32.xlu0 %v1290, 64
    %v1293 = vpop.permute.xlu0 %1292
    %v1295 = vmul.f32 %v1276, %v1293
    %1297 = vrot.lane.b32.xlu0 %v1199, 32
    %v1298 = vpop.permute.xlu0 %1297
    %v1299 = vsel %vm379, %v1298, 0
    %1301 = vmatprep.subr.mxu0 0.0
    %1302 = vmatpush1.msra.mxu0 %v374
    %1303 = vmatprep.subr.mxu0 0.0
    %1304 = vmatpush1.msra.mxu0 %v375
    %1305 = vmatprep.subr.mxu0 0.0
    %1306 = vmatpush1.msra.mxu0 %v376
    %1307 = vmatprep.subr.mxu0 0.0
    %1308 = vmatpush1.msra.mxu0 %v377
    %1309 = vmatprep.subr.mxu0 0.0
    %1310 = vmatpush1.msra.mxu0 0.0
    %1311 = vmatprep.subr.mxu0 0.0
    %1312 = vmatpush1.msra.mxu0 0.0
    %1313 = vmatprep.subr.mxu0 0.0
    %1314 = vmatpush1.msra.mxu0 0.0
    %1315 = vmatprep.subr.mxu0 0.0
    %1316 = vmatpush1.msra.mxu0 0.0
    %1317 = vmatprep.subr.mxu0 0.0
    %1318 = vmatpush1.msra.mxu0 0.0
    %1319 = vmatprep.subr.mxu0 0.0
    %1320 = vmatpush1.msra.mxu0 0.0
    %1321 = vmatprep.subr.mxu0 0.0
    %1322 = vmatpush1.msra.mxu0 0.0
    %1323 = vmatprep.subr.mxu0 0.0
    %1324 = vmatpush1.msra.mxu0 0.0
    %1325 = vmatprep.subr.mxu0 0.0
    %1326 = vmatpush1.msra.mxu0 0.0
    %1327 = vmatprep.subr.mxu0 0.0
    %1328 = vmatpush1.msra.mxu0 0.0
    %1329 = vmatprep.subr.mxu0 0.0
    %1330 = vmatpush1.msra.mxu0 0.0
    %1331 = vmatprep.subr.mxu0 0.0
    %1332 = vmatpush1.msra.mxu0 0.0
    %1333 = vmatprep.subr.mxu0 0.0
    %1334 = vmatpush1.msra.mxu0 0.0
    %1335 = vmatprep.subr.mxu0 0.0
    %1336 = vmatpush1.msra.mxu0 0.0
    %1337 = vmatprep.subr.mxu0 0.0
    %1338 = vmatpush1.msra.mxu0 0.0
    %1339 = vmatprep.subr.mxu0 0.0
    %1340 = vmatpush1.msra.mxu0 0.0
    %1341 = vmatprep.subr.mxu0 0.0
    %1342 = vmatpush1.msra.mxu0 0.0
    %1343 = vmatprep.subr.mxu0 0.0
    %1344 = vmatpush1.msra.mxu0 0.0
    %1345 = vmatprep.subr.mxu0 0.0
    %1346 = vmatpush1.msra.mxu0 0.0
    %1347 = vmatprep.subr.mxu0 0.0
    %1348 = vmatpush1.msra.mxu0 0.0
    %1349 = vmatprep.subr.mxu0 0.0
    %1350 = vmatpush1.msra.mxu0 0.0
    %1351 = vmatprep.subr.mxu0 0.0
    %1352 = vmatpush1.msra.mxu0 0.0
    %1353 = vmatprep.subr.mxu0 0.0
    %1354 = vmatpush1.msra.mxu0 0.0
    %1355 = vmatprep.subr.mxu0 0.0
    %1356 = vmatpush1.msra.mxu0 0.0
    %1357 = vmatprep.subr.mxu0 0.0
    %1358 = vmatpush1.msra.mxu0 0.0
    %1359 = vmatprep.subr.mxu0 0.0
    %1360 = vmatpush1.msra.mxu0 0.0
    %1361 = vmatprep.subr.mxu0 0.0
    %1362 = vmatpush1.msra.mxu0 0.0
    %1363 = vmatprep.subr.mxu0 0.0
    %1364 = vmatpush1.msra.mxu0 0.0
    %1365 = vmatprep.mubr.f32.mxu0 0.0
    %1366 = vmatmul.mubr.f32.gmra.mrb[0].mxu0 %v1299
    %v1367 = vpop.f32.mrb[0].mxu0
    %v1368 = vadd.f32 0.0, %v1367
    %v1369 = vpop.f32.mrb[0].mxu0
    %1370 = vdwg.mxu0
    %1372 = vrot.lane.b32.xlu0 %v1295, 32
    %v1373 = vpop.permute.xlu0 %1372
    %v1374 = vsel %vm379, %v1373, 0
    %1376 = vmatprep.subr.mxu0 0.0
    %1377 = vmatpush1.msra.mxu0 %v370
    %1378 = vmatprep.subr.mxu0 0.0
    %1379 = vmatpush1.msra.mxu0 %v371
    %1380 = vmatprep.subr.mxu0 0.0
    %1381 = vmatpush1.msra.mxu0 %v372
    %1382 = vmatprep.subr.mxu0 0.0
    %1383 = vmatpush1.msra.mxu0 %v373
    %1384 = vmatprep.subr.mxu0 0.0
    %1385 = vmatpush1.msra.mxu0 0.0
    %1386 = vmatprep.subr.mxu0 0.0
    %1387 = vmatpush1.msra.mxu0 0.0
    %1388 = vmatprep.subr.mxu0 0.0
    %1389 = vmatpush1.msra.mxu0 0.0
    %1390 = vmatprep.subr.mxu0 0.0
    %1391 = vmatpush1.msra.mxu0 0.0
    %1392 = vmatprep.subr.mxu0 0.0
    %1393 = vmatpush1.msra.mxu0 0.0
    %1394 = vmatprep.subr.mxu0 0.0
    %1395 = vmatpush1.msra.mxu0 0.0
    %1396 = vmatprep.subr.mxu0 0.0
    %1397 = vmatpush1.msra.mxu0 0.0
    %1398 = vmatprep.subr.mxu0 0.0
    %1399 = vmatpush1.msra.mxu0 0.0
    %1400 = vmatprep.subr.mxu0 0.0
    %1401 = vmatpush1.msra.mxu0 0.0
    %1402 = vmatprep.subr.mxu0 0.0
    %1403 = vmatpush1.msra.mxu0 0.0
    %1404 = vmatprep.subr.mxu0 0.0
    %1405 = vmatpush1.msra.mxu0 0.0
    %1406 = vmatprep.subr.mxu0 0.0
    %1407 = vmatpush1.msra.mxu0 0.0
    %1408 = vmatprep.subr.mxu0 0.0
    %1409 = vmatpush1.msra.mxu0 0.0
    %1410 = vmatprep.subr.mxu0 0.0
    %1411 = vmatpush1.msra.mxu0 0.0
    %1412 = vmatprep.subr.mxu0 0.0
    %1413 = vmatpush1.msra.mxu0 0.0
    %1414 = vmatprep.subr.mxu0 0.0
    %1415 = vmatpush1.msra.mxu0 0.0
    %1416 = vmatprep.subr.mxu0 0.0
    %1417 = vmatpush1.msra.mxu0 0.0
    %1418 = vmatprep.subr.mxu0 0.0
    %1419 = vmatpush1.msra.mxu0 0.0
    %1420 = vmatprep.subr.mxu0 0.0
    %1421 = vmatpush1.msra.mxu0 0.0
    %1422 = vmatprep.subr.mxu0 0.0
    %1423 = vmatpush1.msra.mxu0 0.0
    %1424 = vmatprep.subr.mxu0 0.0
    %1425 = vmatpush1.msra.mxu0 0.0
    %1426 = vmatprep.subr.mxu0 0.0
    %1427 = vmatpush1.msra.mxu0 0.0
    %1428 = vmatprep.subr.mxu0 0.0
    %1429 = vmatpush1.msra.mxu0 0.0
    %1430 = vmatprep.subr.mxu0 0.0
    %1431 = vmatpush1.msra.mxu0 0.0
    %1432 = vmatprep.subr.mxu0 0.0
    %1433 = vmatpush1.msra.mxu0 0.0
    %1434 = vmatprep.subr.mxu0 0.0
    %1435 = vmatpush1.msra.mxu0 0.0
    %1436 = vmatprep.subr.mxu0 0.0
    %1437 = vmatpush1.msra.mxu0 0.0
    %1438 = vmatprep.subr.mxu0 0.0
    %1439 = vmatpush1.msra.mxu0 0.0
    %1440 = vmatprep.mubr.f32.mxu0 0.0
    %1441 = vmatmul.mubr.f32.gmra.mrb[0].mxu0 %v1374
    %v1442 = vpop.f32.mrb[0].mxu0
    %v1443 = vadd.f32 %v1368, %v1442
    %v1444 = vpop.f32.mrb[0].mxu0
    %1445 = vdwg.mxu0
    %v1446 = vadd.f32 %v1443, %v628
    %v1447 = vxor.u32 %v1446, 2147483648
    %v1448 = vmul.f32 %v1447, 1.442695
    %v1449 = vpow.pop %v1448
    %v1450 = vadd.f32 %v1449, 1.0
    %v1451 = vrcp.pop %v1450
    %v1452 = vmul.f32 1.0, %v1451
    %v1453 = vmul.f32 %v1452, 2.0
    %v1454 = vsub.f32 %v1453, 1.0
    %v1455 = vmul.f32 %v1452, %v1193
    %1457 = vrot.lane.b32.xlu0 %v1454, 64
    %v1458 = vpop.permute.xlu0 %1457
    %v1460 = vmul.f32 %v1452, %v1458
    %1462 = vrot.lane.b32.xlu0 %v1460, 32
    %v1463 = vpop.permute.xlu0 %1462
    %v1465 = vadd.f32 %v1455, %v1463
    %v1466 = vtanh.pop %v1465
    %1468 = vrot.lane.b32.xlu0 %v1466, 64
    %v1469 = vpop.permute.xlu0 %1468
    %v1471 = vmul.f32 %v1452, %v1469
    %1472 = vmatprep.subr.mxu0 0.0
    %1473 = vmatpush1.msra.mxu0 %v366
    %1474 = vmatprep.subr.mxu0 0.0
    %1475 = vmatpush1.msra.mxu0 %v367
    %1476 = vmatprep.subr.mxu0 0.0
    %1477 = vmatpush1.msra.mxu0 %v368
    %1478 = vmatprep.subr.mxu0 0.0
    %1479 = vmatpush1.msra.mxu0 %v369
    %1480 = vmatprep.subr.mxu0 0.0
    %1481 = vmatpush1.msra.mxu0 0.0
    %1482 = vmatprep.subr.mxu0 0.0
    %1483 = vmatpush1.msra.mxu0 0.0
    %1484 = vmatprep.subr.mxu0 0.0
    %1485 = vmatpush1.msra.mxu0 0.0
    %1486 = vmatprep.subr.mxu0 0.0
    %1487 = vmatpush1.msra.mxu0 0.0
    %1488 = vmatprep.subr.mxu0 0.0
    %1489 = vmatpush1.msra.mxu0 0.0
    %1490 = vmatprep.subr.mxu0 0.0
    %1491 = vmatpush1.msra.mxu0 0.0
    %1492 = vmatprep.subr.mxu0 0.0
    %1493 = vmatpush1.msra.mxu0 0.0
    %1494 = vmatprep.subr.mxu0 0.0
    %1495 = vmatpush1.msra.mxu0 0.0
    %1496 = vmatprep.subr.mxu0 0.0
    %1497 = vmatpush1.msra.mxu0 0.0
    %1498 = vmatprep.subr.mxu0 0.0
    %1499 = vmatpush1.msra.mxu0 0.0
    %1500 = vmatprep.subr.mxu0 0.0
    %1501 = vmatpush1.msra.mxu0 0.0
    %1502 = vmatprep.subr.mxu0 0.0
    %1503 = vmatpush1.msra.mxu0 0.0
    %1504 = vmatprep.subr.mxu0 0.0
    %1505 = vmatpush1.msra.mxu0 0.0
    %1506 = vmatprep.subr.mxu0 0.0
    %1507 = vmatpush1.msra.mxu0 0.0
    %1508 = vmatprep.subr.mxu0 0.0
    %1509 = vmatpush1.msra.mxu0 0.0
    %1510 = vmatprep.subr.mxu0 0.0
    %1511 = vmatpush1.msra.mxu0 0.0
    %1512 = vmatprep.subr.mxu0 0.0
    %1513 = vmatpush1.msra.mxu0 0.0
    %1514 = vmatprep.subr.mxu0 0.0
    %1515 = vmatpush1.msra.mxu0 0.0
    %1516 = vmatprep.subr.mxu0 0.0
    %1517 = vmatpush1.msra.mxu0 0.0
    %1518 = vmatprep.subr.mxu0 0.0
    %1519 = vmatpush1.msra.mxu0 0.0
    %1520 = vmatprep.subr.mxu0 0.0
    %1521 = vmatpush1.msra.mxu0 0.0
    %1522 = vmatprep.subr.mxu0 0.0
    %1523 = vmatpush1.msra.mxu0 0.0
    %1524 = vmatprep.subr.mxu0 0.0
    %1525 = vmatpush1.msra.mxu0 0.0
    %1526 = vmatprep.subr.mxu0 0.0
    %1527 = vmatpush1.msra.mxu0 0.0
    %1528 = vmatprep.subr.mxu0 0.0
    %1529 = vmatpush1.msra.mxu0 0.0
    %1530 = vmatprep.subr.mxu0 0.0
    %1531 = vmatpush1.msra.mxu0 0.0
    %1532 = vmatprep.subr.mxu0 0.0
    %1533 = vmatpush1.msra.mxu0 0.0
    %1534 = vmatprep.subr.mxu0 0.0
    %1535 = vmatpush1.msra.mxu0 0.0
    %1536 = vmatprep.mubr.f32.mxu0 0.0
    %1537 = vmatmul.mubr.f32.gmra.mrb[0].mxu0 %v1374
    %v1538 = vpop.f32.mrb[0].mxu0
    %v1539 = vadd.f32 0.0, %v1538
    %v1540 = vpop.f32.mrb[0].mxu0
    %1541 = vdwg.mxu0
    %v1542 = vadd.f32 %v362, %v1539
    %v1543 = vxor.u32 %v1542, 2147483648
    %v1544 = vmul.f32 %v1543, 1.442695
    %v1545 = vpow.pop %v1544
    %v1546 = vadd.f32 %v1545, 1.0
    %v1547 = vrcp.pop %v1546
    %v1548 = vmul.f32 1.0, %v1547
    %v1549 = vmul.f32 %v1548, 2.0
    %v1550 = vsub.f32 %v1549, 1.0
    %v1551 = vmul.f32 %v1548, %v1289
    %1553 = vrot.lane.b32.xlu0 %v1550, 64
    %v1554 = vpop.permute.xlu0 %1553
    %v1556 = vmul.f32 %v1548, %v1554
    %1558 = vrot.lane.b32.xlu0 %v1556, 32
    %v1559 = vpop.permute.xlu0 %1558
    %v1561 = vadd.f32 %v1551, %v1559
    %v1562 = vtanh.pop %v1561
    %1564 = vrot.lane.b32.xlu0 %v1562, 64
    %v1565 = vpop.permute.xlu0 %1564
    %v1567 = vmul.f32 %v1548, %v1565
    %1569 = vrot.lane.b32.xlu0 %v1471, 32
    %v1570 = vpop.permute.xlu0 %1569
    %v1571 = vsel %vm379, %v1570, 0
    %1573 = vmatprep.subr.mxu0 0.0
    %1574 = vmatpush1.msra.mxu0 %v374
    %1575 = vmatprep.subr.mxu0 0.0
    %1576 = vmatpush1.msra.mxu0 %v375
    %1577 = vmatprep.subr.mxu0 0.0
    %1578 = vmatpush1.msra.mxu0 %v376
    %1579 = vmatprep.subr.mxu0 0.0
    %1580 = vmatpush1.msra.mxu0 %v377
    %1581 = vmatprep.subr.mxu0 0.0
    %1582 = vmatpush1.msra.mxu0 0.0
    %1583 = vmatprep.subr.mxu0 0.0
    %1584 = vmatpush1.msra.mxu0 0.0
    %1585 = vmatprep.subr.mxu0 0.0
    %1586 = vmatpush1.msra.mxu0 0.0
    %1587 = vmatprep.subr.mxu0 0.0
    %1588 = vmatpush1.msra.mxu0 0.0
    %1589 = vmatprep.subr.mxu0 0.0
    %1590 = vmatpush1.msra.mxu0 0.0
    %1591 = vmatprep.subr.mxu0 0.0
    %1592 = vmatpush1.msra.mxu0 0.0
    %1593 = vmatprep.subr.mxu0 0.0
    %1594 = vmatpush1.msra.mxu0 0.0
    %1595 = vmatprep.subr.mxu0 0.0
    %1596 = vmatpush1.msra.mxu0 0.0
    %1597 = vmatprep.subr.mxu0 0.0
    %1598 = vmatpush1.msra.mxu0 0.0
    %1599 = vmatprep.subr.mxu0 0.0
    %1600 = vmatpush1.msra.mxu0 0.0
    %1601 = vmatprep.subr.mxu0 0.0
    %1602 = vmatpush1.msra.mxu0 0.0
    %1603 = vmatprep.subr.mxu0 0.0
    %1604 = vmatpush1.msra.mxu0 0.0
    %1605 = vmatprep.subr.mxu0 0.0
    %1606 = vmatpush1.msra.mxu0 0.0
    %1607 = vmatprep.subr.mxu0 0.0
    %1608 = vmatpush1.msra.mxu0 0.0
    %1609 = vmatprep.subr.mxu0 0.0
    %1610 = vmatpush1.msra.mxu0 0.0
    %1611 = vmatprep.subr.mxu0 0.0
    %1612 = vmatpush1.msra.mxu0 0.0
    %1613 = vmatprep.subr.mxu0 0.0
    %1614 = vmatpush1.msra.mxu0 0.0
    %1615 = vmatprep.subr.mxu0 0.0
    %1616 = vmatpush1.msra.mxu0 0.0
    %1617 = vmatprep.subr.mxu0 0.0
    %1618 = vmatpush1.msra.mxu0 0.0
    %1619 = vmatprep.subr.mxu0 0.0
    %1620 = vmatpush1.msra.mxu0 0.0
    %1621 = vmatprep.subr.mxu0 0.0
    %1622 = vmatpush1.msra.mxu0 0.0
    %1623 = vmatprep.subr.mxu0 0.0
    %1624 = vmatpush1.msra.mxu0 0.0
    %1625 = vmatprep.subr.mxu0 0.0
    %1626 = vmatpush1.msra.mxu0 0.0
    %1627 = vmatprep.subr.mxu0 0.0
    %1628 = vmatpush1.msra.mxu0 0.0
    %1629 = vmatprep.subr.mxu0 0.0
    %1630 = vmatpush1.msra.mxu0 0.0
    %1631 = vmatprep.subr.mxu0 0.0
    %1632 = vmatpush1.msra.mxu0 0.0
    %1633 = vmatprep.subr.mxu0 0.0
    %1634 = vmatpush1.msra.mxu0 0.0
    %1635 = vmatprep.subr.mxu0 0.0
    %1636 = vmatpush1.msra.mxu0 0.0
    %1637 = vmatprep.mubr.f32.mxu0 0.0
    %1638 = vmatmul.mubr.f32.gmra.mrb[0].mxu0 %v1571
    %v1639 = vpop.f32.mrb[0].mxu0
    %v1640 = vadd.f32 0.0, %v1639
    %v1641 = vpop.f32.mrb[0].mxu0
    %1642 = vdwg.mxu0
    %1644 = vrot.lane.b32.xlu0 %v1567, 32
    %v1645 = vpop.permute.xlu0 %1644
    %v1646 = vsel %vm379, %v1645, 0
    %1648 = vmatprep.subr.mxu0 0.0
    %1649 = vmatpush1.msra.mxu0 %v370
    %1650 = vmatprep.subr.mxu0 0.0
    %1651 = vmatpush1.msra.mxu0 %v371
    %1652 = vmatprep.subr.mxu0 0.0
    %1653 = vmatpush1.msra.mxu0 %v372
    %1654 = vmatprep.subr.mxu0 0.0
    %1655 = vmatpush1.msra.mxu0 %v373
    %1656 = vmatprep.subr.mxu0 0.0
    %1657 = vmatpush1.msra.mxu0 0.0
    %1658 = vmatprep.subr.mxu0 0.0
    %1659 = vmatpush1.msra.mxu0 0.0
    %1660 = vmatprep.subr.mxu0 0.0
    %1661 = vmatpush1.msra.mxu0 0.0
    %1662 = vmatprep.subr.mxu0 0.0
    %1663 = vmatpush1.msra.mxu0 0.0
    %1664 = vmatprep.subr.mxu0 0.0
    %1665 = vmatpush1.msra.mxu0 0.0
    %1666 = vmatprep.subr.mxu0 0.0
    %1667 = vmatpush1.msra.mxu0 0.0
    %1668 = vmatprep.subr.mxu0 0.0
    %1669 = vmatpush1.msra.mxu0 0.0
    %1670 = vmatprep.subr.mxu0 0.0
    %1671 = vmatpush1.msra.mxu0 0.0
    %1672 = vmatprep.subr.mxu0 0.0
    %1673 = vmatpush1.msra.mxu0 0.0
    %1674 = vmatprep.subr.mxu0 0.0
    %1675 = vmatpush1.msra.mxu0 0.0
    %1676 = vmatprep.subr.mxu0 0.0
    %1677 = vmatpush1.msra.mxu0 0.0
    %1678 = vmatprep.subr.mxu0 0.0
    %1679 = vmatpush1.msra.mxu0 0.0
    %1680 = vmatprep.subr.mxu0 0.0
    %1681 = vmatpush1.msra.mxu0 0.0
    %1682 = vmatprep.subr.mxu0 0.0
    %1683 = vmatpush1.msra.mxu0 0.0
    %1684 = vmatprep.subr.mxu0 0.0
    %1685 = vmatpush1.msra.mxu0 0.0
    %1686 = vmatprep.subr.mxu0 0.0
    %1687 = vmatpush1.msra.mxu0 0.0
    %1688 = vmatprep.subr.mxu0 0.0
    %1689 = vmatpush1.msra.mxu0 0.0
    %1690 = vmatprep.subr.mxu0 0.0
    %1691 = vmatpush1.msra.mxu0 0.0
    %1692 = vmatprep.subr.mxu0 0.0
    %1693 = vmatpush1.msra.mxu0 0.0
    %1694 = vmatprep.subr.mxu0 0.0
    %1695 = vmatpush1.msra.mxu0 0.0
    %1696 = vmatprep.subr.mxu0 0.0
    %1697 = vmatpush1.msra.mxu0 0.0
    %1698 = vmatprep.subr.mxu0 0.0
    %1699 = vmatpush1.msra.mxu0 0.0
    %1700 = vmatprep.subr.mxu0 0.0
    %1701 = vmatpush1.msra.mxu0 0.0
    %1702 = vmatprep.subr.mxu0 0.0
    %1703 = vmatpush1.msra.mxu0 0.0
    %1704 = vmatprep.subr.mxu0 0.0
    %1705 = vmatpush1.msra.mxu0 0.0
    %1706 = vmatprep.subr.mxu0 0.0
    %1707 = vmatpush1.msra.mxu0 0.0
    %1708 = vmatprep.subr.mxu0 0.0
    %1709 = vmatpush1.msra.mxu0 0.0
    %1710 = vmatprep.subr.mxu0 0.0
    %1711 = vmatpush1.msra.mxu0 0.0
    %1712 = vmatprep.mubr.f32.mxu0 0.0
    %1713 = vmatmul.mubr.f32.gmra.mrb[0].mxu0 %v1646
    %v1714 = vpop.f32.mrb[0].mxu0
    %v1715 = vadd.f32 %v1640, %v1714
    %v1716 = vpop.f32.mrb[0].mxu0
    %1717 = vdwg.mxu0
    %v1718 = vadd.f32 %v1715, %v628
    %v1719 = vxor.u32 %v1718, 2147483648
    %v1720 = vmul.f32 %v1719, 1.442695
    %v1721 = vpow.pop %v1720
    %v1722 = vadd.f32 %v1721, 1.0
    %v1723 = vrcp.pop %v1722
    %v1724 = vmul.f32 1.0, %v1723
    %v1725 = vmul.f32 %v1724, 2.0
    %v1726 = vsub.f32 %v1725, 1.0
    %v1727 = vmul.f32 %v1724, %v1465
    %1729 = vrot.lane.b32.xlu0 %v1726, 64
    %v1730 = vpop.permute.xlu0 %1729
    %v1732 = vmul.f32 %v1724, %v1730
    %1734 = vrot.lane.b32.xlu0 %v1732, 32
    %v1735 = vpop.permute.xlu0 %1734
    %v1737 = vadd.f32 %v1727, %v1735
    %v1738 = vtanh.pop %v1737
    %1740 = vrot.lane.b32.xlu0 %v1738, 64
    %v1741 = vpop.permute.xlu0 %1740
    %v1743 = vmul.f32 %v1724, %v1741
    %1744 = vmatprep.subr.mxu0 0.0
    %1745 = vmatpush1.msra.mxu0 %v366
    %1746 = vmatprep.subr.mxu0 0.0
    %1747 = vmatpush1.msra.mxu0 %v367
    %1748 = vmatprep.subr.mxu0 0.0
    %1749 = vmatpush1.msra.mxu0 %v368
    %1750 = vmatprep.subr.mxu0 0.0
    %1751 = vmatpush1.msra.mxu0 %v369
    %1752 = vmatprep.subr.mxu0 0.0
    %1753 = vmatpush1.msra.mxu0 0.0
    %1754 = vmatprep.subr.mxu0 0.0
    %1755 = vmatpush1.msra.mxu0 0.0
    %1756 = vmatprep.subr.mxu0 0.0
    %1757 = vmatpush1.msra.mxu0 0.0
    %1758 = vmatprep.subr.mxu0 0.0
    %1759 = vmatpush1.msra.mxu0 0.0
    %1760 = vmatprep.subr.mxu0 0.0
    %1761 = vmatpush1.msra.mxu0 0.0
    %1762 = vmatprep.subr.mxu0 0.0
    %1763 = vmatpush1.msra.mxu0 0.0
    %1764 = vmatprep.subr.mxu0 0.0
    %1765 = vmatpush1.msra.mxu0 0.0
    %1766 = vmatprep.subr.mxu0 0.0
    %1767 = vmatpush1.msra.mxu0 0.0
    %1768 = vmatprep.subr.mxu0 0.0
    %1769 = vmatpush1.msra.mxu0 0.0
    %1770 = vmatprep.subr.mxu0 0.0
    %1771 = vmatpush1.msra.mxu0 0.0
    %1772 = vmatprep.subr.mxu0 0.0
    %1773 = vmatpush1.msra.mxu0 0.0
    %1774 = vmatprep.subr.mxu0 0.0
    %1775 = vmatpush1.msra.mxu0 0.0
    %1776 = vmatprep.subr.mxu0 0.0
    %1777 = vmatpush1.msra.mxu0 0.0
    %1778 = vmatprep.subr.mxu0 0.0
    %1779 = vmatpush1.msra.mxu0 0.0
    %1780 = vmatprep.subr.mxu0 0.0
    %1781 = vmatpush1.msra.mxu0 0.0
    %1782 = vmatprep.subr.mxu0 0.0
    %1783 = vmatpush1.msra.mxu0 0.0
    %1784 = vmatprep.subr.mxu0 0.0
    %1785 = vmatpush1.msra.mxu0 0.0
    %1786 = vmatprep.subr.mxu0 0.0
    %1787 = vmatpush1.msra.mxu0 0.0
    %1788 = vmatprep.subr.mxu0 0.0
    %1789 = vmatpush1.msra.mxu0 0.0
    %1790 = vmatprep.subr.mxu0 0.0
    %1791 = vmatpush1.msra.mxu0 0.0
    %1792 = vmatprep.subr.mxu0 0.0
    %1793 = vmatpush1.msra.mxu0 0.0
    %1794 = vmatprep.subr.mxu0 0.0
    %1795 = vmatpush1.msra.mxu0 0.0
    %1796 = vmatprep.subr.mxu0 0.0
    %1797 = vmatpush1.msra.mxu0 0.0
    %1798 = vmatprep.subr.mxu0 0.0
    %1799 = vmatpush1.msra.mxu0 0.0
    %1800 = vmatprep.subr.mxu0 0.0
    %1801 = vmatpush1.msra.mxu0 0.0
    %1802 = vmatprep.subr.mxu0 0.0
    %1803 = vmatpush1.msra.mxu0 0.0
    %1804 = vmatprep.subr.mxu0 0.0
    %1805 = vmatpush1.msra.mxu0 0.0
    %1806 = vmatprep.subr.mxu0 0.0
    %1807 = vmatpush1.msra.mxu0 0.0
    %1808 = vmatprep.mubr.f32.mxu0 0.0
    %1809 = vmatmul.mubr.f32.gmra.mrb[0].mxu0 %v1646
    %v1810 = vpop.f32.mrb[0].mxu0
    %v1811 = vadd.f32 0.0, %v1810
    %v1812 = vpop.f32.mrb[0].mxu0
    %1813 = vdwg.mxu0
    %v1814 = vadd.f32 %v363, %v1811
    %v1815 = vxor.u32 %v1814, 2147483648
    %v1816 = vmul.f32 %v1815, 1.442695
    %v1817 = vpow.pop %v1816
    %v1818 = vadd.f32 %v1817, 1.0
    %v1819 = vrcp.pop %v1818
    %v1820 = vmul.f32 1.0, %v1819
    %v1821 = vmul.f32 %v1820, 2.0
    %v1822 = vsub.f32 %v1821, 1.0
    %v1823 = vmul.f32 %v1820, %v1561
    %1825 = vrot.lane.b32.xlu0 %v1822, 64
    %v1826 = vpop.permute.xlu0 %1825
    %v1828 = vmul.f32 %v1820, %v1826
    %1830 = vrot.lane.b32.xlu0 %v1828, 32
    %v1831 = vpop.permute.xlu0 %1830
    %v1833 = vadd.f32 %v1823, %v1831
    %v1834 = vtanh.pop %v1833
    %1836 = vrot.lane.b32.xlu0 %v1834, 64
    %v1837 = vpop.permute.xlu0 %1836
    %v1839 = vmul.f32 %v1820, %v1837
    %1841 = vrot.lane.b32.xlu0 %v1743, 32
    %v1842 = vpop.permute.xlu0 %1841
    %v1843 = vsel %vm379, %v1842, 0
    %1845 = vmatprep.subr.mxu0 0.0
    %1846 = vmatpush1.msra.mxu0 %v374
    %1847 = vmatprep.subr.mxu0 0.0
    %1848 = vmatpush1.msra.mxu0 %v375
    %1849 = vmatprep.subr.mxu0 0.0
    %1850 = vmatpush1.msra.mxu0 %v376
    %1851 = vmatprep.subr.mxu0 0.0
    %1852 = vmatpush1.msra.mxu0 %v377
    %1853 = vmatprep.subr.mxu0 0.0
    %1854 = vmatpush1.msra.mxu0 0.0
    %1855 = vmatprep.subr.mxu0 0.0
    %1856 = vmatpush1.msra.mxu0 0.0
    %1857 = vmatprep.subr.mxu0 0.0
    %1858 = vmatpush1.msra.mxu0 0.0
    %1859 = vmatprep.subr.mxu0 0.0
    %1860 = vmatpush1.msra.mxu0 0.0
    %1861 = vmatprep.subr.mxu0 0.0
    %1862 = vmatpush1.msra.mxu0 0.0
    %1863 = vmatprep.subr.mxu0 0.0
    %1864 = vmatpush1.msra.mxu0 0.0
    %1865 = vmatprep.subr.mxu0 0.0
    %1866 = vmatpush1.msra.mxu0 0.0
    %1867 = vmatprep.subr.mxu0 0.0
    %1868 = vmatpush1.msra.mxu0 0.0
    %1869 = vmatprep.subr.mxu0 0.0
    %1870 = vmatpush1.msra.mxu0 0.0
    %1871 = vmatprep.subr.mxu0 0.0
    %1872 = vmatpush1.msra.mxu0 0.0
    %1873 = vmatprep.subr.mxu0 0.0
    %1874 = vmatpush1.msra.mxu0 0.0
    %1875 = vmatprep.subr.mxu0 0.0
    %1876 = vmatpush1.msra.mxu0 0.0
    %1877 = vmatprep.subr.mxu0 0.0
    %1878 = vmatpush1.msra.mxu0 0.0
    %1879 = vmatprep.subr.mxu0 0.0
    %1880 = vmatpush1.msra.mxu0 0.0
    %1881 = vmatprep.subr.mxu0 0.0
    %1882 = vmatpush1.msra.mxu0 0.0
    %1883 = vmatprep.subr.mxu0 0.0
    %1884 = vmatpush1.msra.mxu0 0.0
    %1885 = vmatprep.subr.mxu0 0.0
    %1886 = vmatpush1.msra.mxu0 0.0
    %1887 = vmatprep.subr.mxu0 0.0
    %1888 = vmatpush1.msra.mxu0 0.0
    %1889 = vmatprep.subr.mxu0 0.0
    %1890 = vmatpush1.msra.mxu0 0.0
    %1891 = vmatprep.subr.mxu0 0.0
    %1892 = vmatpush1.msra.mxu0 0.0
    %1893 = vmatprep.subr.mxu0 0.0
    %1894 = vmatpush1.msra.mxu0 0.0
    %1895 = vmatprep.subr.mxu0 0.0
    %1896 = vmatpush1.msra.mxu0 0.0
    %1897 = vmatprep.subr.mxu0 0.0
    %1898 = vmatpush1.msra.mxu0 0.0
    %1899 = vmatprep.subr.mxu0 0.0
    %1900 = vmatpush1.msra.mxu0 0.0
    %1901 = vmatprep.subr.mxu0 0.0
    %1902 = vmatpush1.msra.mxu0 0.0
    %1903 = vmatprep.subr.mxu0 0.0
    %1904 = vmatpush1.msra.mxu0 0.0
    %1905 = vmatprep.subr.mxu0 0.0
    %1906 = vmatpush1.msra.mxu0 0.0
    %1907 = vmatprep.subr.mxu0 0.0
    %1908 = vmatpush1.msra.mxu0 0.0
    %1909 = vmatprep.mubr.f32.mxu0 0.0
    %1910 = vmatmul.mubr.f32.gmra.mrb[0].mxu0 %v1843
    %v1911 = vpop.f32.mrb[0].mxu0
    %v1912 = vadd.f32 0.0, %v1911
    %v1913 = vpop.f32.mrb[0].mxu0
    %1914 = vdwg.mxu0
    %1916 = vrot.lane.b32.xlu0 %v1839, 32
    %v1917 = vpop.permute.xlu0 %1916
    %v1918 = vsel %vm379, %v1917, 0
    %1920 = vmatprep.subr.mxu0 0.0
    %1921 = vmatpush1.msra.mxu0 %v370
    %1922 = vmatprep.subr.mxu0 0.0
    %1923 = vmatpush1.msra.mxu0 %v371
    %1924 = vmatprep.subr.mxu0 0.0
    %1925 = vmatpush1.msra.mxu0 %v372
    %1926 = vmatprep.subr.mxu0 0.0
    %1927 = vmatpush1.msra.mxu0 %v373
    %1928 = vmatprep.subr.mxu0 0.0
    %1929 = vmatpush1.msra.mxu0 0.0
    %1930 = vmatprep.subr.mxu0 0.0
    %1931 = vmatpush1.msra.mxu0 0.0
    %1932 = vmatprep.subr.mxu0 0.0
    %1933 = vmatpush1.msra.mxu0 0.0
    %1934 = vmatprep.subr.mxu0 0.0
    %1935 = vmatpush1.msra.mxu0 0.0
    %1936 = vmatprep.subr.mxu0 0.0
    %1937 = vmatpush1.msra.mxu0 0.0
    %1938 = vmatprep.subr.mxu0 0.0
    %1939 = vmatpush1.msra.mxu0 0.0
    %1940 = vmatprep.subr.mxu0 0.0
    %1941 = vmatpush1.msra.mxu0 0.0
    %1942 = vmatprep.subr.mxu0 0.0
    %1943 = vmatpush1.msra.mxu0 0.0
    %1944 = vmatprep.subr.mxu0 0.0
    %1945 = vmatpush1.msra.mxu0 0.0
    %1946 = vmatprep.subr.mxu0 0.0
    %1947 = vmatpush1.msra.mxu0 0.0
    %1948 = vmatprep.subr.mxu0 0.0
    %1949 = vmatpush1.msra.mxu0 0.0
    %1950 = vmatprep.subr.mxu0 0.0
    %1951 = vmatpush1.msra.mxu0 0.0
    %1952 = vmatprep.subr.mxu0 0.0
    %1953 = vmatpush1.msra.mxu0 0.0
    %1954 = vmatprep.subr.mxu0 0.0
    %1955 = vmatpush1.msra.mxu0 0.0
    %1956 = vmatprep.subr.mxu0 0.0
    %1957 = vmatpush1.msra.mxu0 0.0
    %1958 = vmatprep.subr.mxu0 0.0
    %1959 = vmatpush1.msra.mxu0 0.0
    %1960 = vmatprep.subr.mxu0 0.0
    %1961 = vmatpush1.msra.mxu0 0.0
    %1962 = vmatprep.subr.mxu0 0.0
    %1963 = vmatpush1.msra.mxu0 0.0
    %1964 = vmatprep.subr.mxu0 0.0
    %1965 = vmatpush1.msra.mxu0 0.0
    %1966 = vmatprep.subr.mxu0 0.0
    %1967 = vmatpush1.msra.mxu0 0.0
    %1968 = vmatprep.subr.mxu0 0.0
    %1969 = vmatpush1.msra.mxu0 0.0
    %1970 = vmatprep.subr.mxu0 0.0
    %1971 = vmatpush1.msra.mxu0 0.0
    %1972 = vmatprep.subr.mxu0 0.0
    %1973 = vmatpush1.msra.mxu0 0.0
    %1974 = vmatprep.subr.mxu0 0.0
    %1975 = vmatpush1.msra.mxu0 0.0
    %1976 = vmatprep.subr.mxu0 0.0
    %1977 = vmatpush1.msra.mxu0 0.0
    %1978 = vmatprep.subr.mxu0 0.0
    %1979 = vmatpush1.msra.mxu0 0.0
    %1980 = vmatprep.subr.mxu0 0.0
    %1981 = vmatpush1.msra.mxu0 0.0
    %1982 = vmatprep.subr.mxu0 0.0
    %1983 = vmatpush1.msra.mxu0 0.0
    %1984 = vmatprep.mubr.f32.mxu0 0.0
    %1985 = vmatmul.mubr.f32.gmra.mrb[0].mxu0 %v1918
    %v1986 = vpop.f32.mrb[0].mxu0
    %v1987 = vadd.f32 %v1912, %v1986
    %v1988 = vpop.f32.mrb[0].mxu0
    %1989 = vdwg.mxu0
    %v1990 = vadd.f32 %v1987, %v628
    %v1991 = vxor.u32 %v1990, 2147483648
    %v1992 = vmul.f32 %v1991, 1.442695
    %v1993 = vpow.pop %v1992
    %v1994 = vadd.f32 %v1993, 1.0
    %v1995 = vrcp.pop %v1994
    %v1996 = vmul.f32 1.0, %v1995
    %v1997 = vmul.f32 %v1996, 2.0
    %v1998 = vsub.f32 %v1997, 1.0
    %v1999 = vmul.f32 %v1996, %v1737
    %2001 = vrot.lane.b32.xlu0 %v1998, 64
    %v2002 = vpop.permute.xlu0 %2001
    %v2004 = vmul.f32 %v1996, %v2002
    %2006 = vrot.lane.b32.xlu0 %v2004, 32
    %v2007 = vpop.permute.xlu0 %2006
    %v2009 = vadd.f32 %v1999, %v2007
    %v2010 = vtanh.pop %v2009
    %2012 = vrot.lane.b32.xlu0 %v2010, 64
    %v2013 = vpop.permute.xlu0 %2012
    %v2015 = vmul.f32 %v1996, %v2013
    %2016 = vmatprep.subr.mxu0 0.0
    %2017 = vmatpush1.msra.mxu0 %v366
    %2018 = vmatprep.subr.mxu0 0.0
    %2019 = vmatpush1.msra.mxu0 %v367
    %2020 = vmatprep.subr.mxu0 0.0
    %2021 = vmatpush1.msra.mxu0 %v368
    %2022 = vmatprep.subr.mxu0 0.0
    %2023 = vmatpush1.msra.mxu0 %v369
    %2024 = vmatprep.subr.mxu0 0.0
    %2025 = vmatpush1.msra.mxu0 0.0
    %2026 = vmatprep.subr.mxu0 0.0
    %2027 = vmatpush1.msra.mxu0 0.0
    %2028 = vmatprep.subr.mxu0 0.0
    %2029 = vmatpush1.msra.mxu0 0.0
    %2030 = vmatprep.subr.mxu0 0.0
    %2031 = vmatpush1.msra.mxu0 0.0
    %2032 = vmatprep.subr.mxu0 0.0
    %2033 = vmatpush1.msra.mxu0 0.0
    %2034 = vmatprep.subr.mxu0 0.0
    %2035 = vmatpush1.msra.mxu0 0.0
    %2036 = vmatprep.subr.mxu0 0.0
    %2037 = vmatpush1.msra.mxu0 0.0
    %2038 = vmatprep.subr.mxu0 0.0
    %2039 = vmatpush1.msra.mxu0 0.0
    %2040 = vmatprep.subr.mxu0 0.0
    %2041 = vmatpush1.msra.mxu0 0.0
    %2042 = vmatprep.subr.mxu0 0.0
    %2043 = vmatpush1.msra.mxu0 0.0
    %2044 = vmatprep.subr.mxu0 0.0
    %2045 = vmatpush1.msra.mxu0 0.0
    %2046 = vmatprep.subr.mxu0 0.0
    %2047 = vmatpush1.msra.mxu0 0.0
    %2048 = vmatprep.subr.mxu0 0.0
    %2049 = vmatpush1.msra.mxu0 0.0
    %2050 = vmatprep.subr.mxu0 0.0
    %2051 = vmatpush1.msra.mxu0 0.0
    %2052 = vmatprep.subr.mxu0 0.0
    %2053 = vmatpush1.msra.mxu0 0.0
    %2054 = vmatprep.subr.mxu0 0.0
    %2055 = vmatpush1.msra.mxu0 0.0
    %2056 = vmatprep.subr.mxu0 0.0
    %2057 = vmatpush1.msra.mxu0 0.0
    %2058 = vmatprep.subr.mxu0 0.0
    %2059 = vmatpush1.msra.mxu0 0.0
    %2060 = vmatprep.subr.mxu0 0.0
    %2061 = vmatpush1.msra.mxu0 0.0
    %2062 = vmatprep.subr.mxu0 0.0
    %2063 = vmatpush1.msra.mxu0 0.0
    %2064 = vmatprep.subr.mxu0 0.0
    %2065 = vmatpush1.msra.mxu0 0.0
    %2066 = vmatprep.subr.mxu0 0.0
    %2067 = vmatpush1.msra.mxu0 0.0
    %2068 = vmatprep.subr.mxu0 0.0
    %2069 = vmatpush1.msra.mxu0 0.0
    %2070 = vmatprep.subr.mxu0 0.0
    %2071 = vmatpush1.msra.mxu0 0.0
    %2072 = vmatprep.subr.mxu0 0.0
    %2073 = vmatpush1.msra.mxu0 0.0
    %2074 = vmatprep.subr.mxu0 0.0
    %2075 = vmatpush1.msra.mxu0 0.0
    %2076 = vmatprep.subr.mxu0 0.0
    %2077 = vmatpush1.msra.mxu0 0.0
    %2078 = vmatprep.subr.mxu0 0.0
    %2079 = vmatpush1.msra.mxu0 0.0
    %2080 = vmatprep.mubr.f32.mxu0 0.0
    %2081 = vmatmul.mubr.f32.gmra.mrb[0].mxu0 %v1918
    %v2082 = vpop.f32.mrb[0].mxu0
    %v2083 = vadd.f32 0.0, %v2082
    %v2084 = vpop.f32.mrb[0].mxu0
    %2085 = vdwg.mxu0
    %v2086 = vadd.f32 %v364, %v2083
    %v2087 = vxor.u32 %v2086, 2147483648
    %v2088 = vmul.f32 %v2087, 1.442695
    %v2089 = vpow.pop %v2088
    %v2090 = vadd.f32 %v2089, 1.0
    %v2091 = vrcp.pop %v2090
    %v2092 = vmul.f32 1.0, %v2091
    %v2093 = vmul.f32 %v2092, 2.0
    %v2094 = vsub.f32 %v2093, 1.0
    %v2095 = vmul.f32 %v2092, %v1833
    %2097 = vrot.lane.b32.xlu0 %v2094, 64
    %v2098 = vpop.permute.xlu0 %2097
    %v2100 = vmul.f32 %v2092, %v2098
    %2102 = vrot.lane.b32.xlu0 %v2100, 32
    %v2103 = vpop.permute.xlu0 %2102
    %v2105 = vadd.f32 %v2095, %v2103
    %v2106 = vtanh.pop %v2105
    %2108 = vrot.lane.b32.xlu0 %v2106, 64
    %v2109 = vpop.permute.xlu0 %2108
    %v2111 = vmul.f32 %v2092, %v2109
    %2113 = vrot.lane.b32.xlu0 %v2015, 32
    %v2114 = vpop.permute.xlu0 %2113
    %v2115 = vsel %vm379, %v2114, 0
    %2117 = vmatprep.subr.mxu0 0.0
    %2118 = vmatpush1.msra.mxu0 %v374
    %2119 = vmatprep.subr.mxu0 0.0
    %2120 = vmatpush1.msra.mxu0 %v375
    %2121 = vmatprep.subr.mxu0 0.0
    %2122 = vmatpush1.msra.mxu0 %v376
    %2123 = vmatprep.subr.mxu0 0.0
    %2124 = vmatpush1.msra.mxu0 %v377
    %2125 = vmatprep.subr.mxu0 0.0
    %2126 = vmatpush1.msra.mxu0 0.0
    %2127 = vmatprep.subr.mxu0 0.0
    %2128 = vmatpush1.msra.mxu0 0.0
    %2129 = vmatprep.subr.mxu0 0.0
    %2130 = vmatpush1.msra.mxu0 0.0
    %2131 = vmatprep.subr.mxu0 0.0
    %2132 = vmatpush1.msra.mxu0 0.0
    %2133 = vmatprep.subr.mxu0 0.0
    %2134 = vmatpush1.msra.mxu0 0.0
    %2135 = vmatprep.subr.mxu0 0.0
    %2136 = vmatpush1.msra.mxu0 0.0
    %2137 = vmatprep.subr.mxu0 0.0
    %2138 = vmatpush1.msra.mxu0 0.0
    %2139 = vmatprep.subr.mxu0 0.0
    %2140 = vmatpush1.msra.mxu0 0.0
    %2141 = vmatprep.subr.mxu0 0.0
    %2142 = vmatpush1.msra.mxu0 0.0
    %2143 = vmatprep.subr.mxu0 0.0
    %2144 = vmatpush1.msra.mxu0 0.0
    %2145 = vmatprep.subr.mxu0 0.0
    %2146 = vmatpush1.msra.mxu0 0.0
    %2147 = vmatprep.subr.mxu0 0.0
    %2148 = vmatpush1.msra.mxu0 0.0
    %2149 = vmatprep.subr.mxu0 0.0
    %2150 = vmatpush1.msra.mxu0 0.0
    %2151 = vmatprep.subr.mxu0 0.0
    %2152 = vmatpush1.msra.mxu0 0.0
    %2153 = vmatprep.subr.mxu0 0.0
    %2154 = vmatpush1.msra.mxu0 0.0
    %2155 = vmatprep.subr.mxu0 0.0
    %2156 = vmatpush1.msra.mxu0 0.0
    %2157 = vmatprep.subr.mxu0 0.0
    %2158 = vmatpush1.msra.mxu0 0.0
    %2159 = vmatprep.subr.mxu0 0.0
    %2160 = vmatpush1.msra.mxu0 0.0
    %2161 = vmatprep.subr.mxu0 0.0
    %2162 = vmatpush1.msra.mxu0 0.0
    %2163 = vmatprep.subr.mxu0 0.0
    %2164 = vmatpush1.msra.mxu0 0.0
    %2165 = vmatprep.subr.mxu0 0.0
    %2166 = vmatpush1.msra.mxu0 0.0
    %2167 = vmatprep.subr.mxu0 0.0
    %2168 = vmatpush1.msra.mxu0 0.0
    %2169 = vmatprep.subr.mxu0 0.0
    %2170 = vmatpush1.msra.mxu0 0.0
    %2171 = vmatprep.subr.mxu0 0.0
    %2172 = vmatpush1.msra.mxu0 0.0
    %2173 = vmatprep.subr.mxu0 0.0
    %2174 = vmatpush1.msra.mxu0 0.0
    %2175 = vmatprep.subr.mxu0 0.0
    %2176 = vmatpush1.msra.mxu0 0.0
    %2177 = vmatprep.subr.mxu0 0.0
    %2178 = vmatpush1.msra.mxu0 0.0
    %2179 = vmatprep.subr.mxu0 0.0
    %2180 = vmatpush1.msra.mxu0 0.0
    %2181 = vmatprep.mubr.f32.mxu0 0.0
    %2182 = vmatmul.mubr.f32.gmra.mrb[0].mxu0 %v2115
    %v2183 = vpop.f32.mrb[0].mxu0
    %v2184 = vadd.f32 0.0, %v2183
    %v2185 = vpop.f32.mrb[0].mxu0
    %2186 = vdwg.mxu0
    %2188 = vrot.lane.b32.xlu0 %v2111, 32
    %v2189 = vpop.permute.xlu0 %2188
    %v2190 = vsel %vm379, %v2189, 0
    %2192 = vmatprep.subr.mxu0 0.0
    %2193 = vmatpush1.msra.mxu0 %v370
    %2194 = vmatprep.subr.mxu0 0.0
    %2195 = vmatpush1.msra.mxu0 %v371
    %2196 = vmatprep.subr.mxu0 0.0
    %2197 = vmatpush1.msra.mxu0 %v372
    %2198 = vmatprep.subr.mxu0 0.0
    %2199 = vmatpush1.msra.mxu0 %v373
    %2200 = vmatprep.subr.mxu0 0.0
    %2201 = vmatpush1.msra.mxu0 0.0
    %2202 = vmatprep.subr.mxu0 0.0
    %2203 = vmatpush1.msra.mxu0 0.0
    %2204 = vmatprep.subr.mxu0 0.0
    %2205 = vmatpush1.msra.mxu0 0.0
    %2206 = vmatprep.subr.mxu0 0.0
    %2207 = vmatpush1.msra.mxu0 0.0
    %2208 = vmatprep.subr.mxu0 0.0
    %2209 = vmatpush1.msra.mxu0 0.0
    %2210 = vmatprep.subr.mxu0 0.0
    %2211 = vmatpush1.msra.mxu0 0.0
    %2212 = vmatprep.subr.mxu0 0.0
    %2213 = vmatpush1.msra.mxu0 0.0
    %2214 = vmatprep.subr.mxu0 0.0
    %2215 = vmatpush1.msra.mxu0 0.0
    %2216 = vmatprep.subr.mxu0 0.0
    %2217 = vmatpush1.msra.mxu0 0.0
    %2218 = vmatprep.subr.mxu0 0.0
    %2219 = vmatpush1.msra.mxu0 0.0
    %2220 = vmatprep.subr.mxu0 0.0
    %2221 = vmatpush1.msra.mxu0 0.0
    %2222 = vmatprep.subr.mxu0 0.0
    %2223 = vmatpush1.msra.mxu0 0.0
    %2224 = vmatprep.subr.mxu0 0.0
    %2225 = vmatpush1.msra.mxu0 0.0
    %2226 = vmatprep.subr.mxu0 0.0
    %2227 = vmatpush1.msra.mxu0 0.0
    %2228 = vmatprep.subr.mxu0 0.0
    %2229 = vmatpush1.msra.mxu0 0.0
    %2230 = vmatprep.subr.mxu0 0.0
    %2231 = vmatpush1.msra.mxu0 0.0
    %2232 = vmatprep.subr.mxu0 0.0
    %2233 = vmatpush1.msra.mxu0 0.0
    %2234 = vmatprep.subr.mxu0 0.0
    %2235 = vmatpush1.msra.mxu0 0.0
    %2236 = vmatprep.subr.mxu0 0.0
    %2237 = vmatpush1.msra.mxu0 0.0
    %2238 = vmatprep.subr.mxu0 0.0
    %2239 = vmatpush1.msra.mxu0 0.0
    %2240 = vmatprep.subr.mxu0 0.0
    %2241 = vmatpush1.msra.mxu0 0.0
    %2242 = vmatprep.subr.mxu0 0.0
    %2243 = vmatpush1.msra.mxu0 0.0
    %2244 = vmatprep.subr.mxu0 0.0
    %2245 = vmatpush1.msra.mxu0 0.0
    %2246 = vmatprep.subr.mxu0 0.0
    %2247 = vmatpush1.msra.mxu0 0.0
    %2248 = vmatprep.subr.mxu0 0.0
    %2249 = vmatpush1.msra.mxu0 0.0
    %2250 = vmatprep.subr.mxu0 0.0
    %2251 = vmatpush1.msra.mxu0 0.0
    %2252 = vmatprep.subr.mxu0 0.0
    %2253 = vmatpush1.msra.mxu0 0.0
    %2254 = vmatprep.subr.mxu0 0.0
    %2255 = vmatpush1.msra.mxu0 0.0
    %2256 = vmatprep.mubr.f32.mxu0 0.0
    %2257 = vmatmul.mubr.f32.gmra.mrb[0].mxu0 %v2190
    %v2258 = vpop.f32.mrb[0].mxu0
    %v2259 = vadd.f32 %v2184, %v2258
    %v2260 = vpop.f32.mrb[0].mxu0
    %2261 = vdwg.mxu0
    %v2262 = vadd.f32 %v2259, %v628
    %v2263 = vxor.u32 %v2262, 2147483648
    %v2264 = vmul.f32 %v2263, 1.442695
    %v2265 = vpow.pop %v2264
    %v2266 = vadd.f32 %v2265, 1.0
    %v2267 = vrcp.pop %v2266
    %v2268 = vmul.f32 1.0, %v2267
    %v2269 = vmul.f32 %v2268, 2.0
    %v2270 = vsub.f32 %v2269, 1.0
    %v2271 = vmul.f32 %v2268, %v2009
    %2273 = vrot.lane.b32.xlu0 %v2270, 64
    %v2274 = vpop.permute.xlu0 %2273
    %v2276 = vmul.f32 %v2268, %v2274
    %2278 = vrot.lane.b32.xlu0 %v2276, 32
    %v2279 = vpop.permute.xlu0 %2278
    %v2281 = vadd.f32 %v2271, %v2279
    %v2282 = vtanh.pop %v2281
    %2284 = vrot.lane.b32.xlu0 %v2282, 64
    %v2285 = vpop.permute.xlu0 %2284
    %v2287 = vmul.f32 %v2268, %v2285
    %2288 = vmatprep.subr.mxu0 0.0
    %2289 = vmatpush1.msra.mxu0 %v366
    %2290 = vmatprep.subr.mxu0 0.0
    %2291 = vmatpush1.msra.mxu0 %v367
    %2292 = vmatprep.subr.mxu0 0.0
    %2293 = vmatpush1.msra.mxu0 %v368
    %2294 = vmatprep.subr.mxu0 0.0
    %2295 = vmatpush1.msra.mxu0 %v369
    %2296 = vmatprep.subr.mxu0 0.0
    %2297 = vmatpush1.msra.mxu0 0.0
    %2298 = vmatprep.subr.mxu0 0.0
    %2299 = vmatpush1.msra.mxu0 0.0
    %2300 = vmatprep.subr.mxu0 0.0
    %2301 = vmatpush1.msra.mxu0 0.0
    %2302 = vmatprep.subr.mxu0 0.0
    %2303 = vmatpush1.msra.mxu0 0.0
    %2304 = vmatprep.subr.mxu0 0.0
    %2305 = vmatpush1.msra.mxu0 0.0
    %2306 = vmatprep.subr.mxu0 0.0
    %2307 = vmatpush1.msra.mxu0 0.0
    %2308 = vmatprep.subr.mxu0 0.0
    %2309 = vmatpush1.msra.mxu0 0.0
    %2310 = vmatprep.subr.mxu0 0.0
    %2311 = vmatpush1.msra.mxu0 0.0
    %2312 = vmatprep.subr.mxu0 0.0
    %2313 = vmatpush1.msra.mxu0 0.0
    %2314 = vmatprep.subr.mxu0 0.0
    %2315 = vmatpush1.msra.mxu0 0.0
    %2316 = vmatprep.subr.mxu0 0.0
    %2317 = vmatpush1.msra.mxu0 0.0
    %2318 = vmatprep.subr.mxu0 0.0
    %2319 = vmatpush1.msra.mxu0 0.0
    %2320 = vmatprep.subr.mxu0 0.0
    %2321 = vmatpush1.msra.mxu0 0.0
    %2322 = vmatprep.subr.mxu0 0.0
    %2323 = vmatpush1.msra.mxu0 0.0
    %2324 = vmatprep.subr.mxu0 0.0
    %2325 = vmatpush1.msra.mxu0 0.0
    %2326 = vmatprep.subr.mxu0 0.0
    %2327 = vmatpush1.msra.mxu0 0.0
    %2328 = vmatprep.subr.mxu0 0.0
    %2329 = vmatpush1.msra.mxu0 0.0
    %2330 = vmatprep.subr.mxu0 0.0
    %2331 = vmatpush1.msra.mxu0 0.0
    %2332 = vmatprep.subr.mxu0 0.0
    %2333 = vmatpush1.msra.mxu0 0.0
    %2334 = vmatprep.subr.mxu0 0.0
    %2335 = vmatpush1.msra.mxu0 0.0
    %2336 = vmatprep.subr.mxu0 0.0
    %2337 = vmatpush1.msra.mxu0 0.0
    %2338 = vmatprep.subr.mxu0 0.0
    %2339 = vmatpush1.msra.mxu0 0.0
    %2340 = vmatprep.subr.mxu0 0.0
    %2341 = vmatpush1.msra.mxu0 0.0
    %2342 = vmatprep.subr.mxu0 0.0
    %2343 = vmatpush1.msra.mxu0 0.0
    %2344 = vmatprep.subr.mxu0 0.0
    %2345 = vmatpush1.msra.mxu0 0.0
    %2346 = vmatprep.subr.mxu0 0.0
    %2347 = vmatpush1.msra.mxu0 0.0
    %2348 = vmatprep.subr.mxu0 0.0
    %2349 = vmatpush1.msra.mxu0 0.0
    %2350 = vmatprep.subr.mxu0 0.0
    %2351 = vmatpush1.msra.mxu0 0.0
    %2352 = vmatprep.mubr.f32.mxu0 0.0
    %2353 = vmatmul.mubr.f32.gmra.mrb[0].mxu0 %v2190
    %v2354 = vpop.f32.mrb[0].mxu0
    %v2355 = vadd.f32 0.0, %v2354
    %v2356 = vpop.f32.mrb[0].mxu0
    %2357 = vdwg.mxu0
    %v2358 = vadd.f32 %v365, %v2355
    %v2359 = vxor.u32 %v2358, 2147483648
    %v2360 = vmul.f32 %v2359, 1.442695
    %v2361 = vpow.pop %v2360
    %v2362 = vadd.f32 %v2361, 1.0
    %v2363 = vrcp.pop %v2362
    %v2364 = vmul.f32 1.0, %v2363
    %v2365 = vmul.f32 %v2364, 2.0
    %v2366 = vsub.f32 %v2365, 1.0
    %v2367 = vmul.f32 %v2364, %v2105
    %2369 = vrot.lane.b32.xlu0 %v2366, 64
    %v2370 = vpop.permute.xlu0 %2369
    %v2372 = vmul.f32 %v2364, %v2370
    %2374 = vrot.lane.b32.xlu0 %v2372, 32
    %v2375 = vpop.permute.xlu0 %2374
    %v2377 = vadd.f32 %v2367, %v2375
    %v2378 = vtanh.pop %v2377
    %2380 = vrot.lane.b32.xlu0 %v2378, 64
    %v2381 = vpop.permute.xlu0 %2380
    %v2383 = vmul.f32 %v2364, %v2381
    %2385 = vrot.lane.b32.xlu0 %v2287, 32
    %v2386 = vpop.permute.xlu0 %2385
    %v2387 = vsel %vm379, %v2386, 0
    %2389 = vmatprep.subr.mxu0 0.0
    %2390 = vmatpush1.msra.mxu0 %v374
    %2391 = vmatprep.subr.mxu0 0.0
    %2392 = vmatpush1.msra.mxu0 %v375
    %2393 = vmatprep.subr.mxu0 0.0
    %2394 = vmatpush1.msra.mxu0 %v376
    %2395 = vmatprep.subr.mxu0 0.0
    %2396 = vmatpush1.msra.mxu0 %v377
    %2397 = vmatprep.subr.mxu0 0.0
    %2398 = vmatpush1.msra.mxu0 0.0
    %2399 = vmatprep.subr.mxu0 0.0
    %2400 = vmatpush1.msra.mxu0 0.0
    %2401 = vmatprep.subr.mxu0 0.0
    %2402 = vmatpush1.msra.mxu0 0.0
    %2403 = vmatprep.subr.mxu0 0.0
    %2404 = vmatpush1.msra.mxu0 0.0
    %2405 = vmatprep.subr.mxu0 0.0
    %2406 = vmatpush1.msra.mxu0 0.0
    %2407 = vmatprep.subr.mxu0 0.0
    %2408 = vmatpush1.msra.mxu0 0.0
    %2409 = vmatprep.subr.mxu0 0.0
    %2410 = vmatpush1.msra.mxu0 0.0
    %2411 = vmatprep.subr.mxu0 0.0
    %2412 = vmatpush1.msra.mxu0 0.0
    %2413 = vmatprep.subr.mxu0 0.0
    %2414 = vmatpush1.msra.mxu0 0.0
    %2415 = vmatprep.subr.mxu0 0.0
    %2416 = vmatpush1.msra.mxu0 0.0
    %2417 = vmatprep.subr.mxu0 0.0
    %2418 = vmatpush1.msra.mxu0 0.0
    %2419 = vmatprep.subr.mxu0 0.0
    %2420 = vmatpush1.msra.mxu0 0.0
    %2421 = vmatprep.subr.mxu0 0.0
    %2422 = vmatpush1.msra.mxu0 0.0
    %2423 = vmatprep.subr.mxu0 0.0
    %2424 = vmatpush1.msra.mxu0 0.0
    %2425 = vmatprep.subr.mxu0 0.0
    %2426 = vmatpush1.msra.mxu0 0.0
    %2427 = vmatprep.subr.mxu0 0.0
    %2428 = vmatpush1.msra.mxu0 0.0
    %2429 = vmatprep.subr.mxu0 0.0
    %2430 = vmatpush1.msra.mxu0 0.0
    %2431 = vmatprep.subr.mxu0 0.0
    %2432 = vmatpush1.msra.mxu0 0.0
    %2433 = vmatprep.subr.mxu0 0.0
    %2434 = vmatpush1.msra.mxu0 0.0
    %2435 = vmatprep.subr.mxu0 0.0
    %2436 = vmatpush1.msra.mxu0 0.0
    %2437 = vmatprep.subr.mxu0 0.0
    %2438 = vmatpush1.msra.mxu0 0.0
    %2439 = vmatprep.subr.mxu0 0.0
    %2440 = vmatpush1.msra.mxu0 0.0
    %2441 = vmatprep.subr.mxu0 0.0
    %2442 = vmatpush1.msra.mxu0 0.0
    %2443 = vmatprep.subr.mxu0 0.0
    %2444 = vmatpush1.msra.mxu0 0.0
    %2445 = vmatprep.subr.mxu0 0.0
    %2446 = vmatpush1.msra.mxu0 0.0
    %2447 = vmatprep.subr.mxu0 0.0
    %2448 = vmatpush1.msra.mxu0 0.0
    %2449 = vmatprep.subr.mxu0 0.0
    %2450 = vmatpush1.msra.mxu0 0.0
    %2451 = vmatprep.subr.mxu0 0.0
    %2452 = vmatpush1.msra.mxu0 0.0
    %2453 = vmatprep.mubr.f32.mxu0 0.0
    %2454 = vmatmul.mubr.f32.gmra.mrb[0].mxu0 %v2387
    %v2455 = vpop.f32.mrb[0].mxu0
    %v2456 = vadd.f32 0.0, %v2455
    %v2457 = vpop.f32.mrb[0].mxu0
    %2458 = vdwg.mxu0
    %2460 = vrot.lane.b32.xlu0 %v2383, 32
    %v2461 = vpop.permute.xlu0 %2460
    %v2462 = vsel %vm379, %v2461, 0
    %2464 = vmatprep.subr.mxu0 0.0
    %2465 = vmatpush1.msra.mxu0 %v370
    %2466 = vmatprep.subr.mxu0 0.0
    %2467 = vmatpush1.msra.mxu0 %v371
    %2468 = vmatprep.subr.mxu0 0.0
    %2469 = vmatpush1.msra.mxu0 %v372
    %2470 = vmatprep.subr.mxu0 0.0
    %2471 = vmatpush1.msra.mxu0 %v373
    %2472 = vmatprep.subr.mxu0 0.0
    %2473 = vmatpush1.msra.mxu0 0.0
    %2474 = vmatprep.subr.mxu0 0.0
    %2475 = vmatpush1.msra.mxu0 0.0
    %2476 = vmatprep.subr.mxu0 0.0
    %2477 = vmatpush1.msra.mxu0 0.0
    %2478 = vmatprep.subr.mxu0 0.0
    %2479 = vmatpush1.msra.mxu0 0.0
    %2480 = vmatprep.subr.mxu0 0.0
    %2481 = vmatpush1.msra.mxu0 0.0
    %2482 = vmatprep.subr.mxu0 0.0
    %2483 = vmatpush1.msra.mxu0 0.0
    %2484 = vmatprep.subr.mxu0 0.0
    %2485 = vmatpush1.msra.mxu0 0.0
    %2486 = vmatprep.subr.mxu0 0.0
    %2487 = vmatpush1.msra.mxu0 0.0
    %2488 = vmatprep.subr.mxu0 0.0
    %2489 = vmatpush1.msra.mxu0 0.0
    %2490 = vmatprep.subr.mxu0 0.0
    %2491 = vmatpush1.msra.mxu0 0.0
    %2492 = vmatprep.subr.mxu0 0.0
    %2493 = vmatpush1.msra.mxu0 0.0
    %2494 = vmatprep.subr.mxu0 0.0
    %2495 = vmatpush1.msra.mxu0 0.0
    %2496 = vmatprep.subr.mxu0 0.0
    %2497 = vmatpush1.msra.mxu0 0.0
    %2498 = vmatprep.subr.mxu0 0.0
    %2499 = vmatpush1.msra.mxu0 0.0
    %2500 = vmatprep.subr.mxu0 0.0
    %2501 = vmatpush1.msra.mxu0 0.0
    %2502 = vmatprep.subr.mxu0 0.0
    %2503 = vmatpush1.msra.mxu0 0.0
    %2504 = vmatprep.subr.mxu0 0.0
    %2505 = vmatpush1.msra.mxu0 0.0
    %2506 = vmatprep.subr.mxu0 0.0
    %2507 = vmatpush1.msra.mxu0 0.0
    %2508 = vmatprep.subr.mxu0 0.0
    %2509 = vmatpush1.msra.mxu0 0.0
    %2510 = vmatprep.subr.mxu0 0.0
    %2511 = vmatpush1.msra.mxu0 0.0
    %2512 = vmatprep.subr.mxu0 0.0
    %2513 = vmatpush1.msra.mxu0 0.0
    %2514 = vmatprep.subr.mxu0 0.0
    %2515 = vmatpush1.msra.mxu0 0.0
    %2516 = vmatprep.subr.mxu0 0.0
    %2517 = vmatpush1.msra.mxu0 0.0
    %2518 = vmatprep.subr.mxu0 0.0
    %2519 = vmatpush1.msra.mxu0 0.0
    %2520 = vmatprep.subr.mxu0 0.0
    %2521 = vmatpush1.msra.mxu0 0.0
    %2522 = vmatprep.subr.mxu0 0.0
    %2523 = vmatpush1.msra.mxu0 0.0
    %2524 = vmatprep.subr.mxu0 0.0
    %2525 = vmatpush1.msra.mxu0 0.0
    %2526 = vmatprep.subr.mxu0 0.0
    %2527 = vmatpush1.msra.mxu0 0.0
    %2528 = vmatprep.mubr.f32.mxu0 0.0
    %2529 = vmatmul.mubr.f32.gmra.mrb[0].mxu0 %v2462
    %v2530 = vpop.f32.mrb[0].mxu0
    %v2531 = vadd.f32 %v2456, %v2530
    %v2532 = vpop.f32.mrb[0].mxu0
    %2533 = vdwg.mxu0
    %v2534 = vadd.f32 %v2531, %v628
    %v2535 = vxor.u32 %v2534, 2147483648
    %v2536 = vmul.f32 %v2535, 1.442695
    %v2537 = vpow.pop %v2536
    %v2538 = vadd.f32 %v2537, 1.0
    %v2539 = vrcp.pop %v2538
    %v2540 = vmul.f32 1.0, %v2539
    %v2541 = vmul.f32 %v2540, 2.0
    %v2542 = vsub.f32 %v2541, 1.0
    %v2543 = vmul.f32 %v2540, %v2281
    %2545 = vrot.lane.b32.xlu0 %v2542, 64
    %v2546 = vpop.permute.xlu0 %2545
    %v2548 = vmul.f32 %v2540, %v2546
    %2550 = vrot.lane.b32.xlu0 %v2548, 32
    %v2551 = vpop.permute.xlu0 %2550
    %v2553 = vadd.f32 %v2543, %v2551
    %v2554 = vtanh.pop %v2553
    %2556 = vrot.lane.b32.xlu0 %v2554, 64
    %v2557 = vpop.permute.xlu0 %2556
    %v2559 = vmul.f32 %v2540, %v2557
    %v2560 = vld [vmem:[%s7] sm:$0xff]
    %v2561 = vld [vmem:[%s7 + $0x8] sm:$0xff]
    %v2562 = vld [vmem:[%s7 + $0x10] sm:$0xff]
    %v2563 = vld [vmem:[%s7 + $0x18] sm:$0xff]
    %v2564 = vld [vmem:[#allocation8] sm:$0x1]
    %v2566 = vlaneseq
    %v2567 = vshrl.u32 %v2566, 7
    %v2568 = vsub.s32 0, %v2567
    %v2569 = vrot.slane %v2564, %v2568
    %2572 = vrot.lane.b32.xlu0 %v2559, 32
    %v2573 = vpop.permute.xlu0 %2572
    %v2574 = vsel %vm379, %v2573, 0
    %2576 = vmatprep.subr.mxu0 0.0
    %2577 = vmatpush1.msra.mxu0 %v2560
    %2578 = vmatprep.subr.mxu0 0.0
    %2579 = vmatpush1.msra.mxu0 %v2561
    %2580 = vmatprep.subr.mxu0 0.0
    %2581 = vmatpush1.msra.mxu0 %v2562
    %2582 = vmatprep.subr.mxu0 0.0
    %2583 = vmatpush1.msra.mxu0 %v2563
    %2584 = vmatprep.subr.mxu0 0.0
    %2585 = vmatpush1.msra.mxu0 0.0
    %2586 = vmatprep.subr.mxu0 0.0
    %2587 = vmatpush1.msra.mxu0 0.0
    %2588 = vmatprep.subr.mxu0 0.0
    %2589 = vmatpush1.msra.mxu0 0.0
    %2590 = vmatprep.subr.mxu0 0.0
    %2591 = vmatpush1.msra.mxu0 0.0
    %2592 = vmatprep.subr.mxu0 0.0
    %2593 = vmatpush1.msra.mxu0 0.0
    %2594 = vmatprep.subr.mxu0 0.0
    %2595 = vmatpush1.msra.mxu0 0.0
    %2596 = vmatprep.subr.mxu0 0.0
    %2597 = vmatpush1.msra.mxu0 0.0
    %2598 = vmatprep.subr.mxu0 0.0
    %2599 = vmatpush1.msra.mxu0 0.0
    %2600 = vmatprep.subr.mxu0 0.0
    %2601 = vmatpush1.msra.mxu0 0.0
    %2602 = vmatprep.subr.mxu0 0.0
    %2603 = vmatpush1.msra.mxu0 0.0
    %2604 = vmatprep.subr.mxu0 0.0
    %2605 = vmatpush1.msra.mxu0 0.0
    %2606 = vmatprep.subr.mxu0 0.0
    %2607 = vmatpush1.msra.mxu0 0.0
    %2608 = vmatprep.subr.mxu0 0.0
    %2609 = vmatpush1.msra.mxu0 0.0
    %2610 = vmatprep.subr.mxu0 0.0
    %2611 = vmatpush1.msra.mxu0 0.0
    %2612 = vmatprep.subr.mxu0 0.0
    %2613 = vmatpush1.msra.mxu0 0.0
    %2614 = vmatprep.subr.mxu0 0.0
    %2615 = vmatpush1.msra.mxu0 0.0
    %2616 = vmatprep.subr.mxu0 0.0
    %2617 = vmatpush1.msra.mxu0 0.0
    %2618 = vmatprep.subr.mxu0 0.0
    %2619 = vmatpush1.msra.mxu0 0.0
    %2620 = vmatprep.subr.mxu0 0.0
    %2621 = vmatpush1.msra.mxu0 0.0
    %2622 = vmatprep.subr.mxu0 0.0
    %2623 = vmatpush1.msra.mxu0 0.0
    %2624 = vmatprep.subr.mxu0 0.0
    %2625 = vmatpush1.msra.mxu0 0.0
    %2626 = vmatprep.subr.mxu0 0.0
    %2627 = vmatpush1.msra.mxu0 0.0
    %2628 = vmatprep.subr.mxu0 0.0
    %2629 = vmatpush1.msra.mxu0 0.0
    %2630 = vmatprep.subr.mxu0 0.0
    %2631 = vmatpush1.msra.mxu0 0.0
    %2632 = vmatprep.subr.mxu0 0.0
    %2633 = vmatpush1.msra.mxu0 0.0
    %2634 = vmatprep.subr.mxu0 0.0
    %2635 = vmatpush1.msra.mxu0 0.0
    %2636 = vmatprep.subr.mxu0 0.0
    %2637 = vmatpush1.msra.mxu0 0.0
    %2638 = vmatprep.subr.mxu0 0.0
    %2639 = vmatpush1.msra.mxu0 0.0
    %2640 = vmatprep.mubr.f32.mxu0 0.0
    %2641 = vmatmul.mubr.f32.gmra.mrb[0].mxu0 %v2574
    %v2642 = vpop.f32.mrb[0].mxu0
    %v2643 = vadd.f32 %v2569, %v2642
    %v2644 = vpop.f32.mrb[0].mxu0
    %2645 = vdwg.mxu0
    %vm2646 = vcmask 64512
    %2647 = vst.msk [vmem:[#allocation10] sm:$0xff] %vm2646, %v2643
    // Predicated region
    $region54: #{lstm_classifier_forward.1} parent=1 // pred_check
      _
    $region55: #{lstm_classifier_forward.1} parent=1 // pred_check_branch
      %2649 = sbr.rel (0) target = $region57
    $region56: #{lstm_classifier_forward.1} parent=1 // pred_region
      %s2651 = ssub.s32 128, 128
      %2652 = vsyncadd [#allocation4], %s2651
      %s2654 = sshll.u32 [#allocation10], 4
      %s2655 = int_to_ptr.vmem [resolvable:$true] %s2654
      %2657 = dma.vmem_to_hbm [thread:$0]  %s2655, 128, %s9, [#allocation4]
    $region57: #{lstm_classifier_forward.1} parent=1 // pred_fallthru
      _
    // Predicated region
    $region58: #{lstm_classifier_forward.1} parent=1 // pred_check
      _
    $region59: #{lstm_classifier_forward.1} parent=1 // pred_check_branch
      %2659 = sbr.rel (0) target = $region61
    $region60: #{lstm_classifier_forward.1} parent=1 // pred_region
      %2660 = dma.done [#allocation4], 128
    $region61: #{lstm_classifier_forward.1} parent=1 // pred_fallthru
      _
    %2661 = vsyncpa [#allocation3], 1
    %2662 = vsyncpa [#allocation6], 1
    %2663 = vsyncpa [#allocation9], 1
    %2664 = vsyncpa [#allocation4], 1

</llo_original>
